<compile_context>
chip_gen: v7x
topology: tpu7x:2x2x1
jax: 0.10.0
libtpu: 0.0.40
codegen_flags: <defaults>
</compile_context>

<pallas_src>
import functools
import math

import jax
import jax.numpy as jnp
from jax.experimental import pallas as pl
from jax.experimental.pallas import tpu as pltpu

# ViT-base is 224/16/768/12 layers/12 heads/3072 MLP; shrunk here so the
# synthetic kernel runs at small shapes while keeping identical dataflow.
IMG = 32
PATCH = 16
CHANNELS = 3
HIDDEN = 64
HEADS = 4
HEAD_DIM = HIDDEN // HEADS
MLP = 128
LAYERS = 2
EPS = 1e-12  # HF ViT layer_norm_eps

N_PATCHES = (IMG // PATCH) ** 2     # 4
SEQ = N_PATCHES + 1                 # 5 real tokens (cls + patches)
S_PAD = 8                           # sublane-aligned padded sequence length
PDIM = CHANNELS * PATCH * PATCH     # 768


# ---------------------------------------------------------------- kernels ---
def _layernorm(x, gamma, beta):
    mu = jnp.mean(x, axis=-1, keepdims=True)
    var = jnp.mean(jnp.square(x - mu), axis=-1, keepdims=True)
    return (x - mu) * jax.lax.rsqrt(var + EPS) * gamma + beta


def _make_vit_kernel(batch):
    bs = batch * S_PAD
    scale = 1.0 / math.sqrt(HEAD_DIM)

    def kernel(patches_ref, pw_ref, extra_ref, kbias_ref,
               ln1g_ref, ln1b_ref, wqkv_ref, bqkv_ref, wo_ref, bo_ref,
               ln2g_ref, ln2b_ref, w1_ref, b1_ref, w2_ref, b2_ref,
               flng_ref, flnb_ref, poolw_ref, poolb_ref,
               out_ref):
        # ---- patch embedding: one bf16 MXU matmul + (cls/pos/conv-bias) add ----
        # patches rows are (cls-slot, patch rows, pad rows) per batch; cls /
        # positional / conv-bias terms are pre-folded into `extra` in the
        # wrapper, so this is a single matmul + broadcast add.
        emb = jnp.dot(patches_ref[...], pw_ref[...],
                      preferred_element_type=jnp.float32)            # (bs, D) f32
        x2d = (emb.reshape(batch, S_PAD, HIDDEN)
               + extra_ref[...]).reshape(bs, HIDDEN)

        key_bias = kbias_ref[...]                                     # (1,1,S_PAD)

        def split_heads(z, base):
            # (bs, 3D) bf16 slab -> (HEADS*batch, S_PAD, HEAD_DIM), head-major.
            return jnp.concatenate(
                [z[:, base + hd * HEAD_DIM: base + (hd + 1) * HEAD_DIM]
                   .reshape(batch, S_PAD, HEAD_DIM)
                 for hd in range(HEADS)], axis=0)

        for layer in range(LAYERS):
            # ---- multi-head self attention (pre-norm), fused QKV projection ----
            h1 = _layernorm(x2d, ln1g_ref[layer], ln1b_ref[layer])
            qkv = (jnp.dot(h1.astype(jnp.bfloat16), wqkv_ref[layer],
                           preferred_element_type=jnp.float32)
                   + bqkv_ref[layer])                                 # (bs, 3D) f32
            qkv_b = qkv.astype(jnp.bfloat16)

            q = split_heads(qkv_b, 0)
            k = split_heads(qkv_b, HIDDEN)
            v = split_heads(qkv_b, 2 * HIDDEN)

            # head-batched scores / softmax / context (single einsums each)
            s = (jnp.einsum('bqd,bkd->bqk', q, k,
                            preferred_element_type=jnp.float32) * scale
                 + key_bias)                                          # (H*B, S, S)
            s = s - jnp.max(s, axis=-1, keepdims=True)
            p = jnp.exp(s)
            p = p * pl.reciprocal(jnp.sum(p, axis=-1, keepdims=True), approx=True)
            ctx = jnp.einsum('bqk,bkd->bqd', p.astype(jnp.bfloat16), v,
                             preferred_element_type=jnp.float32)      # (H*B, S, Dh)

            # merge heads back onto the lane axis -> ONE full-K Wo matmul
            ctx2d = jnp.concatenate(
                [ctx[hd * batch:(hd + 1) * batch].reshape(bs, HEAD_DIM)
                 for hd in range(HEADS)], axis=-1)                    # (bs, D)
            attn = (jnp.dot(ctx2d.astype(jnp.bfloat16), wo_ref[layer],
                            preferred_element_type=jnp.float32)
                    + bo_ref[layer])
            x2d = x2d + attn

            # ---- MLP (pre-norm) ----
            h2 = _layernorm(x2d, ln2g_ref[layer], ln2b_ref[layer])
            m = (jnp.dot(h2.astype(jnp.bfloat16), w1_ref[layer],
                         preferred_element_type=jnp.float32) + b1_ref[layer])
            # TODO(synk): HF ViT uses exact erf-GELU; tanh approximation used here.
            m = jax.nn.gelu(m, approximate=True)
            m = (jnp.dot(m.astype(jnp.bfloat16), w2_ref[layer],
                         preferred_element_type=jnp.float32) + b2_ref[layer])
            x2d = x2d + m

        # ---- final LN (CLS rows only) + pooler dense + tanh ----
        cls_tok = x2d.reshape(batch, S_PAD, HIDDEN)[:, 0, :]          # (B, D)
        hp = _layernorm(cls_tok, flng_ref[...], flnb_ref[...])
        pooled = (jnp.dot(hp.astype(jnp.bfloat16), poolw_ref[...],
                          preferred_element_type=jnp.float32)
                  + poolb_ref[...])
        out_ref[...] = jnp.tanh(pooled).astype(out_ref.dtype)

    return kernel


# --------------------------------------------------------------- wrappers ---
def visual_encoder_forward(images, params):
    """images: (B, C, H, W) NCHW  ->  pooler_output: (B, HIDDEN)."""
    B, C, H, W = images.shape
    nh, nw = H // PATCH, W // PATCH
    n = nh * nw

    # Unfold the stride-P conv into patch rows (channel-major within a patch),
    # then pad to the (cls-slot, patches, pad-slots) padded token layout.
    x = images.reshape(B, C, nh, PATCH, nw, PATCH)
    x = x.transpose(0, 2, 4, 1, 3, 5).reshape(B, n, PDIM)
    patches = jnp.pad(x, ((0, 0), (1, S_PAD - 1 - n), (0, 0)))
    patches = patches.reshape(B * S_PAD, PDIM).astype(jnp.bfloat16)   # bf16 MXU feed

    # Per-token additive terms (broadcast over batch inside the kernel):
    #   position emb (+0 on pad rows), cls emb on row 0, conv bias on patch rows.
    pos_pad = jnp.pad(params['pos'], ((0, 0), (0, S_PAD - SEQ), (0, 0)))
    row = jnp.arange(S_PAD)[None, :, None]
    extra = (pos_pad
             + jnp.where(row == 0, params['cls'], 0.0)
             + jnp.where((row >= 1) & (row <= n), params['patch_b'][None], 0.0))
    extra = extra.astype(jnp.float32)

    # Padded-key softmax bias, built ONCE here instead of per layer in-kernel.
    key_bias = jnp.where(jnp.arange(S_PAD) < SEQ, 0.0, -1e30)
    key_bias = key_bias.astype(jnp.float32).reshape(1, 1, S_PAD)

    lw = params['layers']
    all_inputs = [patches, params['patch_w'], extra, key_bias,
                  lw['ln1_g'], lw['ln1_b'], lw['wqkv'], lw['bqkv'],
                  lw['wo'], lw['bo'], lw['ln2_g'], lw['ln2_b'],
                  lw['w1'], lw['b1'], lw['w2'], lw['b2'],
                  params['final_ln_g'], params['final_ln_b'],
                  params['pool_w'], params['pool_b']]

    # Advisory cost estimate for XLA scheduling.
    bs = B * S_PAD
    flops = 2 * bs * PDIM * HIDDEN                                    # patch embed
    flops += LAYERS * (2 * bs * HIDDEN * 3 * HIDDEN                   # qkv proj
                       + 2 * 2 * B * HEADS * S_PAD * S_PAD * HEAD_DIM # scores+ctx
                       + 2 * bs * HIDDEN * HIDDEN                     # out proj
                       + 2 * 2 * bs * HIDDEN * MLP)                   # mlp
    flops += 2 * B * HIDDEN * HIDDEN                                  # pooler
    transcendentals = (LAYERS * (B * HEADS * S_PAD * S_PAD + bs * MLP)
                       + B * HIDDEN)
    bytes_accessed = (sum(int(a.size) * a.dtype.itemsize for a in all_inputs)
                      + B * HIDDEN * 4)
    cost = pl.CostEstimate(flops=int(flops),
                           transcendentals=int(transcendentals),
                           bytes_accessed=int(bytes_accessed))

    # No grid: the 2-layer toy stack is unrolled inside one kernel invocation
    # (all inputs get full-array VMEM blocks; everything fits comfortably).
    return pl.pallas_call(
        _make_vit_kernel(B),
        out_shape=jax.ShapeDtypeStruct((B, HIDDEN), jnp.float32),
        compiler_params=pltpu.CompilerParams(vmem_limit_bytes=32 * 1024 * 1024),
        cost_estimate=cost,
    )(*all_inputs)


# ------------------------------------------------------- params & forward ---
def init_params(key):
    keys = iter(jax.random.split(key, 16))

    def normal(shape, scale=0.02):
        return (scale * jax.random.normal(next(keys), shape)).astype(jnp.float32)

    def bf16_normal(shape, scale=0.02):
        return normal(shape, scale).astype(jnp.bfloat16)

    def zeros(shape):
        return jnp.zeros(shape, jnp.float32)

    def ones(shape):
        return jnp.ones(shape, jnp.float32)

    return {
        # Matmul weights stored bf16 (MXU-native fast path, halves weight DMA);
        # LN params / biases / embeddings stay f32 for the VPU-side math.
        'patch_w': bf16_normal((PDIM, HIDDEN)),
        'patch_b': zeros((1, HIDDEN)),
        'cls': normal((1, 1, HIDDEN)),
        'pos': normal((1, SEQ, HIDDEN)),
        'final_ln_g': ones((1, HIDDEN)),
        'final_ln_b': zeros((1, HIDDEN)),
        'pool_w': bf16_normal((HIDDEN, HIDDEN)),
        'pool_b': zeros((1, HIDDEN)),
        # Per-layer tensors stacked on a leading LAYERS axis; q/k/v fused.
        'layers': {
            'ln1_g': ones((LAYERS, 1, HIDDEN)),
            'ln1_b': zeros((LAYERS, 1, HIDDEN)),
            'wqkv': bf16_normal((LAYERS, HIDDEN, 3 * HIDDEN)),
            'bqkv': zeros((LAYERS, 1, 3 * HIDDEN)),
            'wo': bf16_normal((LAYERS, HIDDEN, HIDDEN)),
            'bo': zeros((LAYERS, 1, HIDDEN)),
            'ln2_g': ones((LAYERS, 1, HIDDEN)),
            'ln2_b': zeros((LAYERS, 1, HIDDEN)),
            'w1': bf16_normal((LAYERS, HIDDEN, MLP)),
            'b1': zeros((LAYERS, 1, MLP)),
            'w2': bf16_normal((LAYERS, MLP, HIDDEN)),
            'b2': zeros((LAYERS, 1, HIDDEN)),
        },
    }


if __name__ == "__main__":
    key = jax.random.PRNGKey(0)
    pkey, xkey = jax.random.split(key)
    # TODO(synk): pretrained 'google/vit-base-patch16-224' weights are not
    # loadable here; deterministic synthetic init at reduced shapes is used.
    params = init_params(pkey)
    images = jax.random.normal(xkey, (2, CHANNELS, IMG, IMG), dtype=jnp.float32)

    fwd = jax.jit(functools.partial(visual_encoder_forward, params=params))
    out = fwd(images)
    jax.block_until_ready(out)
    assert out.shape == (2, HIDDEN), out.shape
    assert bool(jnp.all(jnp.isfinite(out)))
    print("KERNEL_OK")
</pallas_src>

<mosaic_0001>
module attributes {stable_mosaic.version = 11 : i64} {
  func.func @kernel(%arg0: memref<16x768xbf16, #tpu.memory_space<vmem>>, %arg1: memref<768x64xbf16, #tpu.memory_space<vmem>>, %arg2: memref<1x8x64xf32, #tpu.memory_space<vmem>>, %arg3: memref<1x1x8xf32, #tpu.memory_space<vmem>>, %arg4: memref<2x1x64xf32, #tpu.memory_space<vmem>>, %arg5: memref<2x1x64xf32, #tpu.memory_space<vmem>>, %arg6: memref<2x64x192xbf16, #tpu.memory_space<vmem>>, %arg7: memref<2x1x192xf32, #tpu.memory_space<vmem>>, %arg8: memref<2x64x64xbf16, #tpu.memory_space<vmem>>, %arg9: memref<2x1x64xf32, #tpu.memory_space<vmem>>, %arg10: memref<2x1x64xf32, #tpu.memory_space<vmem>>, %arg11: memref<2x1x64xf32, #tpu.memory_space<vmem>>, %arg12: memref<2x64x128xbf16, #tpu.memory_space<vmem>>, %arg13: memref<2x1x128xf32, #tpu.memory_space<vmem>>, %arg14: memref<2x128x64xbf16, #tpu.memory_space<vmem>>, %arg15: memref<2x1x64xf32, #tpu.memory_space<vmem>>, %arg16: memref<1x64xf32, #tpu.memory_space<vmem>>, %arg17: memref<1x64xf32, #tpu.memory_space<vmem>>, %arg18: memref<64x64xbf16, #tpu.memory_space<vmem>>, %arg19: memref<1x64xf32, #tpu.memory_space<vmem>>, %arg20: memref<2x64xf32, #tpu.memory_space<vmem>>) attributes {dimension_semantics = [], scalar_prefetch = 0 : i64, scratch_operands = 0 : i64, tpu.core_type = #tpu.core_type<tc>} {
    %c0 = arith.constant 0 : index
    %c0_0 = arith.constant 0 : index
    %0 = vector.load %arg0[%c0, %c0_0] : memref<16x768xbf16, #tpu.memory_space<vmem>>, vector<16x768xbf16>
    %c0_1 = arith.constant 0 : index
    %c0_2 = arith.constant 0 : index
    %1 = vector.load %arg1[%c0_1, %c0_2] : memref<768x64xbf16, #tpu.memory_space<vmem>>, vector<768x64xbf16>
    %cst = arith.constant dense<0.000000e+00> : vector<16x64xf32>
    %2 = tpu.matmul %0, %1, %cst {dimension_numbers = #tpu.dot_dimension_numbers<[1], [0], [0], [1], [0, 0, 1, 1], [], []>} : vector<16x768xbf16>, vector<768x64xbf16>, vector<16x64xf32> -> vector<16x64xf32>
    %3 = vector.shape_cast %2 : vector<16x64xf32> to vector<2x8x64xf32>
    %c0_3 = arith.constant 0 : index
    %c0_4 = arith.constant 0 : index
    %c0_5 = arith.constant 0 : index
    %4 = vector.load %arg2[%c0_3, %c0_4, %c0_5] : memref<1x8x64xf32, #tpu.memory_space<vmem>>, vector<1x8x64xf32>
    %5 = vector.broadcast %4 : vector<1x8x64xf32> to vector<2x8x64xf32>
    %6 = arith.addf %3, %5 : vector<2x8x64xf32>
    %7 = vector.shape_cast %6 : vector<2x8x64xf32> to vector<16x64xf32>
    %c0_6 = arith.constant 0 : index
    %c0_7 = arith.constant 0 : index
    %c0_8 = arith.constant 0 : index
    %8 = vector.load %arg3[%c0_6, %c0_7, %c0_8] : memref<1x1x8xf32, #tpu.memory_space<vmem>>, vector<1x1x8xf32>
    %c0_9 = arith.constant 0 : index
    %c0_10 = arith.constant 0 : index
    %c0_11 = arith.constant 0 : index
    %9 = vector.load %arg4[%c0_9, %c0_10, %c0_11] : memref<2x1x64xf32, #tpu.memory_space<vmem>>, vector<1x1x64xf32>
    %10 = vector.shape_cast %9 : vector<1x1x64xf32> to vector<1x64xf32>
    %c0_12 = arith.constant 0 : index
    %c0_13 = arith.constant 0 : index
    %c0_14 = arith.constant 0 : index
    %11 = vector.load %arg5[%c0_12, %c0_13, %c0_14] : memref<2x1x64xf32, #tpu.memory_space<vmem>>, vector<1x1x64xf32>
    %12 = vector.shape_cast %11 : vector<1x1x64xf32> to vector<1x64xf32>
    %cst_15 = arith.constant dense<0.000000e+00> : vector<16xf32>
    %13 = vector.multi_reduction <add>, %7, %cst_15 [1] : vector<16x64xf32> to vector<16xf32>
    %14 = vector.shape_cast %13 : vector<16xf32> to vector<16x1xf32>
    %cst_16 = arith.constant 6.400000e+01 : f32
    %15 = vector.broadcast %cst_16 : f32 to vector<16x1xf32>
    %16 = arith.divf %14, %15 : vector<16x1xf32>
    %17 = vector.broadcast %16 : vector<16x1xf32> to vector<16x64xf32>
    %18 = arith.subf %7, %17 : vector<16x64xf32>
    %19 = arith.mulf %18, %18 : vector<16x64xf32>
    %cst_17 = arith.constant dense<0.000000e+00> : vector<16xf32>
    %20 = vector.multi_reduction <add>, %19, %cst_17 [1] : vector<16x64xf32> to vector<16xf32>
    %21 = vector.shape_cast %20 : vector<16xf32> to vector<16x1xf32>
    %cst_18 = arith.constant 6.400000e+01 : f32
    %22 = vector.broadcast %cst_18 : f32 to vector<16x1xf32>
    %23 = arith.divf %21, %22 : vector<16x1xf32>
    %24 = vector.broadcast %16 : vector<16x1xf32> to vector<16x64xf32>
    %25 = arith.subf %7, %24 : vector<16x64xf32>
    %cst_19 = arith.constant 9.99999996E-13 : f32
    %26 = vector.broadcast %cst_19 : f32 to vector<16x1xf32>
    %27 = arith.addf %23, %26 : vector<16x1xf32>
    %28 = math.rsqrt %27 : vector<16x1xf32>
    %29 = vector.broadcast %28 : vector<16x1xf32> to vector<16x64xf32>
    %30 = arith.mulf %25, %29 : vector<16x64xf32>
    %31 = vector.broadcast %10 : vector<1x64xf32> to vector<16x64xf32>
    %32 = arith.mulf %30, %31 : vector<16x64xf32>
    %33 = vector.broadcast %12 : vector<1x64xf32> to vector<16x64xf32>
    %34 = arith.addf %32, %33 : vector<16x64xf32>
    %35 = arith.truncf %34 : vector<16x64xf32> to vector<16x64xbf16>
    %c0_20 = arith.constant 0 : index
    %c0_21 = arith.constant 0 : index
    %c0_22 = arith.constant 0 : index
    %36 = vector.load %arg6[%c0_20, %c0_21, %c0_22] : memref<2x64x192xbf16, #tpu.memory_space<vmem>>, vector<1x64x192xbf16>
    %37 = vector.shape_cast %36 : vector<1x64x192xbf16> to vector<64x192xbf16>
    %cst_23 = arith.constant dense<0.000000e+00> : vector<16x192xf32>
    %38 = tpu.matmul %35, %37, %cst_23 {dimension_numbers = #tpu.dot_dimension_numbers<[1], [0], [0], [1], [0, 0, 1, 1], [], []>} : vector<16x64xbf16>, vector<64x192xbf16>, vector<16x192xf32> -> vector<16x192xf32>
    %c0_24 = arith.constant 0 : index
    %c0_25 = arith.constant 0 : index
    %c0_26 = arith.constant 0 : index
    %39 = vector.load %arg7[%c0_24, %c0_25, %c0_26] : memref<2x1x192xf32, #tpu.memory_space<vmem>>, vector<1x1x192xf32>
    %40 = vector.shape_cast %39 : vector<1x1x192xf32> to vector<1x192xf32>
    %41 = vector.broadcast %40 : vector<1x192xf32> to vector<16x192xf32>
    %42 = arith.addf %38, %41 : vector<16x192xf32>
    %43 = arith.truncf %42 : vector<16x192xf32> to vector<16x192xbf16>
    %44 = vector.extract_strided_slice %43 {offsets = [0, 0], sizes = [16, 16], strides = [1, 1]} : vector<16x192xbf16> to vector<16x16xbf16>
    %45 = vector.shape_cast %44 : vector<16x16xbf16> to vector<2x8x16xbf16>
    %46 = vector.extract_strided_slice %43 {offsets = [0, 16], sizes = [16, 16], strides = [1, 1]} : vector<16x192xbf16> to vector<16x16xbf16>
    %47 = vector.shape_cast %46 : vector<16x16xbf16> to vector<2x8x16xbf16>
    %48 = vector.extract_strided_slice %43 {offsets = [0, 32], sizes = [16, 16], strides = [1, 1]} : vector<16x192xbf16> to vector<16x16xbf16>
    %49 = vector.shape_cast %48 : vector<16x16xbf16> to vector<2x8x16xbf16>
    %50 = vector.extract_strided_slice %43 {offsets = [0, 48], sizes = [16, 16], strides = [1, 1]} : vector<16x192xbf16> to vector<16x16xbf16>
    %51 = vector.shape_cast %50 : vector<16x16xbf16> to vector<2x8x16xbf16>
    %52 = tpu.concatenate %45, %47, %49, %51 in 0 : vector<2x8x16xbf16>, vector<2x8x16xbf16>, vector<2x8x16xbf16>, vector<2x8x16xbf16> -> vector<8x8x16xbf16>
    %53 = vector.extract_strided_slice %43 {offsets = [0, 64], sizes = [16, 16], strides = [1, 1]} : vector<16x192xbf16> to vector<16x16xbf16>
    %54 = vector.shape_cast %53 : vector<16x16xbf16> to vector<2x8x16xbf16>
    %55 = vector.extract_strided_slice %43 {offsets = [0, 80], sizes = [16, 16], strides = [1, 1]} : vector<16x192xbf16> to vector<16x16xbf16>
    %56 = vector.shape_cast %55 : vector<16x16xbf16> to vector<2x8x16xbf16>
    %57 = vector.extract_strided_slice %43 {offsets = [0, 96], sizes = [16, 16], strides = [1, 1]} : vector<16x192xbf16> to vector<16x16xbf16>
    %58 = vector.shape_cast %57 : vector<16x16xbf16> to vector<2x8x16xbf16>
    %59 = vector.extract_strided_slice %43 {offsets = [0, 112], sizes = [16, 16], strides = [1, 1]} : vector<16x192xbf16> to vector<16x16xbf16>
    %60 = vector.shape_cast %59 : vector<16x16xbf16> to vector<2x8x16xbf16>
    %61 = tpu.concatenate %54, %56, %58, %60 in 0 : vector<2x8x16xbf16>, vector<2x8x16xbf16>, vector<2x8x16xbf16>, vector<2x8x16xbf16> -> vector<8x8x16xbf16>
    %62 = vector.extract_strided_slice %43 {offsets = [0, 128], sizes = [16, 16], strides = [1, 1]} : vector<16x192xbf16> to vector<16x16xbf16>
    %63 = vector.shape_cast %62 : vector<16x16xbf16> to vector<2x8x16xbf16>
    %64 = vector.extract_strided_slice %43 {offsets = [0, 144], sizes = [16, 16], strides = [1, 1]} : vector<16x192xbf16> to vector<16x16xbf16>
    %65 = vector.shape_cast %64 : vector<16x16xbf16> to vector<2x8x16xbf16>
    %66 = vector.extract_strided_slice %43 {offsets = [0, 160], sizes = [16, 16], strides = [1, 1]} : vector<16x192xbf16> to vector<16x16xbf16>
    %67 = vector.shape_cast %66 : vector<16x16xbf16> to vector<2x8x16xbf16>
    %68 = vector.extract_strided_slice %43 {offsets = [0, 176], sizes = [16, 16], strides = [1, 1]} : vector<16x192xbf16> to vector<16x16xbf16>
    %69 = vector.shape_cast %68 : vector<16x16xbf16> to vector<2x8x16xbf16>
    %70 = tpu.concatenate %63, %65, %67, %69 in 0 : vector<2x8x16xbf16>, vector<2x8x16xbf16>, vector<2x8x16xbf16>, vector<2x8x16xbf16> -> vector<8x8x16xbf16>
    "tpu.trace_start"() <{level = 10 : i32, message = "bqd,bkd->bqk"}> : () -> ()
    %cst_27 = arith.constant dense<0.000000e+00> : vector<8x8x8xf32>
    %71 = tpu.matmul %52, %61, %cst_27 {dimension_numbers = #tpu.dot_dimension_numbers<[2], [2], [1], [1], [0, 0, 0, 1, 1, 1], [0], [0]>} : vector<8x8x16xbf16>, vector<8x8x16xbf16>, vector<8x8x8xf32> -> vector<8x8x8xf32>
    "tpu.trace_stop"() : () -> ()
    %cst_28 = arith.constant 2.500000e-01 : f32
    %72 = vector.broadcast %cst_28 : f32 to vector<8x8x8xf32>
    %73 = arith.mulf %71, %72 : vector<8x8x8xf32>
    %74 = vector.broadcast %8 : vector<1x1x8xf32> to vector<8x8x8xf32>
    %75 = arith.addf %73, %74 : vector<8x8x8xf32>
    %cst_29 = arith.constant dense<0xFF800000> : vector<8x8xf32>
    %76 = vector.multi_reduction <maximumf>, %75, %cst_29 [2] : vector<8x8x8xf32> to vector<8x8xf32>
    %77 = vector.shape_cast %76 : vector<8x8xf32> to vector<8x8x1xf32>
    %78 = vector.broadcast %77 : vector<8x8x1xf32> to vector<8x8x8xf32>
    %79 = arith.subf %75, %78 : vector<8x8x8xf32>
    %80 = math.exp %79 : vector<8x8x8xf32>
    %cst_30 = arith.constant dense<0.000000e+00> : vector<8x8xf32>
    %81 = vector.multi_reduction <add>, %80, %cst_30 [2] : vector<8x8x8xf32> to vector<8x8xf32>
    %82 = vector.shape_cast %81 : vector<8x8xf32> to vector<8x8x1xf32>
    %83 = tpu.reciprocal %82 {approx = true} : vector<8x8x1xf32> -> vector<8x8x1xf32>
    %84 = vector.broadcast %83 : vector<8x8x1xf32> to vector<8x8x8xf32>
    %85 = arith.mulf %80, %84 : vector<8x8x8xf32>
    %86 = arith.truncf %85 : vector<8x8x8xf32> to vector<8x8x8xbf16>
    "tpu.trace_start"() <{level = 10 : i32, message = "bqk,bkd->bqd"}> : () -> ()
    %cst_31 = arith.constant dense<0.000000e+00> : vector<8x8x16xf32>
    %87 = tpu.matmul %86, %70, %cst_31 {dimension_numbers = #tpu.dot_dimension_numbers<[2], [1], [1], [2], [0, 0, 0, 1, 1, 2], [0], [0]>} : vector<8x8x8xbf16>, vector<8x8x16xbf16>, vector<8x8x16xf32> -> vector<8x8x16xf32>
    "tpu.trace_stop"() : () -> ()
    %88 = vector.extract_strided_slice %87 {offsets = [0, 0, 0], sizes = [2, 8, 16], strides = [1, 1, 1]} : vector<8x8x16xf32> to vector<2x8x16xf32>
    %89 = vector.shape_cast %88 : vector<2x8x16xf32> to vector<16x16xf32>
    %90 = vector.extract_strided_slice %87 {offsets = [2, 0, 0], sizes = [2, 8, 16], strides = [1, 1, 1]} : vector<8x8x16xf32> to vector<2x8x16xf32>
    %91 = vector.shape_cast %90 : vector<2x8x16xf32> to vector<16x16xf32>
    %92 = vector.extract_strided_slice %87 {offsets = [4, 0, 0], sizes = [2, 8, 16], strides = [1, 1, 1]} : vector<8x8x16xf32> to vector<2x8x16xf32>
    %93 = vector.shape_cast %92 : vector<2x8x16xf32> to vector<16x16xf32>
    %94 = vector.extract_strided_slice %87 {offsets = [6, 0, 0], sizes = [2, 8, 16], strides = [1, 1, 1]} : vector<8x8x16xf32> to vector<2x8x16xf32>
    %95 = vector.shape_cast %94 : vector<2x8x16xf32> to vector<16x16xf32>
    %96 = tpu.concatenate %89, %91, %93, %95 in 1 : vector<16x16xf32>, vector<16x16xf32>, vector<16x16xf32>, vector<16x16xf32> -> vector<16x64xf32>
    %97 = arith.truncf %96 : vector<16x64xf32> to vector<16x64xbf16>
    %c0_32 = arith.constant 0 : index
    %c0_33 = arith.constant 0 : index
    %c0_34 = arith.constant 0 : index
    %98 = vector.load %arg8[%c0_32, %c0_33, %c0_34] : memref<2x64x64xbf16, #tpu.memory_space<vmem>>, vector<1x64x64xbf16>
    %99 = vector.shape_cast %98 : vector<1x64x64xbf16> to vector<64x64xbf16>
    %cst_35 = arith.constant dense<0.000000e+00> : vector<16x64xf32>
    %100 = tpu.matmul %97, %99, %cst_35 {dimension_numbers = #tpu.dot_dimension_numbers<[1], [0], [0], [1], [0, 0, 1, 1], [], []>} : vector<16x64xbf16>, vector<64x64xbf16>, vector<16x64xf32> -> vector<16x64xf32>
    %c0_36 = arith.constant 0 : index
    %c0_37 = arith.constant 0 : index
    %c0_38 = arith.constant 0 : index
    %101 = vector.load %arg9[%c0_36, %c0_37, %c0_38] : memref<2x1x64xf32, #tpu.memory_space<vmem>>, vector<1x1x64xf32>
    %102 = vector.shape_cast %101 : vector<1x1x64xf32> to vector<1x64xf32>
    %103 = vector.broadcast %102 : vector<1x64xf32> to vector<16x64xf32>
    %104 = arith.addf %100, %103 : vector<16x64xf32>
    %105 = arith.addf %7, %104 : vector<16x64xf32>
    %c0_39 = arith.constant 0 : index
    %c0_40 = arith.constant 0 : index
    %c0_41 = arith.constant 0 : index
    %106 = vector.load %arg10[%c0_39, %c0_40, %c0_41] : memref<2x1x64xf32, #tpu.memory_space<vmem>>, vector<1x1x64xf32>
    %107 = vector.shape_cast %106 : vector<1x1x64xf32> to vector<1x64xf32>
    %c0_42 = arith.constant 0 : index
    %c0_43 = arith.constant 0 : index
    %c0_44 = arith.constant 0 : index
    %108 = vector.load %arg11[%c0_42, %c0_43, %c0_44] : memref<2x1x64xf32, #tpu.memory_space<vmem>>, vector<1x1x64xf32>
    %109 = vector.shape_cast %108 : vector<1x1x64xf32> to vector<1x64xf32>
    %cst_45 = arith.constant dense<0.000000e+00> : vector<16xf32>
    %110 = vector.multi_reduction <add>, %105, %cst_45 [1] : vector<16x64xf32> to vector<16xf32>
    %111 = vector.shape_cast %110 : vector<16xf32> to vector<16x1xf32>
    %cst_46 = arith.constant 6.400000e+01 : f32
    %112 = vector.broadcast %cst_46 : f32 to vector<16x1xf32>
    %113 = arith.divf %111, %112 : vector<16x1xf32>
    %114 = vector.broadcast %113 : vector<16x1xf32> to vector<16x64xf32>
    %115 = arith.subf %105, %114 : vector<16x64xf32>
    %116 = arith.mulf %115, %115 : vector<16x64xf32>
    %cst_47 = arith.constant dense<0.000000e+00> : vector<16xf32>
    %117 = vector.multi_reduction <add>, %116, %cst_47 [1] : vector<16x64xf32> to vector<16xf32>
    %118 = vector.shape_cast %117 : vector<16xf32> to vector<16x1xf32>
    %cst_48 = arith.constant 6.400000e+01 : f32
    %119 = vector.broadcast %cst_48 : f32 to vector<16x1xf32>
    %120 = arith.divf %118, %119 : vector<16x1xf32>
    %121 = vector.broadcast %113 : vector<16x1xf32> to vector<16x64xf32>
    %122 = arith.subf %105, %121 : vector<16x64xf32>
    %cst_49 = arith.constant 9.99999996E-13 : f32
    %123 = vector.broadcast %cst_49 : f32 to vector<16x1xf32>
    %124 = arith.addf %120, %123 : vector<16x1xf32>
    %125 = math.rsqrt %124 : vector<16x1xf32>
    %126 = vector.broadcast %125 : vector<16x1xf32> to vector<16x64xf32>
    %127 = arith.mulf %122, %126 : vector<16x64xf32>
    %128 = vector.broadcast %107 : vector<1x64xf32> to vector<16x64xf32>
    %129 = arith.mulf %127, %128 : vector<16x64xf32>
    %130 = vector.broadcast %109 : vector<1x64xf32> to vector<16x64xf32>
    %131 = arith.addf %129, %130 : vector<16x64xf32>
    %132 = arith.truncf %131 : vector<16x64xf32> to vector<16x64xbf16>
    %c0_50 = arith.constant 0 : index
    %c0_51 = arith.constant 0 : index
    %c0_52 = arith.constant 0 : index
    %133 = vector.load %arg12[%c0_50, %c0_51, %c0_52] : memref<2x64x128xbf16, #tpu.memory_space<vmem>>, vector<1x64x128xbf16>
    %134 = vector.shape_cast %133 : vector<1x64x128xbf16> to vector<64x128xbf16>
    %cst_53 = arith.constant dense<0.000000e+00> : vector<16x128xf32>
    %135 = tpu.matmul %132, %134, %cst_53 {dimension_numbers = #tpu.dot_dimension_numbers<[1], [0], [0], [1], [0, 0, 1, 1], [], []>} : vector<16x64xbf16>, vector<64x128xbf16>, vector<16x128xf32> -> vector<16x128xf32>
    %c0_54 = arith.constant 0 : index
    %c0_55 = arith.constant 0 : index
    %c0_56 = arith.constant 0 : index
    %136 = vector.load %arg13[%c0_54, %c0_55, %c0_56] : memref<2x1x128xf32, #tpu.memory_space<vmem>>, vector<1x1x128xf32>
    %137 = vector.shape_cast %136 : vector<1x1x128xf32> to vector<1x128xf32>
    %138 = vector.broadcast %137 : vector<1x128xf32> to vector<16x128xf32>
    %139 = arith.addf %135, %138 : vector<16x128xf32>
    %140 = arith.mulf %139, %139 : vector<16x128xf32>
    %141 = arith.mulf %139, %140 : vector<16x128xf32>
    %cst_57 = arith.constant 4.471500e-02 : f32
    %142 = vector.broadcast %cst_57 : f32 to vector<16x128xf32>
    %143 = arith.mulf %142, %141 : vector<16x128xf32>
    %144 = arith.addf %139, %143 : vector<16x128xf32>
    %cst_58 = arith.constant 0.797884583 : f32
    %145 = vector.broadcast %cst_58 : f32 to vector<16x128xf32>
    %146 = arith.mulf %145, %144 : vector<16x128xf32>
    %147 = math.tanh %146 : vector<16x128xf32>
    %cst_59 = arith.constant 1.000000e+00 : f32
    %148 = vector.broadcast %cst_59 : f32 to vector<16x128xf32>
    %149 = arith.addf %148, %147 : vector<16x128xf32>
    %cst_60 = arith.constant 5.000000e-01 : f32
    %150 = vector.broadcast %cst_60 : f32 to vector<16x128xf32>
    %151 = arith.mulf %150, %149 : vector<16x128xf32>
    %152 = arith.mulf %139, %151 : vector<16x128xf32>
    %153 = arith.truncf %152 : vector<16x128xf32> to vector<16x128xbf16>
    %c0_61 = arith.constant 0 : index
    %c0_62 = arith.constant 0 : index
    %c0_63 = arith.constant 0 : index
    %154 = vector.load %arg14[%c0_61, %c0_62, %c0_63] : memref<2x128x64xbf16, #tpu.memory_space<vmem>>, vector<1x128x64xbf16>
    %155 = vector.shape_cast %154 : vector<1x128x64xbf16> to vector<128x64xbf16>
    %cst_64 = arith.constant dense<0.000000e+00> : vector<16x64xf32>
    %156 = tpu.matmul %153, %155, %cst_64 {dimension_numbers = #tpu.dot_dimension_numbers<[1], [0], [0], [1], [0, 0, 1, 1], [], []>} : vector<16x128xbf16>, vector<128x64xbf16>, vector<16x64xf32> -> vector<16x64xf32>
    %c0_65 = arith.constant 0 : index
    %c0_66 = arith.constant 0 : index
    %c0_67 = arith.constant 0 : index
    %157 = vector.load %arg15[%c0_65, %c0_66, %c0_67] : memref<2x1x64xf32, #tpu.memory_space<vmem>>, vector<1x1x64xf32>
    %158 = vector.shape_cast %157 : vector<1x1x64xf32> to vector<1x64xf32>
    %159 = vector.broadcast %158 : vector<1x64xf32> to vector<16x64xf32>
    %160 = arith.addf %156, %159 : vector<16x64xf32>
    %161 = arith.addf %105, %160 : vector<16x64xf32>
    %c1 = arith.constant 1 : index
    %c0_68 = arith.constant 0 : index
    %c0_69 = arith.constant 0 : index
    %162 = vector.load %arg4[%c1, %c0_68, %c0_69] : memref<2x1x64xf32, #tpu.memory_space<vmem>>, vector<1x1x64xf32>
    %163 = vector.shape_cast %162 : vector<1x1x64xf32> to vector<1x64xf32>
    %c1_70 = arith.constant 1 : index
    %c0_71 = arith.constant 0 : index
    %c0_72 = arith.constant 0 : index
    %164 = vector.load %arg5[%c1_70, %c0_71, %c0_72] : memref<2x1x64xf32, #tpu.memory_space<vmem>>, vector<1x1x64xf32>
    %165 = vector.shape_cast %164 : vector<1x1x64xf32> to vector<1x64xf32>
    %cst_73 = arith.constant dense<0.000000e+00> : vector<16xf32>
    %166 = vector.multi_reduction <add>, %161, %cst_73 [1] : vector<16x64xf32> to vector<16xf32>
    %167 = vector.shape_cast %166 : vector<16xf32> to vector<16x1xf32>
    %cst_74 = arith.constant 6.400000e+01 : f32
    %168 = vector.broadcast %cst_74 : f32 to vector<16x1xf32>
    %169 = arith.divf %167, %168 : vector<16x1xf32>
    %170 = vector.broadcast %169 : vector<16x1xf32> to vector<16x64xf32>
    %171 = arith.subf %161, %170 : vector<16x64xf32>
    %172 = arith.mulf %171, %171 : vector<16x64xf32>
    %cst_75 = arith.constant dense<0.000000e+00> : vector<16xf32>
    %173 = vector.multi_reduction <add>, %172, %cst_75 [1] : vector<16x64xf32> to vector<16xf32>
    %174 = vector.shape_cast %173 : vector<16xf32> to vector<16x1xf32>
    %cst_76 = arith.constant 6.400000e+01 : f32
    %175 = vector.broadcast %cst_76 : f32 to vector<16x1xf32>
    %176 = arith.divf %174, %175 : vector<16x1xf32>
    %177 = vector.broadcast %169 : vector<16x1xf32> to vector<16x64xf32>
    %178 = arith.subf %161, %177 : vector<16x64xf32>
    %cst_77 = arith.constant 9.99999996E-13 : f32
    %179 = vector.broadcast %cst_77 : f32 to vector<16x1xf32>
    %180 = arith.addf %176, %179 : vector<16x1xf32>
    %181 = math.rsqrt %180 : vector<16x1xf32>
    %182 = vector.broadcast %181 : vector<16x1xf32> to vector<16x64xf32>
    %183 = arith.mulf %178, %182 : vector<16x64xf32>
    %184 = vector.broadcast %163 : vector<1x64xf32> to vector<16x64xf32>
    %185 = arith.mulf %183, %184 : vector<16x64xf32>
    %186 = vector.broadcast %165 : vector<1x64xf32> to vector<16x64xf32>
    %187 = arith.addf %185, %186 : vector<16x64xf32>
    %188 = arith.truncf %187 : vector<16x64xf32> to vector<16x64xbf16>
    %c1_78 = arith.constant 1 : index
    %c0_79 = arith.constant 0 : index
    %c0_80 = arith.constant 0 : index
    %189 = vector.load %arg6[%c1_78, %c0_79, %c0_80] : memref<2x64x192xbf16, #tpu.memory_space<vmem>>, vector<1x64x192xbf16>
    %190 = vector.shape_cast %189 : vector<1x64x192xbf16> to vector<64x192xbf16>
    %cst_81 = arith.constant dense<0.000000e+00> : vector<16x192xf32>
    %191 = tpu.matmul %188, %190, %cst_81 {dimension_numbers = #tpu.dot_dimension_numbers<[1], [0], [0], [1], [0, 0, 1, 1], [], []>} : vector<16x64xbf16>, vector<64x192xbf16>, vector<16x192xf32> -> vector<16x192xf32>
    %c1_82 = arith.constant 1 : index
    %c0_83 = arith.constant 0 : index
    %c0_84 = arith.constant 0 : index
    %192 = vector.load %arg7[%c1_82, %c0_83, %c0_84] : memref<2x1x192xf32, #tpu.memory_space<vmem>>, vector<1x1x192xf32>
    %193 = vector.shape_cast %192 : vector<1x1x192xf32> to vector<1x192xf32>
    %194 = vector.broadcast %193 : vector<1x192xf32> to vector<16x192xf32>
    %195 = arith.addf %191, %194 : vector<16x192xf32>
    %196 = arith.truncf %195 : vector<16x192xf32> to vector<16x192xbf16>
    %197 = vector.extract_strided_slice %196 {offsets = [0, 0], sizes = [16, 16], strides = [1, 1]} : vector<16x192xbf16> to vector<16x16xbf16>
    %198 = vector.shape_cast %197 : vector<16x16xbf16> to vector<2x8x16xbf16>
    %199 = vector.extract_strided_slice %196 {offsets = [0, 16], sizes = [16, 16], strides = [1, 1]} : vector<16x192xbf16> to vector<16x16xbf16>
    %200 = vector.shape_cast %199 : vector<16x16xbf16> to vector<2x8x16xbf16>
    %201 = vector.extract_strided_slice %196 {offsets = [0, 32], sizes = [16, 16], strides = [1, 1]} : vector<16x192xbf16> to vector<16x16xbf16>
    %202 = vector.shape_cast %201 : vector<16x16xbf16> to vector<2x8x16xbf16>
    %203 = vector.extract_strided_slice %196 {offsets = [0, 48], sizes = [16, 16], strides = [1, 1]} : vector<16x192xbf16> to vector<16x16xbf16>
    %204 = vector.shape_cast %203 : vector<16x16xbf16> to vector<2x8x16xbf16>
    %205 = tpu.concatenate %198, %200, %202, %204 in 0 : vector<2x8x16xbf16>, vector<2x8x16xbf16>, vector<2x8x16xbf16>, vector<2x8x16xbf16> -> vector<8x8x16xbf16>
    %206 = vector.extract_strided_slice %196 {offsets = [0, 64], sizes = [16, 16], strides = [1, 1]} : vector<16x192xbf16> to vector<16x16xbf16>
    %207 = vector.shape_cast %206 : vector<16x16xbf16> to vector<2x8x16xbf16>
    %208 = vector.extract_strided_slice %196 {offsets = [0, 80], sizes = [16, 16], strides = [1, 1]} : vector<16x192xbf16> to vector<16x16xbf16>
    %209 = vector.shape_cast %208 : vector<16x16xbf16> to vector<2x8x16xbf16>
    %210 = vector.extract_strided_slice %196 {offsets = [0, 96], sizes = [16, 16], strides = [1, 1]} : vector<16x192xbf16> to vector<16x16xbf16>
    %211 = vector.shape_cast %210 : vector<16x16xbf16> to vector<2x8x16xbf16>
    %212 = vector.extract_strided_slice %196 {offsets = [0, 112], sizes = [16, 16], strides = [1, 1]} : vector<16x192xbf16> to vector<16x16xbf16>
    %213 = vector.shape_cast %212 : vector<16x16xbf16> to vector<2x8x16xbf16>
    %214 = tpu.concatenate %207, %209, %211, %213 in 0 : vector<2x8x16xbf16>, vector<2x8x16xbf16>, vector<2x8x16xbf16>, vector<2x8x16xbf16> -> vector<8x8x16xbf16>
    %215 = vector.extract_strided_slice %196 {offsets = [0, 128], sizes = [16, 16], strides = [1, 1]} : vector<16x192xbf16> to vector<16x16xbf16>
    %216 = vector.shape_cast %215 : vector<16x16xbf16> to vector<2x8x16xbf16>
    %217 = vector.extract_strided_slice %196 {offsets = [0, 144], sizes = [16, 16], strides = [1, 1]} : vector<16x192xbf16> to vector<16x16xbf16>
    %218 = vector.shape_cast %217 : vector<16x16xbf16> to vector<2x8x16xbf16>
    %219 = vector.extract_strided_slice %196 {offsets = [0, 160], sizes = [16, 16], strides = [1, 1]} : vector<16x192xbf16> to vector<16x16xbf16>
    %220 = vector.shape_cast %219 : vector<16x16xbf16> to vector<2x8x16xbf16>
    %221 = vector.extract_strided_slice %196 {offsets = [0, 176], sizes = [16, 16], strides = [1, 1]} : vector<16x192xbf16> to vector<16x16xbf16>
    %222 = vector.shape_cast %221 : vector<16x16xbf16> to vector<2x8x16xbf16>
    %223 = tpu.concatenate %216, %218, %220, %222 in 0 : vector<2x8x16xbf16>, vector<2x8x16xbf16>, vector<2x8x16xbf16>, vector<2x8x16xbf16> -> vector<8x8x16xbf16>
    "tpu.trace_start"() <{level = 10 : i32, message = "bqd,bkd->bqk"}> : () -> ()
    %cst_85 = arith.constant dense<0.000000e+00> : vector<8x8x8xf32>
    %224 = tpu.matmul %205, %214, %cst_85 {dimension_numbers = #tpu.dot_dimension_numbers<[2], [2], [1], [1], [0, 0, 0, 1, 1, 1], [0], [0]>} : vector<8x8x16xbf16>, vector<8x8x16xbf16>, vector<8x8x8xf32> -> vector<8x8x8xf32>
    "tpu.trace_stop"() : () -> ()
    %cst_86 = arith.constant 2.500000e-01 : f32
    %225 = vector.broadcast %cst_86 : f32 to vector<8x8x8xf32>
    %226 = arith.mulf %224, %225 : vector<8x8x8xf32>
    %227 = vector.broadcast %8 : vector<1x1x8xf32> to vector<8x8x8xf32>
    %228 = arith.addf %226, %227 : vector<8x8x8xf32>
    %cst_87 = arith.constant dense<0xFF800000> : vector<8x8xf32>
    %229 = vector.multi_reduction <maximumf>, %228, %cst_87 [2] : vector<8x8x8xf32> to vector<8x8xf32>
    %230 = vector.shape_cast %229 : vector<8x8xf32> to vector<8x8x1xf32>
    %231 = vector.broadcast %230 : vector<8x8x1xf32> to vector<8x8x8xf32>
    %232 = arith.subf %228, %231 : vector<8x8x8xf32>
    %233 = math.exp %232 : vector<8x8x8xf32>
    %cst_88 = arith.constant dense<0.000000e+00> : vector<8x8xf32>
    %234 = vector.multi_reduction <add>, %233, %cst_88 [2] : vector<8x8x8xf32> to vector<8x8xf32>
    %235 = vector.shape_cast %234 : vector<8x8xf32> to vector<8x8x1xf32>
    %236 = tpu.reciprocal %235 {approx = true} : vector<8x8x1xf32> -> vector<8x8x1xf32>
    %237 = vector.broadcast %236 : vector<8x8x1xf32> to vector<8x8x8xf32>
    %238 = arith.mulf %233, %237 : vector<8x8x8xf32>
    %239 = arith.truncf %238 : vector<8x8x8xf32> to vector<8x8x8xbf16>
    "tpu.trace_start"() <{level = 10 : i32, message = "bqk,bkd->bqd"}> : () -> ()
    %cst_89 = arith.constant dense<0.000000e+00> : vector<8x8x16xf32>
    %240 = tpu.matmul %239, %223, %cst_89 {dimension_numbers = #tpu.dot_dimension_numbers<[2], [1], [1], [2], [0, 0, 0, 1, 1, 2], [0], [0]>} : vector<8x8x8xbf16>, vector<8x8x16xbf16>, vector<8x8x16xf32> -> vector<8x8x16xf32>
    "tpu.trace_stop"() : () -> ()
    %241 = vector.extract_strided_slice %240 {offsets = [0, 0, 0], sizes = [2, 8, 16], strides = [1, 1, 1]} : vector<8x8x16xf32> to vector<2x8x16xf32>
    %242 = vector.shape_cast %241 : vector<2x8x16xf32> to vector<16x16xf32>
    %243 = vector.extract_strided_slice %240 {offsets = [2, 0, 0], sizes = [2, 8, 16], strides = [1, 1, 1]} : vector<8x8x16xf32> to vector<2x8x16xf32>
    %244 = vector.shape_cast %243 : vector<2x8x16xf32> to vector<16x16xf32>
    %245 = vector.extract_strided_slice %240 {offsets = [4, 0, 0], sizes = [2, 8, 16], strides = [1, 1, 1]} : vector<8x8x16xf32> to vector<2x8x16xf32>
    %246 = vector.shape_cast %245 : vector<2x8x16xf32> to vector<16x16xf32>
    %247 = vector.extract_strided_slice %240 {offsets = [6, 0, 0], sizes = [2, 8, 16], strides = [1, 1, 1]} : vector<8x8x16xf32> to vector<2x8x16xf32>
    %248 = vector.shape_cast %247 : vector<2x8x16xf32> to vector<16x16xf32>
    %249 = tpu.concatenate %242, %244, %246, %248 in 1 : vector<16x16xf32>, vector<16x16xf32>, vector<16x16xf32>, vector<16x16xf32> -> vector<16x64xf32>
    %250 = arith.truncf %249 : vector<16x64xf32> to vector<16x64xbf16>
    %c1_90 = arith.constant 1 : index
    %c0_91 = arith.constant 0 : index
    %c0_92 = arith.constant 0 : index
    %251 = vector.load %arg8[%c1_90, %c0_91, %c0_92] : memref<2x64x64xbf16, #tpu.memory_space<vmem>>, vector<1x64x64xbf16>
    %252 = vector.shape_cast %251 : vector<1x64x64xbf16> to vector<64x64xbf16>
    %cst_93 = arith.constant dense<0.000000e+00> : vector<16x64xf32>
    %253 = tpu.matmul %250, %252, %cst_93 {dimension_numbers = #tpu.dot_dimension_numbers<[1], [0], [0], [1], [0, 0, 1, 1], [], []>} : vector<16x64xbf16>, vector<64x64xbf16>, vector<16x64xf32> -> vector<16x64xf32>
    %c1_94 = arith.constant 1 : index
    %c0_95 = arith.constant 0 : index
    %c0_96 = arith.constant 0 : index
    %254 = vector.load %arg9[%c1_94, %c0_95, %c0_96] : memref<2x1x64xf32, #tpu.memory_space<vmem>>, vector<1x1x64xf32>
    %255 = vector.shape_cast %254 : vector<1x1x64xf32> to vector<1x64xf32>
    %256 = vector.broadcast %255 : vector<1x64xf32> to vector<16x64xf32>
    %257 = arith.addf %253, %256 : vector<16x64xf32>
    %258 = arith.addf %161, %257 : vector<16x64xf32>
    %c1_97 = arith.constant 1 : index
    %c0_98 = arith.constant 0 : index
    %c0_99 = arith.constant 0 : index
    %259 = vector.load %arg10[%c1_97, %c0_98, %c0_99] : memref<2x1x64xf32, #tpu.memory_space<vmem>>, vector<1x1x64xf32>
    %260 = vector.shape_cast %259 : vector<1x1x64xf32> to vector<1x64xf32>
    %c1_100 = arith.constant 1 : index
    %c0_101 = arith.constant 0 : index
    %c0_102 = arith.constant 0 : index
    %261 = vector.load %arg11[%c1_100, %c0_101, %c0_102] : memref<2x1x64xf32, #tpu.memory_space<vmem>>, vector<1x1x64xf32>
    %262 = vector.shape_cast %261 : vector<1x1x64xf32> to vector<1x64xf32>
    %cst_103 = arith.constant dense<0.000000e+00> : vector<16xf32>
    %263 = vector.multi_reduction <add>, %258, %cst_103 [1] : vector<16x64xf32> to vector<16xf32>
    %264 = vector.shape_cast %263 : vector<16xf32> to vector<16x1xf32>
    %cst_104 = arith.constant 6.400000e+01 : f32
    %265 = vector.broadcast %cst_104 : f32 to vector<16x1xf32>
    %266 = arith.divf %264, %265 : vector<16x1xf32>
    %267 = vector.broadcast %266 : vector<16x1xf32> to vector<16x64xf32>
    %268 = arith.subf %258, %267 : vector<16x64xf32>
    %269 = arith.mulf %268, %268 : vector<16x64xf32>
    %cst_105 = arith.constant dense<0.000000e+00> : vector<16xf32>
    %270 = vector.multi_reduction <add>, %269, %cst_105 [1] : vector<16x64xf32> to vector<16xf32>
    %271 = vector.shape_cast %270 : vector<16xf32> to vector<16x1xf32>
    %cst_106 = arith.constant 6.400000e+01 : f32
    %272 = vector.broadcast %cst_106 : f32 to vector<16x1xf32>
    %273 = arith.divf %271, %272 : vector<16x1xf32>
    %274 = vector.broadcast %266 : vector<16x1xf32> to vector<16x64xf32>
    %275 = arith.subf %258, %274 : vector<16x64xf32>
    %cst_107 = arith.constant 9.99999996E-13 : f32
    %276 = vector.broadcast %cst_107 : f32 to vector<16x1xf32>
    %277 = arith.addf %273, %276 : vector<16x1xf32>
    %278 = math.rsqrt %277 : vector<16x1xf32>
    %279 = vector.broadcast %278 : vector<16x1xf32> to vector<16x64xf32>
    %280 = arith.mulf %275, %279 : vector<16x64xf32>
    %281 = vector.broadcast %260 : vector<1x64xf32> to vector<16x64xf32>
    %282 = arith.mulf %280, %281 : vector<16x64xf32>
    %283 = vector.broadcast %262 : vector<1x64xf32> to vector<16x64xf32>
    %284 = arith.addf %282, %283 : vector<16x64xf32>
    %285 = arith.truncf %284 : vector<16x64xf32> to vector<16x64xbf16>
    %c1_108 = arith.constant 1 : index
    %c0_109 = arith.constant 0 : index
    %c0_110 = arith.constant 0 : index
    %286 = vector.load %arg12[%c1_108, %c0_109, %c0_110] : memref<2x64x128xbf16, #tpu.memory_space<vmem>>, vector<1x64x128xbf16>
    %287 = vector.shape_cast %286 : vector<1x64x128xbf16> to vector<64x128xbf16>
    %cst_111 = arith.constant dense<0.000000e+00> : vector<16x128xf32>
    %288 = tpu.matmul %285, %287, %cst_111 {dimension_numbers = #tpu.dot_dimension_numbers<[1], [0], [0], [1], [0, 0, 1, 1], [], []>} : vector<16x64xbf16>, vector<64x128xbf16>, vector<16x128xf32> -> vector<16x128xf32>
    %c1_112 = arith.constant 1 : index
    %c0_113 = arith.constant 0 : index
    %c0_114 = arith.constant 0 : index
    %289 = vector.load %arg13[%c1_112, %c0_113, %c0_114] : memref<2x1x128xf32, #tpu.memory_space<vmem>>, vector<1x1x128xf32>
    %290 = vector.shape_cast %289 : vector<1x1x128xf32> to vector<1x128xf32>
    %291 = vector.broadcast %290 : vector<1x128xf32> to vector<16x128xf32>
    %292 = arith.addf %288, %291 : vector<16x128xf32>
    %293 = arith.mulf %292, %292 : vector<16x128xf32>
    %294 = arith.mulf %292, %293 : vector<16x128xf32>
    %cst_115 = arith.constant 4.471500e-02 : f32
    %295 = vector.broadcast %cst_115 : f32 to vector<16x128xf32>
    %296 = arith.mulf %295, %294 : vector<16x128xf32>
    %297 = arith.addf %292, %296 : vector<16x128xf32>
    %cst_116 = arith.constant 0.797884583 : f32
    %298 = vector.broadcast %cst_116 : f32 to vector<16x128xf32>
    %299 = arith.mulf %298, %297 : vector<16x128xf32>
    %300 = math.tanh %299 : vector<16x128xf32>
    %cst_117 = arith.constant 1.000000e+00 : f32
    %301 = vector.broadcast %cst_117 : f32 to vector<16x128xf32>
    %302 = arith.addf %301, %300 : vector<16x128xf32>
    %cst_118 = arith.constant 5.000000e-01 : f32
    %303 = vector.broadcast %cst_118 : f32 to vector<16x128xf32>
    %304 = arith.mulf %303, %302 : vector<16x128xf32>
    %305 = arith.mulf %292, %304 : vector<16x128xf32>
    %306 = arith.truncf %305 : vector<16x128xf32> to vector<16x128xbf16>
    %c1_119 = arith.constant 1 : index
    %c0_120 = arith.constant 0 : index
    %c0_121 = arith.constant 0 : index
    %307 = vector.load %arg14[%c1_119, %c0_120, %c0_121] : memref<2x128x64xbf16, #tpu.memory_space<vmem>>, vector<1x128x64xbf16>
    %308 = vector.shape_cast %307 : vector<1x128x64xbf16> to vector<128x64xbf16>
    %cst_122 = arith.constant dense<0.000000e+00> : vector<16x64xf32>
    %309 = tpu.matmul %306, %308, %cst_122 {dimension_numbers = #tpu.dot_dimension_numbers<[1], [0], [0], [1], [0, 0, 1, 1], [], []>} : vector<16x128xbf16>, vector<128x64xbf16>, vector<16x64xf32> -> vector<16x64xf32>
    %c1_123 = arith.constant 1 : index
    %c0_124 = arith.constant 0 : index
    %c0_125 = arith.constant 0 : index
    %310 = vector.load %arg15[%c1_123, %c0_124, %c0_125] : memref<2x1x64xf32, #tpu.memory_space<vmem>>, vector<1x1x64xf32>
    %311 = vector.shape_cast %310 : vector<1x1x64xf32> to vector<1x64xf32>
    %312 = vector.broadcast %311 : vector<1x64xf32> to vector<16x64xf32>
    %313 = arith.addf %309, %312 : vector<16x64xf32>
    %314 = arith.addf %258, %313 : vector<16x64xf32>
    %315 = vector.shape_cast %314 : vector<16x64xf32> to vector<2x8x64xf32>
    %316 = vector.extract_strided_slice %315 {offsets = [0, 0, 0], sizes = [2, 1, 64], strides = [1, 1, 1]} : vector<2x8x64xf32> to vector<2x1x64xf32>
    %317 = vector.shape_cast %316 : vector<2x1x64xf32> to vector<2x64xf32>
    %c0_126 = arith.constant 0 : index
    %c0_127 = arith.constant 0 : index
    %318 = vector.load %arg16[%c0_126, %c0_127] : memref<1x64xf32, #tpu.memory_space<vmem>>, vector<1x64xf32>
    %c0_128 = arith.constant 0 : index
    %c0_129 = arith.constant 0 : index
    %319 = vector.load %arg17[%c0_128, %c0_129] : memref<1x64xf32, #tpu.memory_space<vmem>>, vector<1x64xf32>
    %cst_130 = arith.constant dense<0.000000e+00> : vector<2xf32>
    %320 = vector.multi_reduction <add>, %317, %cst_130 [1] : vector<2x64xf32> to vector<2xf32>
    %321 = vector.shape_cast %320 : vector<2xf32> to vector<2x1xf32>
    %cst_131 = arith.constant 6.400000e+01 : f32
    %322 = vector.broadcast %cst_131 : f32 to vector<2x1xf32>
    %323 = arith.divf %321, %322 : vector<2x1xf32>
    %324 = vector.broadcast %323 : vector<2x1xf32> to vector<2x64xf32>
    %325 = arith.subf %317, %324 : vector<2x64xf32>
    %326 = arith.mulf %325, %325 : vector<2x64xf32>
    %cst_132 = arith.constant dense<0.000000e+00> : vector<2xf32>
    %327 = vector.multi_reduction <add>, %326, %cst_132 [1] : vector<2x64xf32> to vector<2xf32>
    %328 = vector.shape_cast %327 : vector<2xf32> to vector<2x1xf32>
    %cst_133 = arith.constant 6.400000e+01 : f32
    %329 = vector.broadcast %cst_133 : f32 to vector<2x1xf32>
    %330 = arith.divf %328, %329 : vector<2x1xf32>
    %331 = vector.broadcast %323 : vector<2x1xf32> to vector<2x64xf32>
    %332 = arith.subf %317, %331 : vector<2x64xf32>
    %cst_134 = arith.constant 9.99999996E-13 : f32
    %333 = vector.broadcast %cst_134 : f32 to vector<2x1xf32>
    %334 = arith.addf %330, %333 : vector<2x1xf32>
    %335 = math.rsqrt %334 : vector<2x1xf32>
    %336 = vector.broadcast %335 : vector<2x1xf32> to vector<2x64xf32>
    %337 = arith.mulf %332, %336 : vector<2x64xf32>
    %338 = vector.broadcast %318 : vector<1x64xf32> to vector<2x64xf32>
    %339 = arith.mulf %337, %338 : vector<2x64xf32>
    %340 = vector.broadcast %319 : vector<1x64xf32> to vector<2x64xf32>
    %341 = arith.addf %339, %340 : vector<2x64xf32>
    %342 = arith.truncf %341 : vector<2x64xf32> to vector<2x64xbf16>
    %c0_135 = arith.constant 0 : index
    %c0_136 = arith.constant 0 : index
    %343 = vector.load %arg18[%c0_135, %c0_136] : memref<64x64xbf16, #tpu.memory_space<vmem>>, vector<64x64xbf16>
    %cst_137 = arith.constant dense<0.000000e+00> : vector<2x64xf32>
    %344 = tpu.matmul %342, %343, %cst_137 {dimension_numbers = #tpu.dot_dimension_numbers<[1], [0], [0], [1], [0, 0, 1, 1], [], []>} : vector<2x64xbf16>, vector<64x64xbf16>, vector<2x64xf32> -> vector<2x64xf32>
    %c0_138 = arith.constant 0 : index
    %c0_139 = arith.constant 0 : index
    %345 = vector.load %arg19[%c0_138, %c0_139] : memref<1x64xf32, #tpu.memory_space<vmem>>, vector<1x64xf32>
    %346 = vector.broadcast %345 : vector<1x64xf32> to vector<2x64xf32>
    %347 = arith.addf %344, %346 : vector<2x64xf32>
    %348 = math.tanh %347 : vector<2x64xf32>
    %c0_140 = arith.constant 0 : index
    %c0_141 = arith.constant 0 : index
    %349 = vector.load %arg20[%c0_140, %c0_141] : memref<2x64xf32, #tpu.memory_space<vmem>>, vector<2x64xf32>
    tpu.vector_store %arg20[%c0_140, %c0_141], %348 {strides = array<i32>} : memref<2x64xf32, #tpu.memory_space<vmem>>, vector<2x64xf32>,
    return
  }
}

</mosaic_0001>

<llo_original>
// kernel: visual_encoder_forward.1
$region0: #{visual_encoder_forward.1}
  #allocation0 [shape = 'u32[]', space=smem, size = 0x4, offset = 0x4, fixed_abs, tag = 'smem constant byte address 0x4 - core index']
  #allocation1 [shape = 'u32[144,128]{1,0:T(1,128)}', space=vmem, size = 0x12000, scoped, tag = 'internal scratch']
  %s0 = inlined_call_operand.vmem [shape: bf16[16,768], index: 0, kind: input, shape index: {}]
  %s1 = inlined_call_operand.vmem [shape: bf16[768,64], index: 1, kind: input, shape index: {}]
  %s2 = inlined_call_operand.vmem [shape: f32[1,8,64], index: 2, kind: input, shape index: {}]
  %s3 = inlined_call_operand.vmem [shape: f32[1,1,8], index: 3, kind: input, shape index: {}]
  %s4 = inlined_call_operand.vmem [shape: f32[2,1,64], index: 4, kind: input, shape index: {}, may-alias: {4,10}]
  %s5 = inlined_call_operand.vmem [shape: f32[2,1,64], index: 5, kind: input, shape index: {}, may-alias: {5,9,11,15}]
  %s6 = inlined_call_operand.vmem [shape: bf16[2,64,192], index: 6, kind: input, shape index: {}]
  %s7 = inlined_call_operand.vmem [shape: f32[2,1,192], index: 7, kind: input, shape index: {}]
  %s8 = inlined_call_operand.vmem [shape: bf16[2,64,64], index: 8, kind: input, shape index: {}]
  %s9 = inlined_call_operand.vmem [shape: f32[2,1,64], index: 9, kind: input, shape index: {}, may-alias: {5,9,11,15}]
  %s10 = inlined_call_operand.vmem [shape: f32[2,1,64], index: 10, kind: input, shape index: {}, may-alias: {4,10}]
  %s11 = inlined_call_operand.vmem [shape: f32[2,1,64], index: 11, kind: input, shape index: {}, may-alias: {5,9,11,15}]
  %s12 = inlined_call_operand.vmem [shape: bf16[2,64,128], index: 12, kind: input, shape index: {}]
  %s13 = inlined_call_operand.vmem [shape: f32[2,1,128], index: 13, kind: input, shape index: {}]
  %s14 = inlined_call_operand.vmem [shape: bf16[2,128,64], index: 14, kind: input, shape index: {}]
  %s15 = inlined_call_operand.vmem [shape: f32[2,1,64], index: 15, kind: input, shape index: {}, may-alias: {5,9,11,15}]
  %s16 = inlined_call_operand.vmem [shape: f32[1,64], index: 16, kind: input, shape index: {}]
  %s17 = inlined_call_operand.vmem [shape: f32[1,64], index: 17, kind: input, shape index: {}, may-alias: {17,19}]
  %s18 = inlined_call_operand.vmem [shape: bf16[64,64], index: 18, kind: input, shape index: {}]
  %s19 = inlined_call_operand.vmem [shape: f32[1,64], index: 19, kind: input, shape index: {}, may-alias: {17,19}]
  %s20 = inlined_call_operand.hbm [shape: f32[2,64], index: 20, kind: output, shape index: {}]
  %s21 = sld [smem:[#allocation0]]
  $region90: #{visual_encoder_forward.1} parent=0
    _
  %s23 = ssub.s32 1, %s21
  %s24 = scalar_select 0, %s23, %s21
  $region1: #{visual_encoder_forward.1} parent=0
    #allocation2 [shape = 'u8[1024]{0}', space=vmem, size = 0x400, scoped, tag = 'output window, operand 0, single buffered']
    #allocation3 [shape = 's32[1]{0}', space=sflag, size = 0x4, scoped, tag = 'scoped memory for visual_encoder_forward.1']
    %25 = vsyncpa [#allocation3], 0
    // Predicated region
    $region2: #{visual_encoder_forward.1} parent=1 // pred_check
      _
    $region3: #{visual_encoder_forward.1} parent=1 // pred_check_branch
      %27 = sbr.rel (0) target = $region5
    $region4: #{visual_encoder_forward.1} parent=1 // pred_region
      _
    $region5: #{visual_encoder_forward.1} parent=1 // pred_fallthru
      _
    // Predicated region
    $region6: #{visual_encoder_forward.1} parent=1 // pred_check
      _
    $region7: #{visual_encoder_forward.1} parent=1 // pred_check_branch
      %29 = sbr.rel (0) target = $region9
    $region8: #{visual_encoder_forward.1} parent=1 // pred_region
      _
    $region9: #{visual_encoder_forward.1} parent=1 // pred_fallthru
      _
    // Predicated region
    $region10: #{visual_encoder_forward.1} parent=1 // pred_check
      _
    $region11: #{visual_encoder_forward.1} parent=1 // pred_check_branch
      %31 = sbr.rel (0) target = $region13
    $region12: #{visual_encoder_forward.1} parent=1 // pred_region
      _
    $region13: #{visual_encoder_forward.1} parent=1 // pred_fallthru
      _
    // Predicated region
    $region14: #{visual_encoder_forward.1} parent=1 // pred_check
      _
    $region15: #{visual_encoder_forward.1} parent=1 // pred_check_branch
      %33 = sbr.rel (0) target = $region17
    $region16: #{visual_encoder_forward.1} parent=1 // pred_region
      _
    $region17: #{visual_encoder_forward.1} parent=1 // pred_fallthru
      _
    // Predicated region
    $region18: #{visual_encoder_forward.1} parent=1 // pred_check
      _
    $region19: #{visual_encoder_forward.1} parent=1 // pred_check_branch
      %35 = sbr.rel (0) target = $region21
    $region20: #{visual_encoder_forward.1} parent=1 // pred_region
      _
    $region21: #{visual_encoder_forward.1} parent=1 // pred_fallthru
      _
    // Predicated region
    $region22: #{visual_encoder_forward.1} parent=1 // pred_check
      _
    $region23: #{visual_encoder_forward.1} parent=1 // pred_check_branch
      %37 = sbr.rel (0) target = $region25
    $region24: #{visual_encoder_forward.1} parent=1 // pred_region
      _
    $region25: #{visual_encoder_forward.1} parent=1 // pred_fallthru
      _
    // Predicated region
    $region26: #{visual_encoder_forward.1} parent=1 // pred_check
      _
    $region27: #{visual_encoder_forward.1} parent=1 // pred_check_branch
      %39 = sbr.rel (0) target = $region29
    $region28: #{visual_encoder_forward.1} parent=1 // pred_region
      _
    $region29: #{visual_encoder_forward.1} parent=1 // pred_fallthru
      _
    // Predicated region
    $region30: #{visual_encoder_forward.1} parent=1 // pred_check
      _
    $region31: #{visual_encoder_forward.1} parent=1 // pred_check_branch
      %41 = sbr.rel (0) target = $region33
    $region32: #{visual_encoder_forward.1} parent=1 // pred_region
      _
    $region33: #{visual_encoder_forward.1} parent=1 // pred_fallthru
      _
    // Predicated region
    $region34: #{visual_encoder_forward.1} parent=1 // pred_check
      _
    $region35: #{visual_encoder_forward.1} parent=1 // pred_check_branch
      %43 = sbr.rel (0) target = $region37
    $region36: #{visual_encoder_forward.1} parent=1 // pred_region
      _
    $region37: #{visual_encoder_forward.1} parent=1 // pred_fallthru
      _
    // Predicated region
    $region38: #{visual_encoder_forward.1} parent=1 // pred_check
      _
    $region39: #{visual_encoder_forward.1} parent=1 // pred_check_branch
      %45 = sbr.rel (0) target = $region41
    $region40: #{visual_encoder_forward.1} parent=1 // pred_region
      _
    $region41: #{visual_encoder_forward.1} parent=1 // pred_fallthru
      _
    // Predicated region
    $region42: #{visual_encoder_forward.1} parent=1 // pred_check
      _
    $region43: #{visual_encoder_forward.1} parent=1 // pred_check_branch
      %47 = sbr.rel (0) target = $region45
    $region44: #{visual_encoder_forward.1} parent=1 // pred_region
      _
    $region45: #{visual_encoder_forward.1} parent=1 // pred_fallthru
      _
    // Predicated region
    $region46: #{visual_encoder_forward.1} parent=1 // pred_check
      _
    $region47: #{visual_encoder_forward.1} parent=1 // pred_check_branch
      %49 = sbr.rel (0) target = $region49
    $region48: #{visual_encoder_forward.1} parent=1 // pred_region
      _
    $region49: #{visual_encoder_forward.1} parent=1 // pred_fallthru
      _
    // Predicated region
    $region50: #{visual_encoder_forward.1} parent=1 // pred_check
      _
    $region51: #{visual_encoder_forward.1} parent=1 // pred_check_branch
      %51 = sbr.rel (0) target = $region53
    $region52: #{visual_encoder_forward.1} parent=1 // pred_region
      _
    $region53: #{visual_encoder_forward.1} parent=1 // pred_fallthru
      _
    // Predicated region
    $region54: #{visual_encoder_forward.1} parent=1 // pred_check
      _
    $region55: #{visual_encoder_forward.1} parent=1 // pred_check_branch
      %53 = sbr.rel (0) target = $region57
    $region56: #{visual_encoder_forward.1} parent=1 // pred_region
      _
    $region57: #{visual_encoder_forward.1} parent=1 // pred_fallthru
      _
    // Predicated region
    $region58: #{visual_encoder_forward.1} parent=1 // pred_check
      _
    $region59: #{visual_encoder_forward.1} parent=1 // pred_check_branch
      %55 = sbr.rel (0) target = $region61
    $region60: #{visual_encoder_forward.1} parent=1 // pred_region
      _
    $region61: #{visual_encoder_forward.1} parent=1 // pred_fallthru
      _
    // Predicated region
    $region62: #{visual_encoder_forward.1} parent=1 // pred_check
      _
    $region63: #{visual_encoder_forward.1} parent=1 // pred_check_branch
      %57 = sbr.rel (0) target = $region65
    $region64: #{visual_encoder_forward.1} parent=1 // pred_region
      _
    $region65: #{visual_encoder_forward.1} parent=1 // pred_fallthru
      _
    // Predicated region
    $region66: #{visual_encoder_forward.1} parent=1 // pred_check
      _
    $region67: #{visual_encoder_forward.1} parent=1 // pred_check_branch
      %59 = sbr.rel (0) target = $region69
    $region68: #{visual_encoder_forward.1} parent=1 // pred_region
      _
    $region69: #{visual_encoder_forward.1} parent=1 // pred_fallthru
      _
    // Predicated region
    $region70: #{visual_encoder_forward.1} parent=1 // pred_check
      _
    $region71: #{visual_encoder_forward.1} parent=1 // pred_check_branch
      %61 = sbr.rel (0) target = $region73
    $region72: #{visual_encoder_forward.1} parent=1 // pred_region
      _
    $region73: #{visual_encoder_forward.1} parent=1 // pred_fallthru
      _
    // Predicated region
    $region74: #{visual_encoder_forward.1} parent=1 // pred_check
      _
    $region75: #{visual_encoder_forward.1} parent=1 // pred_check_branch
      %63 = sbr.rel (0) target = $region77
    $region76: #{visual_encoder_forward.1} parent=1 // pred_region
      _
    $region77: #{visual_encoder_forward.1} parent=1 // pred_fallthru
      _
    // Predicated region
    $region78: #{visual_encoder_forward.1} parent=1 // pred_check
      _
    $region79: #{visual_encoder_forward.1} parent=1 // pred_check_branch
      %65 = sbr.rel (0) target = $region81
    $region80: #{visual_encoder_forward.1} parent=1 // pred_region
      _
    $region81: #{visual_encoder_forward.1} parent=1 // pred_fallthru
      _
    %v67 = vld [vmem:[%s0] sm:$0xff]
    %v68 = vld [vmem:[%s0 + $0x8] sm:$0xff]
    %v69 = vld [vmem:[%s0 + $0x10] sm:$0xff]
    %v70 = vld [vmem:[%s0 + $0x18] sm:$0xff]
    %v71 = vld [vmem:[%s0 + $0x20] sm:$0xff]
    %v72 = vld [vmem:[%s0 + $0x28] sm:$0xff]
    %v73 = vld [vmem:[%s1] sm:$0xf]
    %v74 = vld [vmem:[%s1 + $0x4] sm:$0xf]
    %v75 = vld [vmem:[%s1 + $0x8] sm:$0xf]
    %v76 = vld [vmem:[%s1 + $0xc] sm:$0xf]
    %v77 = vld [vmem:[%s1 + $0x10] sm:$0xf]
    %v78 = vld [vmem:[%s1 + $0x14] sm:$0xf]
    %v79 = vld [vmem:[%s1 + $0x18] sm:$0xf]
    %v80 = vld [vmem:[%s1 + $0x1c] sm:$0xf]
    %v81 = vld [vmem:[%s1 + $0x20] sm:$0xf]
    %v82 = vld [vmem:[%s1 + $0x24] sm:$0xf]
    %v83 = vld [vmem:[%s1 + $0x28] sm:$0xf]
    %v84 = vld [vmem:[%s1 + $0x2c] sm:$0xf]
    %v85 = vld [vmem:[%s1 + $0x30] sm:$0xf]
    %v86 = vld [vmem:[%s1 + $0x34] sm:$0xf]
    %v87 = vld [vmem:[%s1 + $0x38] sm:$0xf]
    %v88 = vld [vmem:[%s1 + $0x3c] sm:$0xf]
    %v89 = vld [vmem:[%s1 + $0x40] sm:$0xf]
    %v90 = vld [vmem:[%s1 + $0x44] sm:$0xf]
    %v91 = vld [vmem:[%s1 + $0x48] sm:$0xf]
    %v92 = vld [vmem:[%s1 + $0x4c] sm:$0xf]
    %v93 = vld [vmem:[%s1 + $0x50] sm:$0xf]
    %v94 = vld [vmem:[%s1 + $0x54] sm:$0xf]
    %v95 = vld [vmem:[%s1 + $0x58] sm:$0xf]
    %v96 = vld [vmem:[%s1 + $0x5c] sm:$0xf]
    %v97 = vld [vmem:[%s1 + $0x60] sm:$0xf]
    %v98 = vld [vmem:[%s1 + $0x64] sm:$0xf]
    %v99 = vld [vmem:[%s1 + $0x68] sm:$0xf]
    %v100 = vld [vmem:[%s1 + $0x6c] sm:$0xf]
    %v101 = vld [vmem:[%s1 + $0x70] sm:$0xf]
    %v102 = vld [vmem:[%s1 + $0x74] sm:$0xf]
    %v103 = vld [vmem:[%s1 + $0x78] sm:$0xf]
    %v104 = vld [vmem:[%s1 + $0x7c] sm:$0xf]
    %v105 = vld [vmem:[%s1 + $0x80] sm:$0xf]
    %v106 = vld [vmem:[%s1 + $0x84] sm:$0xf]
    %v107 = vld [vmem:[%s1 + $0x88] sm:$0xf]
    %v108 = vld [vmem:[%s1 + $0x8c] sm:$0xf]
    %v109 = vld [vmem:[%s1 + $0x90] sm:$0xf]
    %v110 = vld [vmem:[%s1 + $0x94] sm:$0xf]
    %v111 = vld [vmem:[%s1 + $0x98] sm:$0xf]
    %v112 = vld [vmem:[%s1 + $0x9c] sm:$0xf]
    %v113 = vld [vmem:[%s1 + $0xa0] sm:$0xf]
    %v114 = vld [vmem:[%s1 + $0xa4] sm:$0xf]
    %v115 = vld [vmem:[%s1 + $0xa8] sm:$0xf]
    %v116 = vld [vmem:[%s1 + $0xac] sm:$0xf]
    %v117 = vld [vmem:[%s1 + $0xb0] sm:$0xf]
    %v118 = vld [vmem:[%s1 + $0xb4] sm:$0xf]
    %v119 = vld [vmem:[%s1 + $0xb8] sm:$0xf]
    %v120 = vld [vmem:[%s1 + $0xbc] sm:$0xf]
    %v121 = vld [vmem:[%s1 + $0xc0] sm:$0xf]
    %v122 = vld [vmem:[%s1 + $0xc4] sm:$0xf]
    %v123 = vld [vmem:[%s1 + $0xc8] sm:$0xf]
    %v124 = vld [vmem:[%s1 + $0xcc] sm:$0xf]
    %v125 = vld [vmem:[%s1 + $0xd0] sm:$0xf]
    %v126 = vld [vmem:[%s1 + $0xd4] sm:$0xf]
    %v127 = vld [vmem:[%s1 + $0xd8] sm:$0xf]
    %v128 = vld [vmem:[%s1 + $0xdc] sm:$0xf]
    %v129 = vld [vmem:[%s1 + $0xe0] sm:$0xf]
    %v130 = vld [vmem:[%s1 + $0xe4] sm:$0xf]
    %v131 = vld [vmem:[%s1 + $0xe8] sm:$0xf]
    %v132 = vld [vmem:[%s1 + $0xec] sm:$0xf]
    %v133 = vld [vmem:[%s1 + $0xf0] sm:$0xf]
    %v134 = vld [vmem:[%s1 + $0xf4] sm:$0xf]
    %v135 = vld [vmem:[%s1 + $0xf8] sm:$0xf]
    %v136 = vld [vmem:[%s1 + $0xfc] sm:$0xf]
    %v137 = vld [vmem:[%s1 + $0x100] sm:$0xf]
    %v138 = vld [vmem:[%s1 + $0x104] sm:$0xf]
    %v139 = vld [vmem:[%s1 + $0x108] sm:$0xf]
    %v140 = vld [vmem:[%s1 + $0x10c] sm:$0xf]
    %v141 = vld [vmem:[%s1 + $0x110] sm:$0xf]
    %v142 = vld [vmem:[%s1 + $0x114] sm:$0xf]
    %v143 = vld [vmem:[%s1 + $0x118] sm:$0xf]
    %v144 = vld [vmem:[%s1 + $0x11c] sm:$0xf]
    %v145 = vld [vmem:[%s1 + $0x120] sm:$0xf]
    %v146 = vld [vmem:[%s1 + $0x124] sm:$0xf]
    %v147 = vld [vmem:[%s1 + $0x128] sm:$0xf]
    %v148 = vld [vmem:[%s1 + $0x12c] sm:$0xf]
    %v149 = vld [vmem:[%s1 + $0x130] sm:$0xf]
    %v150 = vld [vmem:[%s1 + $0x134] sm:$0xf]
    %v151 = vld [vmem:[%s1 + $0x138] sm:$0xf]
    %v152 = vld [vmem:[%s1 + $0x13c] sm:$0xf]
    %v153 = vld [vmem:[%s1 + $0x140] sm:$0xf]
    %v154 = vld [vmem:[%s1 + $0x144] sm:$0xf]
    %v155 = vld [vmem:[%s1 + $0x148] sm:$0xf]
    %v156 = vld [vmem:[%s1 + $0x14c] sm:$0xf]
    %v157 = vld [vmem:[%s1 + $0x150] sm:$0xf]
    %v158 = vld [vmem:[%s1 + $0x154] sm:$0xf]
    %v159 = vld [vmem:[%s1 + $0x158] sm:$0xf]
    %v160 = vld [vmem:[%s1 + $0x15c] sm:$0xf]
    %v161 = vld [vmem:[%s1 + $0x160] sm:$0xf]
    %v162 = vld [vmem:[%s1 + $0x164] sm:$0xf]
    %v163 = vld [vmem:[%s1 + $0x168] sm:$0xf]
    %v164 = vld [vmem:[%s1 + $0x16c] sm:$0xf]
    %v165 = vld [vmem:[%s1 + $0x170] sm:$0xf]
    %v166 = vld [vmem:[%s1 + $0x174] sm:$0xf]
    %v167 = vld [vmem:[%s1 + $0x178] sm:$0xf]
    %v168 = vld [vmem:[%s1 + $0x17c] sm:$0xf]
    %v175 = vunpack.c.l.b16 %v67
    %v176 = vunpack.c.h.b16 %v67
    %v177 = vunpack.c.l.b16 %v68
    %v178 = vunpack.c.h.b16 %v68
    %v179 = vunpack.c.l.b16 %v69
    %v180 = vunpack.c.h.b16 %v69
    %v181 = vunpack.c.l.b16 %v70
    %v182 = vunpack.c.h.b16 %v70
    %v183 = vunpack.c.l.b16 %v71
    %v184 = vunpack.c.h.b16 %v71
    %v185 = vunpack.c.l.b16 %v72
    %v186 = vunpack.c.h.b16 %v72
    %v187 = vpack.c.b16 %v181, %v175
    %v188 = vpack.c.b16 %v182, %v176
    %v189 = vpack.c.b16 %v183, %v177
    %v190 = vpack.c.b16 %v184, %v178
    %v191 = vpack.c.b16 %v185, %v179
    %v192 = vpack.c.b16 %v186, %v180
    %v295 = vunpack.c.l.b16 %v73
    %v296 = vunpack.c.l.b16 %v74
    %v297 = vunpack.c.l.b16 %v75
    %v298 = vunpack.c.l.b16 %v76
    %v299 = vunpack.c.l.b16 %v77
    %v300 = vunpack.c.l.b16 %v78
    %v301 = vunpack.c.l.b16 %v79
    %v302 = vunpack.c.l.b16 %v80
    %v303 = vunpack.c.l.b16 %v81
    %v304 = vunpack.c.l.b16 %v82
    %v305 = vunpack.c.l.b16 %v83
    %v306 = vunpack.c.l.b16 %v84
    %v307 = vunpack.c.l.b16 %v85
    %v308 = vunpack.c.l.b16 %v86
    %v309 = vunpack.c.l.b16 %v87
    %v310 = vunpack.c.l.b16 %v88
    %v311 = vunpack.c.l.b16 %v89
    %v312 = vunpack.c.l.b16 %v90
    %v313 = vunpack.c.l.b16 %v91
    %v314 = vunpack.c.l.b16 %v92
    %v315 = vunpack.c.l.b16 %v93
    %v316 = vunpack.c.l.b16 %v94
    %v317 = vunpack.c.l.b16 %v95
    %v318 = vunpack.c.l.b16 %v96
    %v319 = vunpack.c.l.b16 %v97
    %v320 = vunpack.c.l.b16 %v98
    %v321 = vunpack.c.l.b16 %v99
    %v322 = vunpack.c.l.b16 %v100
    %v323 = vunpack.c.l.b16 %v101
    %v324 = vunpack.c.l.b16 %v102
    %v325 = vunpack.c.l.b16 %v103
    %v326 = vunpack.c.l.b16 %v104
    %v327 = vunpack.c.l.b16 %v105
    %v328 = vunpack.c.l.b16 %v106
    %v329 = vunpack.c.l.b16 %v107
    %v330 = vunpack.c.l.b16 %v108
    %v331 = vunpack.c.l.b16 %v109
    %v332 = vunpack.c.l.b16 %v110
    %v333 = vunpack.c.l.b16 %v111
    %v334 = vunpack.c.l.b16 %v112
    %v335 = vunpack.c.l.b16 %v113
    %v336 = vunpack.c.l.b16 %v114
    %v337 = vunpack.c.l.b16 %v115
    %v338 = vunpack.c.l.b16 %v116
    %v339 = vunpack.c.l.b16 %v117
    %v340 = vunpack.c.l.b16 %v118
    %v341 = vunpack.c.l.b16 %v119
    %v342 = vunpack.c.l.b16 %v120
    %v343 = vunpack.c.l.b16 %v121
    %v344 = vunpack.c.l.b16 %v122
    %v345 = vunpack.c.l.b16 %v123
    %v346 = vunpack.c.l.b16 %v124
    %v347 = vunpack.c.l.b16 %v125
    %v348 = vunpack.c.l.b16 %v126
    %v349 = vunpack.c.l.b16 %v127
    %v350 = vunpack.c.l.b16 %v128
    %v351 = vunpack.c.l.b16 %v129
    %v352 = vunpack.c.l.b16 %v130
    %v353 = vunpack.c.l.b16 %v131
    %v354 = vunpack.c.l.b16 %v132
    %v355 = vunpack.c.l.b16 %v133
    %v356 = vunpack.c.l.b16 %v134
    %v357 = vunpack.c.l.b16 %v135
    %v358 = vunpack.c.l.b16 %v136
    %v359 = vunpack.c.l.b16 %v137
    %v360 = vunpack.c.l.b16 %v138
    %v361 = vunpack.c.l.b16 %v139
    %v362 = vunpack.c.l.b16 %v140
    %v363 = vunpack.c.l.b16 %v141
    %v364 = vunpack.c.l.b16 %v142
    %v365 = vunpack.c.l.b16 %v143
    %v366 = vunpack.c.l.b16 %v144
    %v367 = vunpack.c.l.b16 %v145
    %v368 = vunpack.c.l.b16 %v146
    %v369 = vunpack.c.l.b16 %v147
    %v370 = vunpack.c.l.b16 %v148
    %v371 = vunpack.c.l.b16 %v149
    %v372 = vunpack.c.l.b16 %v150
    %v373 = vunpack.c.l.b16 %v151
    %v374 = vunpack.c.l.b16 %v152
    %v375 = vunpack.c.l.b16 %v153
    %v376 = vunpack.c.l.b16 %v154
    %v377 = vunpack.c.l.b16 %v155
    %v378 = vunpack.c.l.b16 %v156
    %v379 = vunpack.c.l.b16 %v157
    %v380 = vunpack.c.l.b16 %v158
    %v381 = vunpack.c.l.b16 %v159
    %v382 = vunpack.c.l.b16 %v160
    %v383 = vunpack.c.l.b16 %v161
    %v384 = vunpack.c.l.b16 %v162
    %v385 = vunpack.c.l.b16 %v163
    %v386 = vunpack.c.l.b16 %v164
    %v387 = vunpack.c.l.b16 %v165
    %v388 = vunpack.c.l.b16 %v166
    %v389 = vunpack.c.l.b16 %v167
    %v390 = vunpack.c.l.b16 %v168
    %v391 = vpack.c.b16 %v296, %v295
    %v392 = vpack.c.b16 %v298, %v297
    %v393 = vpack.c.b16 %v300, %v299
    %v394 = vpack.c.b16 %v302, %v301
    %v395 = vpack.c.b16 %v304, %v303
    %v396 = vpack.c.b16 %v306, %v305
    %v397 = vpack.c.b16 %v308, %v307
    %v398 = vpack.c.b16 %v310, %v309
    %v399 = vpack.c.b16 %v312, %v311
    %v400 = vpack.c.b16 %v314, %v313
    %v401 = vpack.c.b16 %v316, %v315
    %v402 = vpack.c.b16 %v318, %v317
    %v403 = vpack.c.b16 %v320, %v319
    %v404 = vpack.c.b16 %v322, %v321
    %v405 = vpack.c.b16 %v324, %v323
    %v406 = vpack.c.b16 %v326, %v325
    %v407 = vpack.c.b16 %v328, %v327
    %v408 = vpack.c.b16 %v330, %v329
    %v409 = vpack.c.b16 %v332, %v331
    %v410 = vpack.c.b16 %v334, %v333
    %v411 = vpack.c.b16 %v336, %v335
    %v412 = vpack.c.b16 %v338, %v337
    %v413 = vpack.c.b16 %v340, %v339
    %v414 = vpack.c.b16 %v342, %v341
    %v415 = vpack.c.b16 %v344, %v343
    %v416 = vpack.c.b16 %v346, %v345
    %v417 = vpack.c.b16 %v348, %v347
    %v418 = vpack.c.b16 %v350, %v349
    %v419 = vpack.c.b16 %v352, %v351
    %v420 = vpack.c.b16 %v354, %v353
    %v421 = vpack.c.b16 %v356, %v355
    %v422 = vpack.c.b16 %v358, %v357
    %v423 = vpack.c.b16 %v360, %v359
    %v424 = vpack.c.b16 %v362, %v361
    %v425 = vpack.c.b16 %v364, %v363
    %v426 = vpack.c.b16 %v366, %v365
    %v427 = vpack.c.b16 %v368, %v367
    %v428 = vpack.c.b16 %v370, %v369
    %v429 = vpack.c.b16 %v372, %v371
    %v430 = vpack.c.b16 %v374, %v373
    %v431 = vpack.c.b16 %v376, %v375
    %v432 = vpack.c.b16 %v378, %v377
    %v433 = vpack.c.b16 %v380, %v379
    %v434 = vpack.c.b16 %v382, %v381
    %v435 = vpack.c.b16 %v384, %v383
    %v436 = vpack.c.b16 %v386, %v385
    %v437 = vpack.c.b16 %v388, %v387
    %v438 = vpack.c.b16 %v390, %v389
    %487 = vmatprep.subr.bf16.mxu0 0
    %488 = vmatpush1.bf16.msra.mxu0 %v391
    %489 = vmatprep.subr.bf16.mxu0 0
    %490 = vmatpush1.bf16.msra.mxu0 %v392
    %491 = vmatprep.subr.bf16.mxu0 0
    %492 = vmatpush1.bf16.msra.mxu0 %v393
    %493 = vmatprep.subr.bf16.mxu0 0
    %494 = vmatpush1.bf16.msra.mxu0 %v394
    %495 = vmatprep.subr.bf16.mxu0 0
    %496 = vmatpush1.bf16.msra.mxu0 %v395
    %497 = vmatprep.subr.bf16.mxu0 0
    %498 = vmatpush1.bf16.msra.mxu0 %v396
    %499 = vmatprep.subr.bf16.mxu0 0
    %500 = vmatpush1.bf16.msra.mxu0 %v397
    %501 = vmatprep.subr.bf16.mxu0 0
    %502 = vmatpush1.bf16.msra.mxu0 %v398
    %503 = vmatprep.subr.bf16.mxu0 0
    %504 = vmatpush1.bf16.msra.mxu0 %v399
    %505 = vmatprep.subr.bf16.mxu0 0
    %506 = vmatpush1.bf16.msra.mxu0 %v400
    %507 = vmatprep.subr.bf16.mxu0 0
    %508 = vmatpush1.bf16.msra.mxu0 %v401
    %509 = vmatprep.subr.bf16.mxu0 0
    %510 = vmatpush1.bf16.msra.mxu0 %v402
    %511 = vmatprep.subr.bf16.mxu0 0
    %512 = vmatpush1.bf16.msra.mxu0 %v403
    %513 = vmatprep.subr.bf16.mxu0 0
    %514 = vmatpush1.bf16.msra.mxu0 %v404
    %515 = vmatprep.subr.bf16.mxu0 0
    %516 = vmatpush1.bf16.msra.mxu0 %v405
    %517 = vmatprep.subr.bf16.mxu0 0
    %518 = vmatpush1.bf16.msra.mxu0 %v406
    %519 = vmatprep.mubr.bf16.mxu0 %v188
    %520 = vmatmul.mubr.bf16.gmra.mrb[0].mxu0 %v187
    %v521 = vpop.f32.mrb[0].mxu0
    %v522 = vadd.f32 0.0, %v521
    %v523 = vpop.f32.mrb[0].mxu0
    %v524 = vpop.f32.mrb[0].mxu0
    %v525 = vadd.f32 0.0, %v524
    %v526 = vpop.f32.mrb[0].mxu0
    %527 = vdwg.mxu0
    %528 = vmatprep.subr.bf16.mxu0 0
    %529 = vmatpush1.bf16.msra.mxu0 %v407
    %530 = vmatprep.subr.bf16.mxu0 0
    %531 = vmatpush1.bf16.msra.mxu0 %v408
    %532 = vmatprep.subr.bf16.mxu0 0
    %533 = vmatpush1.bf16.msra.mxu0 %v409
    %534 = vmatprep.subr.bf16.mxu0 0
    %535 = vmatpush1.bf16.msra.mxu0 %v410
    %536 = vmatprep.subr.bf16.mxu0 0
    %537 = vmatpush1.bf16.msra.mxu0 %v411
    %538 = vmatprep.subr.bf16.mxu0 0
    %539 = vmatpush1.bf16.msra.mxu0 %v412
    %540 = vmatprep.subr.bf16.mxu0 0
    %541 = vmatpush1.bf16.msra.mxu0 %v413
    %542 = vmatprep.subr.bf16.mxu0 0
    %543 = vmatpush1.bf16.msra.mxu0 %v414
    %544 = vmatprep.subr.bf16.mxu0 0
    %545 = vmatpush1.bf16.msra.mxu0 %v415
    %546 = vmatprep.subr.bf16.mxu0 0
    %547 = vmatpush1.bf16.msra.mxu0 %v416
    %548 = vmatprep.subr.bf16.mxu0 0
    %549 = vmatpush1.bf16.msra.mxu0 %v417
    %550 = vmatprep.subr.bf16.mxu0 0
    %551 = vmatpush1.bf16.msra.mxu0 %v418
    %552 = vmatprep.subr.bf16.mxu0 0
    %553 = vmatpush1.bf16.msra.mxu0 %v419
    %554 = vmatprep.subr.bf16.mxu0 0
    %555 = vmatpush1.bf16.msra.mxu0 %v420
    %556 = vmatprep.subr.bf16.mxu0 0
    %557 = vmatpush1.bf16.msra.mxu0 %v421
    %558 = vmatprep.subr.bf16.mxu0 0
    %559 = vmatpush1.bf16.msra.mxu0 %v422
    %560 = vmatprep.mubr.bf16.mxu0 %v190
    %561 = vmatmul.mubr.bf16.gmra.mrb[0].mxu0 %v189
    %v562 = vpop.f32.mrb[0].mxu0
    %v563 = vadd.f32 %v522, %v562
    %v564 = vpop.f32.mrb[0].mxu0
    %v565 = vpop.f32.mrb[0].mxu0
    %v566 = vadd.f32 %v525, %v565
    %v567 = vpop.f32.mrb[0].mxu0
    %568 = vdwg.mxu0
    %569 = vmatprep.subr.bf16.mxu0 0
    %570 = vmatpush1.bf16.msra.mxu0 %v423
    %571 = vmatprep.subr.bf16.mxu0 0
    %572 = vmatpush1.bf16.msra.mxu0 %v424
    %573 = vmatprep.subr.bf16.mxu0 0
    %574 = vmatpush1.bf16.msra.mxu0 %v425
    %575 = vmatprep.subr.bf16.mxu0 0
    %576 = vmatpush1.bf16.msra.mxu0 %v426
    %577 = vmatprep.subr.bf16.mxu0 0
    %578 = vmatpush1.bf16.msra.mxu0 %v427
    %579 = vmatprep.subr.bf16.mxu0 0
    %580 = vmatpush1.bf16.msra.mxu0 %v428
    %581 = vmatprep.subr.bf16.mxu0 0
    %582 = vmatpush1.bf16.msra.mxu0 %v429
    %583 = vmatprep.subr.bf16.mxu0 0
    %584 = vmatpush1.bf16.msra.mxu0 %v430
    %585 = vmatprep.subr.bf16.mxu0 0
    %586 = vmatpush1.bf16.msra.mxu0 %v431
    %587 = vmatprep.subr.bf16.mxu0 0
    %588 = vmatpush1.bf16.msra.mxu0 %v432
    %589 = vmatprep.subr.bf16.mxu0 0
    %590 = vmatpush1.bf16.msra.mxu0 %v433
    %591 = vmatprep.subr.bf16.mxu0 0
    %592 = vmatpush1.bf16.msra.mxu0 %v434
    %593 = vmatprep.subr.bf16.mxu0 0
    %594 = vmatpush1.bf16.msra.mxu0 %v435
    %595 = vmatprep.subr.bf16.mxu0 0
    %596 = vmatpush1.bf16.msra.mxu0 %v436
    %597 = vmatprep.subr.bf16.mxu0 0
    %598 = vmatpush1.bf16.msra.mxu0 %v437
    %599 = vmatprep.subr.bf16.mxu0 0
    %600 = vmatpush1.bf16.msra.mxu0 %v438
    %601 = vmatprep.mubr.bf16.mxu0 %v192
    %602 = vmatmul.mubr.bf16.gmra.mrb[0].mxu0 %v191
    %v603 = vpop.f32.mrb[0].mxu0
    %v604 = vadd.f32 %v563, %v603
    %v605 = vpop.f32.mrb[0].mxu0
    %v606 = vpop.f32.mrb[0].mxu0
    %v607 = vadd.f32 %v566, %v606
    %v608 = vpop.f32.mrb[0].mxu0
    %609 = vdwg.mxu0
    %v610 = vld [vmem:[%s2] sm:$0xff]
    %v611 = vadd.f32 %v604, %v610
    %v612 = vadd.f32 %v607, %v610
    %v613 = vld [vmem:[%s3] sm:$0x1]
    %v614 = vld [vmem:[%s4] sm:$0x1]
    %v615 = vld [vmem:[%s5] sm:$0x1]
    %vm616 = vcmask 523264
    %v617 = vsel %vm616, %v611, 0.0
    %618 = vadd.xlane.f32.xlu0 %v617
    %v619 = vpop.xlane.xlu0 %618
    %v620 = vsel %vm616, %v612, 0.0
    %621 = vadd.xlane.f32.xlu0 %v620
    %v622 = vpop.xlane.xlu0 %621
    %v623 = vrcp.pop 64.0
    %v624 = vmul.f32 %v619, %v623
    %v625 = vmul.f32 %v622, %v623
    %v626 = vsub.f32 %v611, %v624
    %v627 = vsub.f32 %v612, %v625
    %v628 = vmul.f32 %v626, %v626
    %v629 = vmul.f32 %v627, %v627
    %v630 = vsel %vm616, %v628, 0.0
    %631 = vadd.xlane.f32.xlu0 %v630
    %v632 = vpop.xlane.xlu0 %631
    %v633 = vsel %vm616, %v629, 0.0
    %634 = vadd.xlane.f32.xlu0 %v633
    %v635 = vpop.xlane.xlu0 %634
    %v636 = vmul.f32 %v632, %v623
    %v637 = vmul.f32 %v635, %v623
    %v638 = vadd.f32 %v636, 1e-12
    %v639 = vadd.f32 %v637, 1e-12
    %v640 = vrsqrt.pop %v638
    %v641 = vrsqrt.pop %v639
    %v642 = vmul.f32 %v626, %v640
    %v643 = vmul.f32 %v627, %v641
    %v645 = vlaneseq
    %v646 = vshrl.u32 %v645, 7
    %v647 = vsub.s32 0, %v646
    %v648 = vrot.slane %v614, %v647
    %v650 = vmul.f32 %v642, %v648
    %v651 = vmul.f32 %v643, %v648
    %v653 = vlaneseq
    %v654 = vshrl.u32 %v653, 7
    %v655 = vsub.s32 0, %v654
    %v656 = vrot.slane %v615, %v655
    %v658 = vadd.f32 %v650, %v656
    %v659 = vadd.f32 %v651, %v656
    %v660 = vpack.c.bf16 %v659, %v658
    %v661 = vld [vmem:[%s6] sm:$0xff]
    %v662 = vld [vmem:[%s6 + $0x8] sm:$0xff]
    %v663 = vld [vmem:[%s6 + $0x10] sm:$0xff]
    %v664 = vld [vmem:[%s6 + $0x18] sm:$0xff]
    %v665 = vld [vmem:[%s6 + $0x20] sm:$0xff]
    %v666 = vld [vmem:[%s6 + $0x28] sm:$0xff]
    %v667 = vld [vmem:[%s6 + $0x30] sm:$0xff]
    %v668 = vld [vmem:[%s6 + $0x38] sm:$0xff]
    %v669 = vld [vmem:[%s7] sm:$0x3]
    %v671 = vlaneseq
    %v672 = vshrl.u32 %v671, 7
    %v673 = vsub.s32 0, %v672
    %v674 = vrot.slane %v669, %v673
    %v675 = vlaneseq
    %v676 = vshrl.u32 %v675, 7
    %v677 = vsub.s32 1, %v676
    %v678 = vrot.slane %v669, %v677
    %v689 = vunpack.c.l.b16 %v661
    %v690 = vunpack.c.h.b16 %v661
    %v691 = vunpack.c.l.b16 %v662
    %v692 = vunpack.c.h.b16 %v662
    %v693 = vunpack.c.l.b16 %v663
    %v694 = vunpack.c.h.b16 %v663
    %v695 = vunpack.c.l.b16 %v664
    %v696 = vunpack.c.h.b16 %v664
    %v697 = vunpack.c.l.b16 %v665
    %v698 = vunpack.c.h.b16 %v665
    %v699 = vunpack.c.l.b16 %v666
    %v700 = vunpack.c.h.b16 %v666
    %v701 = vunpack.c.l.b16 %v667
    %v702 = vunpack.c.h.b16 %v667
    %v703 = vunpack.c.l.b16 %v668
    %v704 = vunpack.c.h.b16 %v668
    %v705 = vpack.c.b16 %v691, %v689
    %v706 = vpack.c.b16 %v692, %v690
    %v707 = vpack.c.b16 %v695, %v693
    %v708 = vpack.c.b16 %v696, %v694
    %v709 = vpack.c.b16 %v699, %v697
    %v710 = vpack.c.b16 %v700, %v698
    %v711 = vpack.c.b16 %v703, %v701
    %v712 = vpack.c.b16 %v704, %v702
    %v722 = vsel %vm616, %v660, 0
    %724 = vmatprep.subr.bf16.mxu0 %v706
    %725 = vmatpush1.bf16.msra.mxu0 %v705
    %726 = vmatprep.subr.bf16.mxu0 %v708
    %727 = vmatpush1.bf16.msra.mxu0 %v707
    %728 = vmatprep.subr.bf16.mxu0 %v710
    %729 = vmatpush1.bf16.msra.mxu0 %v709
    %730 = vmatprep.subr.bf16.mxu0 %v712
    %731 = vmatpush1.bf16.msra.mxu0 %v711
    %732 = vmatprep.subr.bf16.mxu0 0
    %733 = vmatpush1.bf16.msra.mxu0 0
    %734 = vmatprep.subr.bf16.mxu0 0
    %735 = vmatpush1.bf16.msra.mxu0 0
    %736 = vmatprep.subr.bf16.mxu0 0
    %737 = vmatpush1.bf16.msra.mxu0 0
    %738 = vmatprep.subr.bf16.mxu0 0
    %739 = vmatpush1.bf16.msra.mxu0 0
    %740 = vmatprep.subr.bf16.mxu0 0
    %741 = vmatpush1.bf16.msra.mxu0 0
    %742 = vmatprep.subr.bf16.mxu0 0
    %743 = vmatpush1.bf16.msra.mxu0 0
    %744 = vmatprep.subr.bf16.mxu0 0
    %745 = vmatpush1.bf16.msra.mxu0 0
    %746 = vmatprep.subr.bf16.mxu0 0
    %747 = vmatpush1.bf16.msra.mxu0 0
    %748 = vmatprep.subr.bf16.mxu0 0
    %749 = vmatpush1.bf16.msra.mxu0 0
    %750 = vmatprep.subr.bf16.mxu0 0
    %751 = vmatpush1.bf16.msra.mxu0 0
    %752 = vmatprep.subr.bf16.mxu0 0
    %753 = vmatpush1.bf16.msra.mxu0 0
    %754 = vmatprep.subr.bf16.mxu0 0
    %755 = vmatpush1.bf16.msra.mxu0 0
    %756 = vmatprep.mubr.bf16.mxu0 0
    %757 = vmatmul.mubr.bf16.gmra.mrb[0].mxu0 %v722
    %v758 = vpop.f32.mrb[0].mxu0
    %v759 = vadd.f32 %v674, %v758
    %v760 = vpop.f32.mrb[0].mxu0
    %v761 = vadd.f32 %v678, %v760
    %v762 = vpop.f32.mrb[0].mxu0
    %v763 = vadd.f32 %v674, %v762
    %v764 = vpop.f32.mrb[0].mxu0
    %v765 = vadd.f32 %v678, %v764
    %766 = vdwg.mxu0
    %v767 = vpack.c.bf16 %v763, %v759
    %v768 = vpack.c.bf16 %v765, %v761
    %v770 = vunpack.c.l.b16 %v767
    %v771 = vunpack.c.h.b16 %v767
    %v772 = vpack.c.b16 %v770, %v770
    %v773 = vpack.c.b16 %v771, %v771
    %774 = vrot.lane.b32.xlu0 %v772, 112
    %v775 = vpop.permute.xlu0 %774
    %776 = vrot.lane.b32.xlu0 %v773, 112
    %v777 = vpop.permute.xlu0 %776
    %778 = vrot.lane.b32.xlu0 %v772, 96
    %v779 = vpop.permute.xlu0 %778
    %780 = vrot.lane.b32.xlu0 %v773, 96
    %v781 = vpop.permute.xlu0 %780
    %782 = vrot.lane.b32.xlu0 %v772, 80
    %v783 = vpop.permute.xlu0 %782
    %784 = vrot.lane.b32.xlu0 %v773, 80
    %v785 = vpop.permute.xlu0 %784
    %v787 = vunpack.c.l.b16 %v768
    %v788 = vunpack.c.h.b16 %v768
    %v789 = vpack.c.b16 %v787, %v787
    %v790 = vpack.c.b16 %v788, %v788
    %791 = vrot.lane.b32.xlu0 %v789, 112
    %v792 = vpop.permute.xlu0 %791
    %793 = vrot.lane.b32.xlu0 %v790, 112
    %v794 = vpop.permute.xlu0 %793
    %795 = vrot.lane.b32.xlu0 %v789, 96
    %v796 = vpop.permute.xlu0 %795
    %797 = vrot.lane.b32.xlu0 %v790, 96
    %v798 = vpop.permute.xlu0 %797
    %799 = vrot.lane.b32.xlu0 %v789, 80
    %v800 = vpop.permute.xlu0 %799
    %801 = vrot.lane.b32.xlu0 %v790, 80
    %v802 = vpop.permute.xlu0 %801
    %803 = vrot.lane.b32.xlu0 %v772, 64
    %v804 = vpop.permute.xlu0 %803
    %vm805 = vcmask 130048
    %v807 = vsel %vm805, %v772, 0
    %v810 = vsel %vm805, %v804, 0
    %812 = vmatprep.subr.bf16.mxu0 0
    %813 = vmatpush1.bf16.xpose.msra.mxu0 %v810
    %814 = vmatprep.subr.bf16.mxu0 0
    %815 = vmatpush1.bf16.xpose.msra.mxu0 0
    %816 = vmatprep.subr.bf16.mxu0 0
    %817 = vmatpush1.bf16.xpose.msra.mxu0 0
    %818 = vmatprep.subr.bf16.mxu0 0
    %819 = vmatpush1.bf16.xpose.msra.mxu0 0
    %820 = vmatprep.subr.bf16.mxu0 0
    %821 = vmatpush1.bf16.xpose.msra.mxu0 0
    %822 = vmatprep.subr.bf16.mxu0 0
    %823 = vmatpush1.bf16.xpose.msra.mxu0 0
    %824 = vmatprep.subr.bf16.mxu0 0
    %825 = vmatpush1.bf16.xpose.msra.mxu0 0
    %826 = vmatprep.subr.bf16.mxu0 0
    %827 = vmatpush1.bf16.xpose.msra.mxu0 0
    %828 = vmatprep.subr.bf16.mxu0 0
    %829 = vmatpush1.bf16.xpose.msra.mxu0 0
    %830 = vmatprep.subr.bf16.mxu0 0
    %831 = vmatpush1.bf16.xpose.msra.mxu0 0
    %832 = vmatprep.subr.bf16.mxu0 0
    %833 = vmatpush1.bf16.xpose.msra.mxu0 0
    %834 = vmatprep.subr.bf16.mxu0 0
    %835 = vmatpush1.bf16.xpose.msra.mxu0 0
    %836 = vmatprep.subr.bf16.mxu0 0
    %837 = vmatpush1.bf16.xpose.msra.mxu0 0
    %838 = vmatprep.subr.bf16.mxu0 0
    %839 = vmatpush1.bf16.xpose.msra.mxu0 0
    %840 = vmatprep.subr.bf16.mxu0 0
    %841 = vmatpush1.bf16.xpose.msra.mxu0 0
    %842 = vmatprep.subr.bf16.mxu0 0
    %843 = vmatpush1.bf16.xpose.msra.mxu0 0
    %844 = vmatprep.mubr.bf16.mxu0 0
    %845 = vmatmul.mubr.bf16.gmra.mrb[0].mxu0 %v807
    %v846 = vpop.f32.mrb[0].mxu0
    %v847 = vadd.f32 0.0, %v846
    %v848 = vpop.f32.mrb[0].mxu0
    %v849 = vpop.f32.mrb[0].mxu0
    %v850 = vpop.f32.mrb[0].mxu0
    %851 = vdwg.mxu0
    %852 = vrot.lane.b32.xlu0 %v773, 64
    %v853 = vpop.permute.xlu0 %852
    %v855 = vsel %vm805, %v773, 0
    %v858 = vsel %vm805, %v853, 0
    %860 = vmatprep.subr.bf16.mxu0 0
    %861 = vmatpush1.bf16.xpose.msra.mxu0 %v858
    %862 = vmatprep.subr.bf16.mxu0 0
    %863 = vmatpush1.bf16.xpose.msra.mxu0 0
    %864 = vmatprep.subr.bf16.mxu0 0
    %865 = vmatpush1.bf16.xpose.msra.mxu0 0
    %866 = vmatprep.subr.bf16.mxu0 0
    %867 = vmatpush1.bf16.xpose.msra.mxu0 0
    %868 = vmatprep.subr.bf16.mxu0 0
    %869 = vmatpush1.bf16.xpose.msra.mxu0 0
    %870 = vmatprep.subr.bf16.mxu0 0
    %871 = vmatpush1.bf16.xpose.msra.mxu0 0
    %872 = vmatprep.subr.bf16.mxu0 0
    %873 = vmatpush1.bf16.xpose.msra.mxu0 0
    %874 = vmatprep.subr.bf16.mxu0 0
    %875 = vmatpush1.bf16.xpose.msra.mxu0 0
    %876 = vmatprep.subr.bf16.mxu0 0
    %877 = vmatpush1.bf16.xpose.msra.mxu0 0
    %878 = vmatprep.subr.bf16.mxu0 0
    %879 = vmatpush1.bf16.xpose.msra.mxu0 0
    %880 = vmatprep.subr.bf16.mxu0 0
    %881 = vmatpush1.bf16.xpose.msra.mxu0 0
    %882 = vmatprep.subr.bf16.mxu0 0
    %883 = vmatpush1.bf16.xpose.msra.mxu0 0
    %884 = vmatprep.subr.bf16.mxu0 0
    %885 = vmatpush1.bf16.xpose.msra.mxu0 0
    %886 = vmatprep.subr.bf16.mxu0 0
    %887 = vmatpush1.bf16.xpose.msra.mxu0 0
    %888 = vmatprep.subr.bf16.mxu0 0
    %889 = vmatpush1.bf16.xpose.msra.mxu0 0
    %890 = vmatprep.subr.bf16.mxu0 0
    %891 = vmatpush1.bf16.xpose.msra.mxu0 0
    %892 = vmatprep.mubr.bf16.mxu0 0
    %893 = vmatmul.mubr.bf16.gmra.mrb[0].mxu0 %v855
    %v894 = vpop.f32.mrb[0].mxu0
    %v895 = vadd.f32 0.0, %v894
    %v896 = vpop.f32.mrb[0].mxu0
    %v897 = vpop.f32.mrb[0].mxu0
    %v898 = vpop.f32.mrb[0].mxu0
    %899 = vdwg.mxu0
    %v900 = vunpack.c.l.b16 %v775
    %v901 = vpack.c.b16 %v900, %v900
    %902 = vrot.lane.b32.xlu0 %v901, 64
    %v903 = vpop.permute.xlu0 %902
    %v905 = vsel %vm805, %v775, 0
    %v908 = vsel %vm805, %v903, 0
    %910 = vmatprep.subr.bf16.mxu0 0
    %911 = vmatpush1.bf16.xpose.msra.mxu0 %v908
    %912 = vmatprep.subr.bf16.mxu0 0
    %913 = vmatpush1.bf16.xpose.msra.mxu0 0
    %914 = vmatprep.subr.bf16.mxu0 0
    %915 = vmatpush1.bf16.xpose.msra.mxu0 0
    %916 = vmatprep.subr.bf16.mxu0 0
    %917 = vmatpush1.bf16.xpose.msra.mxu0 0
    %918 = vmatprep.subr.bf16.mxu0 0
    %919 = vmatpush1.bf16.xpose.msra.mxu0 0
    %920 = vmatprep.subr.bf16.mxu0 0
    %921 = vmatpush1.bf16.xpose.msra.mxu0 0
    %922 = vmatprep.subr.bf16.mxu0 0
    %923 = vmatpush1.bf16.xpose.msra.mxu0 0
    %924 = vmatprep.subr.bf16.mxu0 0
    %925 = vmatpush1.bf16.xpose.msra.mxu0 0
    %926 = vmatprep.subr.bf16.mxu0 0
    %927 = vmatpush1.bf16.xpose.msra.mxu0 0
    %928 = vmatprep.subr.bf16.mxu0 0
    %929 = vmatpush1.bf16.xpose.msra.mxu0 0
    %930 = vmatprep.subr.bf16.mxu0 0
    %931 = vmatpush1.bf16.xpose.msra.mxu0 0
    %932 = vmatprep.subr.bf16.mxu0 0
    %933 = vmatpush1.bf16.xpose.msra.mxu0 0
    %934 = vmatprep.subr.bf16.mxu0 0
    %935 = vmatpush1.bf16.xpose.msra.mxu0 0
    %936 = vmatprep.subr.bf16.mxu0 0
    %937 = vmatpush1.bf16.xpose.msra.mxu0 0
    %938 = vmatprep.subr.bf16.mxu0 0
    %939 = vmatpush1.bf16.xpose.msra.mxu0 0
    %940 = vmatprep.subr.bf16.mxu0 0
    %941 = vmatpush1.bf16.xpose.msra.mxu0 0
    %942 = vmatprep.mubr.bf16.mxu0 0
    %943 = vmatmul.mubr.bf16.gmra.mrb[0].mxu0 %v905
    %v944 = vpop.f32.mrb[0].mxu0
    %v945 = vadd.f32 0.0, %v944
    %v946 = vpop.f32.mrb[0].mxu0
    %v947 = vpop.f32.mrb[0].mxu0
    %v948 = vpop.f32.mrb[0].mxu0
    %949 = vdwg.mxu0
    %v950 = vunpack.c.l.b16 %v777
    %v951 = vpack.c.b16 %v950, %v950
    %952 = vrot.lane.b32.xlu0 %v951, 64
    %v953 = vpop.permute.xlu0 %952
    %v955 = vsel %vm805, %v777, 0
    %v958 = vsel %vm805, %v953, 0
    %960 = vmatprep.subr.bf16.mxu0 0
    %961 = vmatpush1.bf16.xpose.msra.mxu0 %v958
    %962 = vmatprep.subr.bf16.mxu0 0
    %963 = vmatpush1.bf16.xpose.msra.mxu0 0
    %964 = vmatprep.subr.bf16.mxu0 0
    %965 = vmatpush1.bf16.xpose.msra.mxu0 0
    %966 = vmatprep.subr.bf16.mxu0 0
    %967 = vmatpush1.bf16.xpose.msra.mxu0 0
    %968 = vmatprep.subr.bf16.mxu0 0
    %969 = vmatpush1.bf16.xpose.msra.mxu0 0
    %970 = vmatprep.subr.bf16.mxu0 0
    %971 = vmatpush1.bf16.xpose.msra.mxu0 0
    %972 = vmatprep.subr.bf16.mxu0 0
    %973 = vmatpush1.bf16.xpose.msra.mxu0 0
    %974 = vmatprep.subr.bf16.mxu0 0
    %975 = vmatpush1.bf16.xpose.msra.mxu0 0
    %976 = vmatprep.subr.bf16.mxu0 0
    %977 = vmatpush1.bf16.xpose.msra.mxu0 0
    %978 = vmatprep.subr.bf16.mxu0 0
    %979 = vmatpush1.bf16.xpose.msra.mxu0 0
    %980 = vmatprep.subr.bf16.mxu0 0
    %981 = vmatpush1.bf16.xpose.msra.mxu0 0
    %982 = vmatprep.subr.bf16.mxu0 0
    %983 = vmatpush1.bf16.xpose.msra.mxu0 0
    %984 = vmatprep.subr.bf16.mxu0 0
    %985 = vmatpush1.bf16.xpose.msra.mxu0 0
    %986 = vmatprep.subr.bf16.mxu0 0
    %987 = vmatpush1.bf16.xpose.msra.mxu0 0
    %988 = vmatprep.subr.bf16.mxu0 0
    %989 = vmatpush1.bf16.xpose.msra.mxu0 0
    %990 = vmatprep.subr.bf16.mxu0 0
    %991 = vmatpush1.bf16.xpose.msra.mxu0 0
    %992 = vmatprep.mubr.bf16.mxu0 0
    %993 = vmatmul.mubr.bf16.gmra.mrb[0].mxu0 %v955
    %v994 = vpop.f32.mrb[0].mxu0
    %v995 = vadd.f32 0.0, %v994
    %v996 = vpop.f32.mrb[0].mxu0
    %v997 = vpop.f32.mrb[0].mxu0
    %v998 = vpop.f32.mrb[0].mxu0
    %999 = vdwg.mxu0
    %v1000 = vunpack.c.l.b16 %v779
    %v1001 = vpack.c.b16 %v1000, %v1000
    %1002 = vrot.lane.b32.xlu0 %v1001, 64
    %v1003 = vpop.permute.xlu0 %1002
    %v1005 = vsel %vm805, %v779, 0
    %v1008 = vsel %vm805, %v1003, 0
    %1010 = vmatprep.subr.bf16.mxu0 0
    %1011 = vmatpush1.bf16.xpose.msra.mxu0 %v1008
    %1012 = vmatprep.subr.bf16.mxu0 0
    %1013 = vmatpush1.bf16.xpose.msra.mxu0 0
    %1014 = vmatprep.subr.bf16.mxu0 0
    %1015 = vmatpush1.bf16.xpose.msra.mxu0 0
    %1016 = vmatprep.subr.bf16.mxu0 0
    %1017 = vmatpush1.bf16.xpose.msra.mxu0 0
    %1018 = vmatprep.subr.bf16.mxu0 0
    %1019 = vmatpush1.bf16.xpose.msra.mxu0 0
    %1020 = vmatprep.subr.bf16.mxu0 0
    %1021 = vmatpush1.bf16.xpose.msra.mxu0 0
    %1022 = vmatprep.subr.bf16.mxu0 0
    %1023 = vmatpush1.bf16.xpose.msra.mxu0 0
    %1024 = vmatprep.subr.bf16.mxu0 0
    %1025 = vmatpush1.bf16.xpose.msra.mxu0 0
    %1026 = vmatprep.subr.bf16.mxu0 0
    %1027 = vmatpush1.bf16.xpose.msra.mxu0 0
    %1028 = vmatprep.subr.bf16.mxu0 0
    %1029 = vmatpush1.bf16.xpose.msra.mxu0 0
    %1030 = vmatprep.subr.bf16.mxu0 0
    %1031 = vmatpush1.bf16.xpose.msra.mxu0 0
    %1032 = vmatprep.subr.bf16.mxu0 0
    %1033 = vmatpush1.bf16.xpose.msra.mxu0 0
    %1034 = vmatprep.subr.bf16.mxu0 0
    %1035 = vmatpush1.bf16.xpose.msra.mxu0 0
    %1036 = vmatprep.subr.bf16.mxu0 0
    %1037 = vmatpush1.bf16.xpose.msra.mxu0 0
    %1038 = vmatprep.subr.bf16.mxu0 0
    %1039 = vmatpush1.bf16.xpose.msra.mxu0 0
    %1040 = vmatprep.subr.bf16.mxu0 0
    %1041 = vmatpush1.bf16.xpose.msra.mxu0 0
    %1042 = vmatprep.mubr.bf16.mxu0 0
    %1043 = vmatmul.mubr.bf16.gmra.mrb[0].mxu0 %v1005
    %v1044 = vpop.f32.mrb[0].mxu0
    %v1045 = vadd.f32 0.0, %v1044
    %v1046 = vpop.f32.mrb[0].mxu0
    %v1047 = vpop.f32.mrb[0].mxu0
    %v1048 = vpop.f32.mrb[0].mxu0
    %1049 = vdwg.mxu0
    %v1050 = vunpack.c.l.b16 %v781
    %v1051 = vpack.c.b16 %v1050, %v1050
    %1052 = vrot.lane.b32.xlu0 %v1051, 64
    %v1053 = vpop.permute.xlu0 %1052
    %v1055 = vsel %vm805, %v781, 0
    %v1058 = vsel %vm805, %v1053, 0
    %1060 = vmatprep.subr.bf16.mxu0 0
    %1061 = vmatpush1.bf16.xpose.msra.mxu0 %v1058
    %1062 = vmatprep.subr.bf16.mxu0 0
    %1063 = vmatpush1.bf16.xpose.msra.mxu0 0
    %1064 = vmatprep.subr.bf16.mxu0 0
    %1065 = vmatpush1.bf16.xpose.msra.mxu0 0
    %1066 = vmatprep.subr.bf16.mxu0 0
    %1067 = vmatpush1.bf16.xpose.msra.mxu0 0
    %1068 = vmatprep.subr.bf16.mxu0 0
    %1069 = vmatpush1.bf16.xpose.msra.mxu0 0
    %1070 = vmatprep.subr.bf16.mxu0 0
    %1071 = vmatpush1.bf16.xpose.msra.mxu0 0
    %1072 = vmatprep.subr.bf16.mxu0 0
    %1073 = vmatpush1.bf16.xpose.msra.mxu0 0
    %1074 = vmatprep.subr.bf16.mxu0 0
    %1075 = vmatpush1.bf16.xpose.msra.mxu0 0
    %1076 = vmatprep.subr.bf16.mxu0 0
    %1077 = vmatpush1.bf16.xpose.msra.mxu0 0
    %1078 = vmatprep.subr.bf16.mxu0 0
    %1079 = vmatpush1.bf16.xpose.msra.mxu0 0
    %1080 = vmatprep.subr.bf16.mxu0 0
    %1081 = vmatpush1.bf16.xpose.msra.mxu0 0
    %1082 = vmatprep.subr.bf16.mxu0 0
    %1083 = vmatpush1.bf16.xpose.msra.mxu0 0
    %1084 = vmatprep.subr.bf16.mxu0 0
    %1085 = vmatpush1.bf16.xpose.msra.mxu0 0
    %1086 = vmatprep.subr.bf16.mxu0 0
    %1087 = vmatpush1.bf16.xpose.msra.mxu0 0
    %1088 = vmatprep.subr.bf16.mxu0 0
    %1089 = vmatpush1.bf16.xpose.msra.mxu0 0
    %1090 = vmatprep.subr.bf16.mxu0 0
    %1091 = vmatpush1.bf16.xpose.msra.mxu0 0
    %1092 = vmatprep.mubr.bf16.mxu0 0
    %1093 = vmatmul.mubr.bf16.gmra.mrb[0].mxu0 %v1055
    %v1094 = vpop.f32.mrb[0].mxu0
    %v1095 = vadd.f32 0.0, %v1094
    %v1096 = vpop.f32.mrb[0].mxu0
    %v1097 = vpop.f32.mrb[0].mxu0
    %v1098 = vpop.f32.mrb[0].mxu0
    %1099 = vdwg.mxu0
    %v1100 = vunpack.c.l.b16 %v783
    %v1101 = vpack.c.b16 %v1100, %v1100
    %1102 = vrot.lane.b32.xlu0 %v1101, 64
    %v1103 = vpop.permute.xlu0 %1102
    %v1105 = vsel %vm805, %v783, 0
    %v1108 = vsel %vm805, %v1103, 0
    %1110 = vmatprep.subr.bf16.mxu0 0
    %1111 = vmatpush1.bf16.xpose.msra.mxu0 %v1108
    %1112 = vmatprep.subr.bf16.mxu0 0
    %1113 = vmatpush1.bf16.xpose.msra.mxu0 0
    %1114 = vmatprep.subr.bf16.mxu0 0
    %1115 = vmatpush1.bf16.xpose.msra.mxu0 0
    %1116 = vmatprep.subr.bf16.mxu0 0
    %1117 = vmatpush1.bf16.xpose.msra.mxu0 0
    %1118 = vmatprep.subr.bf16.mxu0 0
    %1119 = vmatpush1.bf16.xpose.msra.mxu0 0
    %1120 = vmatprep.subr.bf16.mxu0 0
    %1121 = vmatpush1.bf16.xpose.msra.mxu0 0
    %1122 = vmatprep.subr.bf16.mxu0 0
    %1123 = vmatpush1.bf16.xpose.msra.mxu0 0
    %1124 = vmatprep.subr.bf16.mxu0 0
    %1125 = vmatpush1.bf16.xpose.msra.mxu0 0
    %1126 = vmatprep.subr.bf16.mxu0 0
    %1127 = vmatpush1.bf16.xpose.msra.mxu0 0
    %1128 = vmatprep.subr.bf16.mxu0 0
    %1129 = vmatpush1.bf16.xpose.msra.mxu0 0
    %1130 = vmatprep.subr.bf16.mxu0 0
    %1131 = vmatpush1.bf16.xpose.msra.mxu0 0
    %1132 = vmatprep.subr.bf16.mxu0 0
    %1133 = vmatpush1.bf16.xpose.msra.mxu0 0
    %1134 = vmatprep.subr.bf16.mxu0 0
    %1135 = vmatpush1.bf16.xpose.msra.mxu0 0
    %1136 = vmatprep.subr.bf16.mxu0 0
    %1137 = vmatpush1.bf16.xpose.msra.mxu0 0
    %1138 = vmatprep.subr.bf16.mxu0 0
    %1139 = vmatpush1.bf16.xpose.msra.mxu0 0
    %1140 = vmatprep.subr.bf16.mxu0 0
    %1141 = vmatpush1.bf16.xpose.msra.mxu0 0
    %1142 = vmatprep.mubr.bf16.mxu0 0
    %1143 = vmatmul.mubr.bf16.gmra.mrb[0].mxu0 %v1105
    %v1144 = vpop.f32.mrb[0].mxu0
    %v1145 = vadd.f32 0.0, %v1144
    %v1146 = vpop.f32.mrb[0].mxu0
    %v1147 = vpop.f32.mrb[0].mxu0
    %v1148 = vpop.f32.mrb[0].mxu0
    %1149 = vdwg.mxu0
    %v1150 = vunpack.c.l.b16 %v785
    %v1151 = vpack.c.b16 %v1150, %v1150
    %1152 = vrot.lane.b32.xlu0 %v1151, 64
    %v1153 = vpop.permute.xlu0 %1152
    %v1155 = vsel %vm805, %v785, 0
    %v1158 = vsel %vm805, %v1153, 0
    %1160 = vmatprep.subr.bf16.mxu0 0
    %1161 = vmatpush1.bf16.xpose.msra.mxu0 %v1158
    %1162 = vmatprep.subr.bf16.mxu0 0
    %1163 = vmatpush1.bf16.xpose.msra.mxu0 0
    %1164 = vmatprep.subr.bf16.mxu0 0
    %1165 = vmatpush1.bf16.xpose.msra.mxu0 0
    %1166 = vmatprep.subr.bf16.mxu0 0
    %1167 = vmatpush1.bf16.xpose.msra.mxu0 0
    %1168 = vmatprep.subr.bf16.mxu0 0
    %1169 = vmatpush1.bf16.xpose.msra.mxu0 0
    %1170 = vmatprep.subr.bf16.mxu0 0
    %1171 = vmatpush1.bf16.xpose.msra.mxu0 0
    %1172 = vmatprep.subr.bf16.mxu0 0
    %1173 = vmatpush1.bf16.xpose.msra.mxu0 0
    %1174 = vmatprep.subr.bf16.mxu0 0
    %1175 = vmatpush1.bf16.xpose.msra.mxu0 0
    %1176 = vmatprep.subr.bf16.mxu0 0
    %1177 = vmatpush1.bf16.xpose.msra.mxu0 0
    %1178 = vmatprep.subr.bf16.mxu0 0
    %1179 = vmatpush1.bf16.xpose.msra.mxu0 0
    %1180 = vmatprep.subr.bf16.mxu0 0
    %1181 = vmatpush1.bf16.xpose.msra.mxu0 0
    %1182 = vmatprep.subr.bf16.mxu0 0
    %1183 = vmatpush1.bf16.xpose.msra.mxu0 0
    %1184 = vmatprep.subr.bf16.mxu0 0
    %1185 = vmatpush1.bf16.xpose.msra.mxu0 0
    %1186 = vmatprep.subr.bf16.mxu0 0
    %1187 = vmatpush1.bf16.xpose.msra.mxu0 0
    %1188 = vmatprep.subr.bf16.mxu0 0
    %1189 = vmatpush1.bf16.xpose.msra.mxu0 0
    %1190 = vmatprep.subr.bf16.mxu0 0
    %1191 = vmatpush1.bf16.xpose.msra.mxu0 0
    %1192 = vmatprep.mubr.bf16.mxu0 0
    %1193 = vmatmul.mubr.bf16.gmra.mrb[0].mxu0 %v1155
    %v1194 = vpop.f32.mrb[0].mxu0
    %v1195 = vadd.f32 0.0, %v1194
    %v1196 = vpop.f32.mrb[0].mxu0
    %v1197 = vpop.f32.mrb[0].mxu0
    %v1198 = vpop.f32.mrb[0].mxu0
    %1199 = vdwg.mxu0
    %v1200 = vmul.f32 %v847, 0.25
    %v1201 = vmul.f32 %v895, 0.25
    %v1202 = vmul.f32 %v945, 0.25
    %v1203 = vmul.f32 %v995, 0.25
    %v1204 = vmul.f32 %v1045, 0.25
    %v1205 = vmul.f32 %v1095, 0.25
    %v1206 = vmul.f32 %v1145, 0.25
    %v1207 = vmul.f32 %v1195, 0.25
    %v1209 = vlaneseq
    %v1210 = vshrl.u32 %v1209, 7
    %v1211 = vsub.s32 0, %v1210
    %v1212 = vrot.slane %v613, %v1211
    %v1214 = vadd.f32 %v1200, %v1212
    %v1215 = vadd.f32 %v1201, %v1212
    %v1216 = vadd.f32 %v1202, %v1212
    %v1217 = vadd.f32 %v1203, %v1212
    %v1218 = vadd.f32 %v1204, %v1212
    %v1219 = vadd.f32 %v1205, %v1212
    %v1220 = vadd.f32 %v1206, %v1212
    %v1221 = vadd.f32 %v1207, %v1212
    %vm1222 = vcmask 64512
    %v1223 = vsel %vm1222, %v1214, -inf
    %1224 = vmax.xlane.f32.xlu0 %v1223
    %v1225 = vpop.xlane.xlu0 %1224
    %v1226 = vsel %vm1222, %v1215, -inf
    %1227 = vmax.xlane.f32.xlu0 %v1226
    %v1228 = vpop.xlane.xlu0 %1227
    %v1229 = vsel %vm1222, %v1216, -inf
    %1230 = vmax.xlane.f32.xlu0 %v1229
    %v1231 = vpop.xlane.xlu0 %1230
    %v1232 = vsel %vm1222, %v1217, -inf
    %1233 = vmax.xlane.f32.xlu0 %v1232
    %v1234 = vpop.xlane.xlu0 %1233
    %v1235 = vsel %vm1222, %v1218, -inf
    %1236 = vmax.xlane.f32.xlu0 %v1235
    %v1237 = vpop.xlane.xlu0 %1236
    %v1238 = vsel %vm1222, %v1219, -inf
    %1239 = vmax.xlane.f32.xlu0 %v1238
    %v1240 = vpop.xlane.xlu0 %1239
    %v1241 = vsel %vm1222, %v1220, -inf
    %1242 = vmax.xlane.f32.xlu0 %v1241
    %v1243 = vpop.xlane.xlu0 %1242
    %v1244 = vsel %vm1222, %v1221, -inf
    %1245 = vmax.xlane.f32.xlu0 %v1244
    %v1246 = vpop.xlane.xlu0 %1245
    %v1247 = vsub.f32 %v1214, %v1225
    %v1248 = vsub.f32 %v1215, %v1228
    %v1249 = vsub.f32 %v1216, %v1231
    %v1250 = vsub.f32 %v1217, %v1234
    %v1251 = vsub.f32 %v1218, %v1237
    %v1252 = vsub.f32 %v1219, %v1240
    %v1253 = vsub.f32 %v1220, %v1243
    %v1254 = vsub.f32 %v1221, %v1246
    %v1255 = vmul.f32 %v1247, 1.442695
    %v1256 = vpow.pop %v1255
    %v1257 = vmul.f32 %v1248, 1.442695
    %v1258 = vpow.pop %v1257
    %v1259 = vmul.f32 %v1249, 1.442695
    %v1260 = vpow.pop %v1259
    %v1261 = vmul.f32 %v1250, 1.442695
    %v1262 = vpow.pop %v1261
    %v1263 = vmul.f32 %v1251, 1.442695
    %v1264 = vpow.pop %v1263
    %v1265 = vmul.f32 %v1252, 1.442695
    %v1266 = vpow.pop %v1265
    %v1267 = vmul.f32 %v1253, 1.442695
    %v1268 = vpow.pop %v1267
    %v1269 = vmul.f32 %v1254, 1.442695
    %v1270 = vpow.pop %v1269
    %v1271 = vsel %vm1222, %v1256, 0.0
    %1272 = vadd.xlane.f32.xlu0 %v1271
    %v1273 = vpop.xlane.xlu0 %1272
    %v1274 = vsel %vm1222, %v1258, 0.0
    %1275 = vadd.xlane.f32.xlu0 %v1274
    %v1276 = vpop.xlane.xlu0 %1275
    %v1277 = vsel %vm1222, %v1260, 0.0
    %1278 = vadd.xlane.f32.xlu0 %v1277
    %v1279 = vpop.xlane.xlu0 %1278
    %v1280 = vsel %vm1222, %v1262, 0.0
    %1281 = vadd.xlane.f32.xlu0 %v1280
    %v1282 = vpop.xlane.xlu0 %1281
    %v1283 = vsel %vm1222, %v1264, 0.0
    %1284 = vadd.xlane.f32.xlu0 %v1283
    %v1285 = vpop.xlane.xlu0 %1284
    %v1286 = vsel %vm1222, %v1266, 0.0
    %1287 = vadd.xlane.f32.xlu0 %v1286
    %v1288 = vpop.xlane.xlu0 %1287
    %v1289 = vsel %vm1222, %v1268, 0.0
    %1290 = vadd.xlane.f32.xlu0 %v1289
    %v1291 = vpop.xlane.xlu0 %1290
    %v1292 = vsel %vm1222, %v1270, 0.0
    %1293 = vadd.xlane.f32.xlu0 %v1292
    %v1294 = vpop.xlane.xlu0 %1293
    %v1295 = vrcp.pop %v1273
    %v1296 = vrcp.pop %v1276
    %v1297 = vrcp.pop %v1279
    %v1298 = vrcp.pop %v1282
    %v1299 = vrcp.pop %v1285
    %v1300 = vrcp.pop %v1288
    %v1301 = vrcp.pop %v1291
    %v1302 = vrcp.pop %v1294
    %v1303 = vmul.f32 %v1256, %v1295
    %v1304 = vmul.f32 %v1258, %v1296
    %v1305 = vmul.f32 %v1260, %v1297
    %v1306 = vmul.f32 %v1262, %v1298
    %v1307 = vmul.f32 %v1264, %v1299
    %v1308 = vmul.f32 %v1266, %v1300
    %v1309 = vmul.f32 %v1268, %v1301
    %v1310 = vmul.f32 %v1270, %v1302
    %v1311 = vpack.c.bf16 %v1303, %v1303
    %v1312 = vpack.c.bf16 %v1304, %v1304
    %v1313 = vpack.c.bf16 %v1305, %v1305
    %v1314 = vpack.c.bf16 %v1306, %v1306
    %v1315 = vpack.c.bf16 %v1307, %v1307
    %v1316 = vpack.c.bf16 %v1308, %v1308
    %v1317 = vpack.c.bf16 %v1309, %v1309
    %v1318 = vpack.c.bf16 %v1310, %v1310
    %v1320 = vsel %vm1222, %v1311, 0
    %vm1322 = vcmask 1043456
    %v1324 = vsel %vm1322, %v789, 0
    %1326 = vmatprep.subr.bf16.mxu0 0
    %1327 = vmatpush1.bf16.msra.mxu0 %v1324
    %1328 = vmatprep.subr.bf16.mxu0 0
    %1329 = vmatpush1.bf16.msra.mxu0 0
    %1330 = vmatprep.subr.bf16.mxu0 0
    %1331 = vmatpush1.bf16.msra.mxu0 0
    %1332 = vmatprep.subr.bf16.mxu0 0
    %1333 = vmatpush1.bf16.msra.mxu0 0
    %1334 = vmatprep.subr.bf16.mxu0 0
    %1335 = vmatpush1.bf16.msra.mxu0 0
    %1336 = vmatprep.subr.bf16.mxu0 0
    %1337 = vmatpush1.bf16.msra.mxu0 0
    %1338 = vmatprep.subr.bf16.mxu0 0
    %1339 = vmatpush1.bf16.msra.mxu0 0
    %1340 = vmatprep.subr.bf16.mxu0 0
    %1341 = vmatpush1.bf16.msra.mxu0 0
    %1342 = vmatprep.subr.bf16.mxu0 0
    %1343 = vmatpush1.bf16.msra.mxu0 0
    %1344 = vmatprep.subr.bf16.mxu0 0
    %1345 = vmatpush1.bf16.msra.mxu0 0
    %1346 = vmatprep.subr.bf16.mxu0 0
    %1347 = vmatpush1.bf16.msra.mxu0 0
    %1348 = vmatprep.subr.bf16.mxu0 0
    %1349 = vmatpush1.bf16.msra.mxu0 0
    %1350 = vmatprep.subr.bf16.mxu0 0
    %1351 = vmatpush1.bf16.msra.mxu0 0
    %1352 = vmatprep.subr.bf16.mxu0 0
    %1353 = vmatpush1.bf16.msra.mxu0 0
    %1354 = vmatprep.subr.bf16.mxu0 0
    %1355 = vmatpush1.bf16.msra.mxu0 0
    %1356 = vmatprep.subr.bf16.mxu0 0
    %1357 = vmatpush1.bf16.msra.mxu0 0
    %1358 = vmatprep.mubr.bf16.mxu0 0
    %1359 = vmatmul.mubr.bf16.gmra.mrb[0].mxu0 %v1320
    %v1360 = vpop.f32.mrb[0].mxu0
    %v1361 = vadd.f32 0.0, %v1360
    %v1362 = vpop.f32.mrb[0].mxu0
    %v1363 = vpop.f32.mrb[0].mxu0
    %v1364 = vpop.f32.mrb[0].mxu0
    %1365 = vdwg.mxu0
    %v1367 = vsel %vm1222, %v1312, 0
    %v1370 = vsel %vm1322, %v790, 0
    %1372 = vmatprep.subr.bf16.mxu0 0
    %1373 = vmatpush1.bf16.msra.mxu0 %v1370
    %1374 = vmatprep.subr.bf16.mxu0 0
    %1375 = vmatpush1.bf16.msra.mxu0 0
    %1376 = vmatprep.subr.bf16.mxu0 0
    %1377 = vmatpush1.bf16.msra.mxu0 0
    %1378 = vmatprep.subr.bf16.mxu0 0
    %1379 = vmatpush1.bf16.msra.mxu0 0
    %1380 = vmatprep.subr.bf16.mxu0 0
    %1381 = vmatpush1.bf16.msra.mxu0 0
    %1382 = vmatprep.subr.bf16.mxu0 0
    %1383 = vmatpush1.bf16.msra.mxu0 0
    %1384 = vmatprep.subr.bf16.mxu0 0
    %1385 = vmatpush1.bf16.msra.mxu0 0
    %1386 = vmatprep.subr.bf16.mxu0 0
    %1387 = vmatpush1.bf16.msra.mxu0 0
    %1388 = vmatprep.subr.bf16.mxu0 0
    %1389 = vmatpush1.bf16.msra.mxu0 0
    %1390 = vmatprep.subr.bf16.mxu0 0
    %1391 = vmatpush1.bf16.msra.mxu0 0
    %1392 = vmatprep.subr.bf16.mxu0 0
    %1393 = vmatpush1.bf16.msra.mxu0 0
    %1394 = vmatprep.subr.bf16.mxu0 0
    %1395 = vmatpush1.bf16.msra.mxu0 0
    %1396 = vmatprep.subr.bf16.mxu0 0
    %1397 = vmatpush1.bf16.msra.mxu0 0
    %1398 = vmatprep.subr.bf16.mxu0 0
    %1399 = vmatpush1.bf16.msra.mxu0 0
    %1400 = vmatprep.subr.bf16.mxu0 0
    %1401 = vmatpush1.bf16.msra.mxu0 0
    %1402 = vmatprep.subr.bf16.mxu0 0
    %1403 = vmatpush1.bf16.msra.mxu0 0
    %1404 = vmatprep.mubr.bf16.mxu0 0
    %1405 = vmatmul.mubr.bf16.gmra.mrb[0].mxu0 %v1367
    %v1406 = vpop.f32.mrb[0].mxu0
    %v1407 = vadd.f32 0.0, %v1406
    %v1408 = vpop.f32.mrb[0].mxu0
    %v1409 = vpop.f32.mrb[0].mxu0
    %v1410 = vpop.f32.mrb[0].mxu0
    %1411 = vdwg.mxu0
    %v1413 = vsel %vm1222, %v1313, 0
    %v1416 = vsel %vm1322, %v792, 0
    %1418 = vmatprep.subr.bf16.mxu0 0
    %1419 = vmatpush1.bf16.msra.mxu0 %v1416
    %1420 = vmatprep.subr.bf16.mxu0 0
    %1421 = vmatpush1.bf16.msra.mxu0 0
    %1422 = vmatprep.subr.bf16.mxu0 0
    %1423 = vmatpush1.bf16.msra.mxu0 0
    %1424 = vmatprep.subr.bf16.mxu0 0
    %1425 = vmatpush1.bf16.msra.mxu0 0
    %1426 = vmatprep.subr.bf16.mxu0 0
    %1427 = vmatpush1.bf16.msra.mxu0 0
    %1428 = vmatprep.subr.bf16.mxu0 0
    %1429 = vmatpush1.bf16.msra.mxu0 0
    %1430 = vmatprep.subr.bf16.mxu0 0
    %1431 = vmatpush1.bf16.msra.mxu0 0
    %1432 = vmatprep.subr.bf16.mxu0 0
    %1433 = vmatpush1.bf16.msra.mxu0 0
    %1434 = vmatprep.subr.bf16.mxu0 0
    %1435 = vmatpush1.bf16.msra.mxu0 0
    %1436 = vmatprep.subr.bf16.mxu0 0
    %1437 = vmatpush1.bf16.msra.mxu0 0
    %1438 = vmatprep.subr.bf16.mxu0 0
    %1439 = vmatpush1.bf16.msra.mxu0 0
    %1440 = vmatprep.subr.bf16.mxu0 0
    %1441 = vmatpush1.bf16.msra.mxu0 0
    %1442 = vmatprep.subr.bf16.mxu0 0
    %1443 = vmatpush1.bf16.msra.mxu0 0
    %1444 = vmatprep.subr.bf16.mxu0 0
    %1445 = vmatpush1.bf16.msra.mxu0 0
    %1446 = vmatprep.subr.bf16.mxu0 0
    %1447 = vmatpush1.bf16.msra.mxu0 0
    %1448 = vmatprep.subr.bf16.mxu0 0
    %1449 = vmatpush1.bf16.msra.mxu0 0
    %1450 = vmatprep.mubr.bf16.mxu0 0
    %1451 = vmatmul.mubr.bf16.gmra.mrb[0].mxu0 %v1413
    %v1452 = vpop.f32.mrb[0].mxu0
    %v1453 = vadd.f32 0.0, %v1452
    %v1454 = vpop.f32.mrb[0].mxu0
    %v1455 = vpop.f32.mrb[0].mxu0
    %v1456 = vpop.f32.mrb[0].mxu0
    %1457 = vdwg.mxu0
    %v1459 = vsel %vm1222, %v1314, 0
    %v1462 = vsel %vm1322, %v794, 0
    %1464 = vmatprep.subr.bf16.mxu0 0
    %1465 = vmatpush1.bf16.msra.mxu0 %v1462
    %1466 = vmatprep.subr.bf16.mxu0 0
    %1467 = vmatpush1.bf16.msra.mxu0 0
    %1468 = vmatprep.subr.bf16.mxu0 0
    %1469 = vmatpush1.bf16.msra.mxu0 0
    %1470 = vmatprep.subr.bf16.mxu0 0
    %1471 = vmatpush1.bf16.msra.mxu0 0
    %1472 = vmatprep.subr.bf16.mxu0 0
    %1473 = vmatpush1.bf16.msra.mxu0 0
    %1474 = vmatprep.subr.bf16.mxu0 0
    %1475 = vmatpush1.bf16.msra.mxu0 0
    %1476 = vmatprep.subr.bf16.mxu0 0
    %1477 = vmatpush1.bf16.msra.mxu0 0
    %1478 = vmatprep.subr.bf16.mxu0 0
    %1479 = vmatpush1.bf16.msra.mxu0 0
    %1480 = vmatprep.subr.bf16.mxu0 0
    %1481 = vmatpush1.bf16.msra.mxu0 0
    %1482 = vmatprep.subr.bf16.mxu0 0
    %1483 = vmatpush1.bf16.msra.mxu0 0
    %1484 = vmatprep.subr.bf16.mxu0 0
    %1485 = vmatpush1.bf16.msra.mxu0 0
    %1486 = vmatprep.subr.bf16.mxu0 0
    %1487 = vmatpush1.bf16.msra.mxu0 0
    %1488 = vmatprep.subr.bf16.mxu0 0
    %1489 = vmatpush1.bf16.msra.mxu0 0
    %1490 = vmatprep.subr.bf16.mxu0 0
    %1491 = vmatpush1.bf16.msra.mxu0 0
    %1492 = vmatprep.subr.bf16.mxu0 0
    %1493 = vmatpush1.bf16.msra.mxu0 0
    %1494 = vmatprep.subr.bf16.mxu0 0
    %1495 = vmatpush1.bf16.msra.mxu0 0
    %1496 = vmatprep.mubr.bf16.mxu0 0
    %1497 = vmatmul.mubr.bf16.gmra.mrb[0].mxu0 %v1459
    %v1498 = vpop.f32.mrb[0].mxu0
    %v1499 = vadd.f32 0.0, %v1498
    %v1500 = vpop.f32.mrb[0].mxu0
    %v1501 = vpop.f32.mrb[0].mxu0
    %v1502 = vpop.f32.mrb[0].mxu0
    %1503 = vdwg.mxu0
    %v1505 = vsel %vm1222, %v1315, 0
    %v1508 = vsel %vm1322, %v796, 0
    %1510 = vmatprep.subr.bf16.mxu0 0
    %1511 = vmatpush1.bf16.msra.mxu0 %v1508
    %1512 = vmatprep.subr.bf16.mxu0 0
    %1513 = vmatpush1.bf16.msra.mxu0 0
    %1514 = vmatprep.subr.bf16.mxu0 0
    %1515 = vmatpush1.bf16.msra.mxu0 0
    %1516 = vmatprep.subr.bf16.mxu0 0
    %1517 = vmatpush1.bf16.msra.mxu0 0
    %1518 = vmatprep.subr.bf16.mxu0 0
    %1519 = vmatpush1.bf16.msra.mxu0 0
    %1520 = vmatprep.subr.bf16.mxu0 0
    %1521 = vmatpush1.bf16.msra.mxu0 0
    %1522 = vmatprep.subr.bf16.mxu0 0
    %1523 = vmatpush1.bf16.msra.mxu0 0
    %1524 = vmatprep.subr.bf16.mxu0 0
    %1525 = vmatpush1.bf16.msra.mxu0 0
    %1526 = vmatprep.subr.bf16.mxu0 0
    %1527 = vmatpush1.bf16.msra.mxu0 0
    %1528 = vmatprep.subr.bf16.mxu0 0
    %1529 = vmatpush1.bf16.msra.mxu0 0
    %1530 = vmatprep.subr.bf16.mxu0 0
    %1531 = vmatpush1.bf16.msra.mxu0 0
    %1532 = vmatprep.subr.bf16.mxu0 0
    %1533 = vmatpush1.bf16.msra.mxu0 0
    %1534 = vmatprep.subr.bf16.mxu0 0
    %1535 = vmatpush1.bf16.msra.mxu0 0
    %1536 = vmatprep.subr.bf16.mxu0 0
    %1537 = vmatpush1.bf16.msra.mxu0 0
    %1538 = vmatprep.subr.bf16.mxu0 0
    %1539 = vmatpush1.bf16.msra.mxu0 0
    %1540 = vmatprep.subr.bf16.mxu0 0
    %1541 = vmatpush1.bf16.msra.mxu0 0
    %1542 = vmatprep.mubr.bf16.mxu0 0
    %1543 = vmatmul.mubr.bf16.gmra.mrb[0].mxu0 %v1505
    %v1544 = vpop.f32.mrb[0].mxu0
    %v1545 = vadd.f32 0.0, %v1544
    %v1546 = vpop.f32.mrb[0].mxu0
    %v1547 = vpop.f32.mrb[0].mxu0
    %v1548 = vpop.f32.mrb[0].mxu0
    %1549 = vdwg.mxu0
    %v1551 = vsel %vm1222, %v1316, 0
    %v1554 = vsel %vm1322, %v798, 0
    %1556 = vmatprep.subr.bf16.mxu0 0
    %1557 = vmatpush1.bf16.msra.mxu0 %v1554
    %1558 = vmatprep.subr.bf16.mxu0 0
    %1559 = vmatpush1.bf16.msra.mxu0 0
    %1560 = vmatprep.subr.bf16.mxu0 0
    %1561 = vmatpush1.bf16.msra.mxu0 0
    %1562 = vmatprep.subr.bf16.mxu0 0
    %1563 = vmatpush1.bf16.msra.mxu0 0
    %1564 = vmatprep.subr.bf16.mxu0 0
    %1565 = vmatpush1.bf16.msra.mxu0 0
    %1566 = vmatprep.subr.bf16.mxu0 0
    %1567 = vmatpush1.bf16.msra.mxu0 0
    %1568 = vmatprep.subr.bf16.mxu0 0
    %1569 = vmatpush1.bf16.msra.mxu0 0
    %1570 = vmatprep.subr.bf16.mxu0 0
    %1571 = vmatpush1.bf16.msra.mxu0 0
    %1572 = vmatprep.subr.bf16.mxu0 0
    %1573 = vmatpush1.bf16.msra.mxu0 0
    %1574 = vmatprep.subr.bf16.mxu0 0
    %1575 = vmatpush1.bf16.msra.mxu0 0
    %1576 = vmatprep.subr.bf16.mxu0 0
    %1577 = vmatpush1.bf16.msra.mxu0 0
    %1578 = vmatprep.subr.bf16.mxu0 0
    %1579 = vmatpush1.bf16.msra.mxu0 0
    %1580 = vmatprep.subr.bf16.mxu0 0
    %1581 = vmatpush1.bf16.msra.mxu0 0
    %1582 = vmatprep.subr.bf16.mxu0 0
    %1583 = vmatpush1.bf16.msra.mxu0 0
    %1584 = vmatprep.subr.bf16.mxu0 0
    %1585 = vmatpush1.bf16.msra.mxu0 0
    %1586 = vmatprep.subr.bf16.mxu0 0
    %1587 = vmatpush1.bf16.msra.mxu0 0
    %1588 = vmatprep.mubr.bf16.mxu0 0
    %1589 = vmatmul.mubr.bf16.gmra.mrb[0].mxu0 %v1551
    %v1590 = vpop.f32.mrb[0].mxu0
    %v1591 = vadd.f32 0.0, %v1590
    %v1592 = vpop.f32.mrb[0].mxu0
    %v1593 = vpop.f32.mrb[0].mxu0
    %v1594 = vpop.f32.mrb[0].mxu0
    %1595 = vdwg.mxu0
    %v1597 = vsel %vm1222, %v1317, 0
    %v1600 = vsel %vm1322, %v800, 0
    %1602 = vmatprep.subr.bf16.mxu0 0
    %1603 = vmatpush1.bf16.msra.mxu0 %v1600
    %1604 = vmatprep.subr.bf16.mxu0 0
    %1605 = vmatpush1.bf16.msra.mxu0 0
    %1606 = vmatprep.subr.bf16.mxu0 0
    %1607 = vmatpush1.bf16.msra.mxu0 0
    %1608 = vmatprep.subr.bf16.mxu0 0
    %1609 = vmatpush1.bf16.msra.mxu0 0
    %1610 = vmatprep.subr.bf16.mxu0 0
    %1611 = vmatpush1.bf16.msra.mxu0 0
    %1612 = vmatprep.subr.bf16.mxu0 0
    %1613 = vmatpush1.bf16.msra.mxu0 0
    %1614 = vmatprep.subr.bf16.mxu0 0
    %1615 = vmatpush1.bf16.msra.mxu0 0
    %1616 = vmatprep.subr.bf16.mxu0 0
    %1617 = vmatpush1.bf16.msra.mxu0 0
    %1618 = vmatprep.subr.bf16.mxu0 0
    %1619 = vmatpush1.bf16.msra.mxu0 0
    %1620 = vmatprep.subr.bf16.mxu0 0
    %1621 = vmatpush1.bf16.msra.mxu0 0
    %1622 = vmatprep.subr.bf16.mxu0 0
    %1623 = vmatpush1.bf16.msra.mxu0 0
    %1624 = vmatprep.subr.bf16.mxu0 0
    %1625 = vmatpush1.bf16.msra.mxu0 0
    %1626 = vmatprep.subr.bf16.mxu0 0
    %1627 = vmatpush1.bf16.msra.mxu0 0
    %1628 = vmatprep.subr.bf16.mxu0 0
    %1629 = vmatpush1.bf16.msra.mxu0 0
    %1630 = vmatprep.subr.bf16.mxu0 0
    %1631 = vmatpush1.bf16.msra.mxu0 0
    %1632 = vmatprep.subr.bf16.mxu0 0
    %1633 = vmatpush1.bf16.msra.mxu0 0
    %1634 = vmatprep.mubr.bf16.mxu0 0
    %1635 = vmatmul.mubr.bf16.gmra.mrb[0].mxu0 %v1597
    %v1636 = vpop.f32.mrb[0].mxu0
    %v1637 = vadd.f32 0.0, %v1636
    %v1638 = vpop.f32.mrb[0].mxu0
    %v1639 = vpop.f32.mrb[0].mxu0
    %v1640 = vpop.f32.mrb[0].mxu0
    %1641 = vdwg.mxu0
    %v1643 = vsel %vm1222, %v1318, 0
    %v1646 = vsel %vm1322, %v802, 0
    %1648 = vmatprep.subr.bf16.mxu0 0
    %1649 = vmatpush1.bf16.msra.mxu0 %v1646
    %1650 = vmatprep.subr.bf16.mxu0 0
    %1651 = vmatpush1.bf16.msra.mxu0 0
    %1652 = vmatprep.subr.bf16.mxu0 0
    %1653 = vmatpush1.bf16.msra.mxu0 0
    %1654 = vmatprep.subr.bf16.mxu0 0
    %1655 = vmatpush1.bf16.msra.mxu0 0
    %1656 = vmatprep.subr.bf16.mxu0 0
    %1657 = vmatpush1.bf16.msra.mxu0 0
    %1658 = vmatprep.subr.bf16.mxu0 0
    %1659 = vmatpush1.bf16.msra.mxu0 0
    %1660 = vmatprep.subr.bf16.mxu0 0
    %1661 = vmatpush1.bf16.msra.mxu0 0
    %1662 = vmatprep.subr.bf16.mxu0 0
    %1663 = vmatpush1.bf16.msra.mxu0 0
    %1664 = vmatprep.subr.bf16.mxu0 0
    %1665 = vmatpush1.bf16.msra.mxu0 0
    %1666 = vmatprep.subr.bf16.mxu0 0
    %1667 = vmatpush1.bf16.msra.mxu0 0
    %1668 = vmatprep.subr.bf16.mxu0 0
    %1669 = vmatpush1.bf16.msra.mxu0 0
    %1670 = vmatprep.subr.bf16.mxu0 0
    %1671 = vmatpush1.bf16.msra.mxu0 0
    %1672 = vmatprep.subr.bf16.mxu0 0
    %1673 = vmatpush1.bf16.msra.mxu0 0
    %1674 = vmatprep.subr.bf16.mxu0 0
    %1675 = vmatpush1.bf16.msra.mxu0 0
    %1676 = vmatprep.subr.bf16.mxu0 0
    %1677 = vmatpush1.bf16.msra.mxu0 0
    %1678 = vmatprep.subr.bf16.mxu0 0
    %1679 = vmatpush1.bf16.msra.mxu0 0
    %1680 = vmatprep.mubr.bf16.mxu0 0
    %1681 = vmatmul.mubr.bf16.gmra.mrb[0].mxu0 %v1643
    %v1682 = vpop.f32.mrb[0].mxu0
    %v1683 = vadd.f32 0.0, %v1682
    %v1684 = vpop.f32.mrb[0].mxu0
    %v1685 = vpop.f32.mrb[0].mxu0
    %v1686 = vpop.f32.mrb[0].mxu0
    %1687 = vdwg.mxu0
    %1690 = vrot.lane.b32.xlu0 %v1453, 16
    %v1691 = vpop.permute.xlu0 %1690
    %1692 = vrot.lane.b32.xlu0 %v1499, 16
    %v1693 = vpop.permute.xlu0 %1692
    %1698 = vrot.lane.b32.xlu0 %v1545, 32
    %v1699 = vpop.permute.xlu0 %1698
    %1700 = vrot.lane.b32.xlu0 %v1591, 32
    %v1701 = vpop.permute.xlu0 %1700
    %1706 = vrot.lane.b32.xlu0 %v1637, 48
    %v1707 = vpop.permute.xlu0 %1706
    %1708 = vrot.lane.b32.xlu0 %v1683, 48
    %v1709 = vpop.permute.xlu0 %1708
    %v1712 = vsel %vm805, %v1361, %v1691
    %v1713 = vsel %vm805, %v1407, %v1693
    %vm1714 = vcmask 261120
    %v1715 = vsel %vm1714, %v1712, %v1699
    %v1716 = vsel %vm1714, %v1713, %v1701
    %vm1717 = vcmask 392192
    %v1718 = vsel %vm1717, %v1715, %v1707
    %v1719 = vsel %vm1717, %v1716, %v1709
    %v1720 = vpack.c.bf16 %v1719, %v1718
    %v1721 = vld [vmem:[%s8] sm:$0xf]
    %v1722 = vld [vmem:[%s8 + $0x4] sm:$0xf]
    %v1723 = vld [vmem:[%s8 + $0x8] sm:$0xf]
    %v1724 = vld [vmem:[%s8 + $0xc] sm:$0xf]
    %v1725 = vld [vmem:[%s8 + $0x10] sm:$0xf]
    %v1726 = vld [vmem:[%s8 + $0x14] sm:$0xf]
    %v1727 = vld [vmem:[%s8 + $0x18] sm:$0xf]
    %v1728 = vld [vmem:[%s8 + $0x1c] sm:$0xf]
    %v1729 = vld [vmem:[%s9] sm:$0x1]
    %v1731 = vlaneseq
    %v1732 = vshrl.u32 %v1731, 7
    %v1733 = vsub.s32 0, %v1732
    %v1734 = vrot.slane %v1729, %v1733
    %v1744 = vunpack.c.l.b16 %v1721
    %v1745 = vunpack.c.l.b16 %v1722
    %v1746 = vunpack.c.l.b16 %v1723
    %v1747 = vunpack.c.l.b16 %v1724
    %v1748 = vunpack.c.l.b16 %v1725
    %v1749 = vunpack.c.l.b16 %v1726
    %v1750 = vunpack.c.l.b16 %v1727
    %v1751 = vunpack.c.l.b16 %v1728
    %v1752 = vpack.c.b16 %v1745, %v1744
    %v1753 = vpack.c.b16 %v1747, %v1746
    %v1754 = vpack.c.b16 %v1749, %v1748
    %v1755 = vpack.c.b16 %v1751, %v1750
    %v1761 = vsel %vm616, %v1720, 0
    %1763 = vmatprep.subr.bf16.mxu0 0
    %1764 = vmatpush1.bf16.msra.mxu0 %v1752
    %1765 = vmatprep.subr.bf16.mxu0 0
    %1766 = vmatpush1.bf16.msra.mxu0 %v1753
    %1767 = vmatprep.subr.bf16.mxu0 0
    %1768 = vmatpush1.bf16.msra.mxu0 %v1754
    %1769 = vmatprep.subr.bf16.mxu0 0
    %1770 = vmatpush1.bf16.msra.mxu0 %v1755
    %1771 = vmatprep.subr.bf16.mxu0 0
    %1772 = vmatpush1.bf16.msra.mxu0 0
    %1773 = vmatprep.subr.bf16.mxu0 0
    %1774 = vmatpush1.bf16.msra.mxu0 0
    %1775 = vmatprep.subr.bf16.mxu0 0
    %1776 = vmatpush1.bf16.msra.mxu0 0
    %1777 = vmatprep.subr.bf16.mxu0 0
    %1778 = vmatpush1.bf16.msra.mxu0 0
    %1779 = vmatprep.subr.bf16.mxu0 0
    %1780 = vmatpush1.bf16.msra.mxu0 0
    %1781 = vmatprep.subr.bf16.mxu0 0
    %1782 = vmatpush1.bf16.msra.mxu0 0
    %1783 = vmatprep.subr.bf16.mxu0 0
    %1784 = vmatpush1.bf16.msra.mxu0 0
    %1785 = vmatprep.subr.bf16.mxu0 0
    %1786 = vmatpush1.bf16.msra.mxu0 0
    %1787 = vmatprep.subr.bf16.mxu0 0
    %1788 = vmatpush1.bf16.msra.mxu0 0
    %1789 = vmatprep.subr.bf16.mxu0 0
    %1790 = vmatpush1.bf16.msra.mxu0 0
    %1791 = vmatprep.subr.bf16.mxu0 0
    %1792 = vmatpush1.bf16.msra.mxu0 0
    %1793 = vmatprep.subr.bf16.mxu0 0
    %1794 = vmatpush1.bf16.msra.mxu0 0
    %1795 = vmatprep.mubr.bf16.mxu0 0
    %1796 = vmatmul.mubr.bf16.gmra.mrb[0].mxu0 %v1761
    %v1797 = vpop.f32.mrb[0].mxu0
    %v1798 = vadd.f32 %v1734, %v1797
    %v1799 = vpop.f32.mrb[0].mxu0
    %v1800 = vpop.f32.mrb[0].mxu0
    %v1801 = vadd.f32 %v1734, %v1800
    %v1802 = vpop.f32.mrb[0].mxu0
    %1803 = vdwg.mxu0
    %v1804 = vadd.f32 %v611, %v1798
    %v1805 = vadd.f32 %v612, %v1801
    %v1806 = vld [vmem:[%s10] sm:$0x1]
    %v1807 = vld [vmem:[%s11] sm:$0x1]
    %v1808 = vsel %vm616, %v1804, 0.0
    %1809 = vadd.xlane.f32.xlu0 %v1808
    %v1810 = vpop.xlane.xlu0 %1809
    %v1811 = vsel %vm616, %v1805, 0.0
    %1812 = vadd.xlane.f32.xlu0 %v1811
    %v1813 = vpop.xlane.xlu0 %1812
    %v1814 = vmul.f32 %v1810, %v623
    %v1815 = vmul.f32 %v1813, %v623
    %v1816 = vsub.f32 %v1804, %v1814
    %v1817 = vsub.f32 %v1805, %v1815
    %v1818 = vmul.f32 %v1816, %v1816
    %v1819 = vmul.f32 %v1817, %v1817
    %v1820 = vsel %vm616, %v1818, 0.0
    %1821 = vadd.xlane.f32.xlu0 %v1820
    %v1822 = vpop.xlane.xlu0 %1821
    %v1823 = vsel %vm616, %v1819, 0.0
    %1824 = vadd.xlane.f32.xlu0 %v1823
    %v1825 = vpop.xlane.xlu0 %1824
    %v1826 = vmul.f32 %v1822, %v623
    %v1827 = vmul.f32 %v1825, %v623
    %v1828 = vadd.f32 %v1826, 1e-12
    %v1829 = vadd.f32 %v1827, 1e-12
    %v1830 = vrsqrt.pop %v1828
    %v1831 = vrsqrt.pop %v1829
    %v1832 = vmul.f32 %v1816, %v1830
    %v1833 = vmul.f32 %v1817, %v1831
    %v1835 = vlaneseq
    %v1836 = vshrl.u32 %v1835, 7
    %v1837 = vsub.s32 0, %v1836
    %v1838 = vrot.slane %v1806, %v1837
    %v1840 = vmul.f32 %v1832, %v1838
    %v1841 = vmul.f32 %v1833, %v1838
    %v1843 = vlaneseq
    %v1844 = vshrl.u32 %v1843, 7
    %v1845 = vsub.s32 0, %v1844
    %v1846 = vrot.slane %v1807, %v1845
    %v1848 = vadd.f32 %v1840, %v1846
    %v1849 = vadd.f32 %v1841, %v1846
    %v1850 = vpack.c.bf16 %v1849, %v1848
    %v1851 = vld [vmem:[%s12] sm:$0xf]
    %v1852 = vld [vmem:[%s12 + $0x4] sm:$0xf]
    %v1853 = vld [vmem:[%s12 + $0x8] sm:$0xf]
    %v1854 = vld [vmem:[%s12 + $0xc] sm:$0xf]
    %v1855 = vld [vmem:[%s12 + $0x10] sm:$0xf]
    %v1856 = vld [vmem:[%s12 + $0x14] sm:$0xf]
    %v1857 = vld [vmem:[%s12 + $0x18] sm:$0xf]
    %v1858 = vld [vmem:[%s12 + $0x1c] sm:$0xf]
    %v1859 = vld [vmem:[%s13] sm:$0x1]
    %v1861 = vlaneseq
    %v1862 = vshrl.u32 %v1861, 7
    %v1863 = vsub.s32 0, %v1862
    %v1864 = vrot.slane %v1859, %v1863
    %v1874 = vunpack.c.l.b16 %v1851
    %v1875 = vunpack.c.l.b16 %v1852
    %v1876 = vunpack.c.l.b16 %v1853
    %v1877 = vunpack.c.l.b16 %v1854
    %v1878 = vunpack.c.l.b16 %v1855
    %v1879 = vunpack.c.l.b16 %v1856
    %v1880 = vunpack.c.l.b16 %v1857
    %v1881 = vunpack.c.l.b16 %v1858
    %v1882 = vpack.c.b16 %v1875, %v1874
    %v1883 = vpack.c.b16 %v1877, %v1876
    %v1884 = vpack.c.b16 %v1879, %v1878
    %v1885 = vpack.c.b16 %v1881, %v1880
    %v1891 = vsel %vm616, %v1850, 0
    %1893 = vmatprep.subr.bf16.mxu0 0
    %1894 = vmatpush1.bf16.msra.mxu0 %v1882
    %1895 = vmatprep.subr.bf16.mxu0 0
    %1896 = vmatpush1.bf16.msra.mxu0 %v1883
    %1897 = vmatprep.subr.bf16.mxu0 0
    %1898 = vmatpush1.bf16.msra.mxu0 %v1884
    %1899 = vmatprep.subr.bf16.mxu0 0
    %1900 = vmatpush1.bf16.msra.mxu0 %v1885
    %1901 = vmatprep.subr.bf16.mxu0 0
    %1902 = vmatpush1.bf16.msra.mxu0 0
    %1903 = vmatprep.subr.bf16.mxu0 0
    %1904 = vmatpush1.bf16.msra.mxu0 0
    %1905 = vmatprep.subr.bf16.mxu0 0
    %1906 = vmatpush1.bf16.msra.mxu0 0
    %1907 = vmatprep.subr.bf16.mxu0 0
    %1908 = vmatpush1.bf16.msra.mxu0 0
    %1909 = vmatprep.subr.bf16.mxu0 0
    %1910 = vmatpush1.bf16.msra.mxu0 0
    %1911 = vmatprep.subr.bf16.mxu0 0
    %1912 = vmatpush1.bf16.msra.mxu0 0
    %1913 = vmatprep.subr.bf16.mxu0 0
    %1914 = vmatpush1.bf16.msra.mxu0 0
    %1915 = vmatprep.subr.bf16.mxu0 0
    %1916 = vmatpush1.bf16.msra.mxu0 0
    %1917 = vmatprep.subr.bf16.mxu0 0
    %1918 = vmatpush1.bf16.msra.mxu0 0
    %1919 = vmatprep.subr.bf16.mxu0 0
    %1920 = vmatpush1.bf16.msra.mxu0 0
    %1921 = vmatprep.subr.bf16.mxu0 0
    %1922 = vmatpush1.bf16.msra.mxu0 0
    %1923 = vmatprep.subr.bf16.mxu0 0
    %1924 = vmatpush1.bf16.msra.mxu0 0
    %1925 = vmatprep.mubr.bf16.mxu0 0
    %1926 = vmatmul.mubr.bf16.gmra.mrb[0].mxu0 %v1891
    %v1927 = vpop.f32.mrb[0].mxu0
    %v1928 = vadd.f32 %v1864, %v1927
    %v1929 = vpop.f32.mrb[0].mxu0
    %v1930 = vpop.f32.mrb[0].mxu0
    %v1931 = vadd.f32 %v1864, %v1930
    %v1932 = vpop.f32.mrb[0].mxu0
    %1933 = vdwg.mxu0
    %v1934 = vmul.f32 %v1928, %v1928
    %v1935 = vmul.f32 %v1931, %v1931
    %v1936 = vmul.f32 %v1928, %v1934
    %v1937 = vmul.f32 %v1931, %v1935
    %v1938 = vmul.f32 %v1936, 0.044715
    %v1939 = vmul.f32 %v1937, 0.044715
    %v1940 = vadd.f32 %v1928, %v1938
    %v1941 = vadd.f32 %v1931, %v1939
    %v1942 = vmul.f32 %v1940, 0.7978846
    %v1943 = vmul.f32 %v1941, 0.7978846
    %v1944 = vtanh.pop %v1942
    %v1945 = vtanh.pop %v1943
    %v1946 = vadd.f32 %v1944, 1.0
    %v1947 = vadd.f32 %v1945, 1.0
    %v1948 = vmul.f32 %v1946, 0.5
    %v1949 = vmul.f32 %v1947, 0.5
    %v1950 = vmul.f32 %v1928, %v1948
    %v1951 = vmul.f32 %v1931, %v1949
    %v1952 = vpack.c.bf16 %v1951, %v1950
    %v1953 = vld [vmem:[%s14] sm:$0xf]
    %v1954 = vld [vmem:[%s14 + $0x4] sm:$0xf]
    %v1955 = vld [vmem:[%s14 + $0x8] sm:$0xf]
    %v1956 = vld [vmem:[%s14 + $0xc] sm:$0xf]
    %v1957 = vld [vmem:[%s14 + $0x10] sm:$0xf]
    %v1958 = vld [vmem:[%s14 + $0x14] sm:$0xf]
    %v1959 = vld [vmem:[%s14 + $0x18] sm:$0xf]
    %v1960 = vld [vmem:[%s14 + $0x1c] sm:$0xf]
    %v1961 = vld [vmem:[%s14 + $0x20] sm:$0xf]
    %v1962 = vld [vmem:[%s14 + $0x24] sm:$0xf]
    %v1963 = vld [vmem:[%s14 + $0x28] sm:$0xf]
    %v1964 = vld [vmem:[%s14 + $0x2c] sm:$0xf]
    %v1965 = vld [vmem:[%s14 + $0x30] sm:$0xf]
    %v1966 = vld [vmem:[%s14 + $0x34] sm:$0xf]
    %v1967 = vld [vmem:[%s14 + $0x38] sm:$0xf]
    %v1968 = vld [vmem:[%s14 + $0x3c] sm:$0xf]
    %v1969 = vld [vmem:[%s15] sm:$0x1]
    %v1971 = vlaneseq
    %v1972 = vshrl.u32 %v1971, 7
    %v1973 = vsub.s32 0, %v1972
    %v1974 = vrot.slane %v1969, %v1973
    %v1992 = vunpack.c.l.b16 %v1953
    %v1993 = vunpack.c.l.b16 %v1954
    %v1994 = vunpack.c.l.b16 %v1955
    %v1995 = vunpack.c.l.b16 %v1956
    %v1996 = vunpack.c.l.b16 %v1957
    %v1997 = vunpack.c.l.b16 %v1958
    %v1998 = vunpack.c.l.b16 %v1959
    %v1999 = vunpack.c.l.b16 %v1960
    %v2000 = vunpack.c.l.b16 %v1961
    %v2001 = vunpack.c.l.b16 %v1962
    %v2002 = vunpack.c.l.b16 %v1963
    %v2003 = vunpack.c.l.b16 %v1964
    %v2004 = vunpack.c.l.b16 %v1965
    %v2005 = vunpack.c.l.b16 %v1966
    %v2006 = vunpack.c.l.b16 %v1967
    %v2007 = vunpack.c.l.b16 %v1968
    %v2008 = vpack.c.b16 %v1993, %v1992
    %v2009 = vpack.c.b16 %v1995, %v1994
    %v2010 = vpack.c.b16 %v1997, %v1996
    %v2011 = vpack.c.b16 %v1999, %v1998
    %v2012 = vpack.c.b16 %v2001, %v2000
    %v2013 = vpack.c.b16 %v2003, %v2002
    %v2014 = vpack.c.b16 %v2005, %v2004
    %v2015 = vpack.c.b16 %v2007, %v2006
    %2024 = vmatprep.subr.bf16.mxu0 0
    %2025 = vmatpush1.bf16.msra.mxu0 %v2008
    %2026 = vmatprep.subr.bf16.mxu0 0
    %2027 = vmatpush1.bf16.msra.mxu0 %v2009
    %2028 = vmatprep.subr.bf16.mxu0 0
    %2029 = vmatpush1.bf16.msra.mxu0 %v2010
    %2030 = vmatprep.subr.bf16.mxu0 0
    %2031 = vmatpush1.bf16.msra.mxu0 %v2011
    %2032 = vmatprep.subr.bf16.mxu0 0
    %2033 = vmatpush1.bf16.msra.mxu0 %v2012
    %2034 = vmatprep.subr.bf16.mxu0 0
    %2035 = vmatpush1.bf16.msra.mxu0 %v2013
    %2036 = vmatprep.subr.bf16.mxu0 0
    %2037 = vmatpush1.bf16.msra.mxu0 %v2014
    %2038 = vmatprep.subr.bf16.mxu0 0
    %2039 = vmatpush1.bf16.msra.mxu0 %v2015
    %2040 = vmatprep.subr.bf16.mxu0 0
    %2041 = vmatpush1.bf16.msra.mxu0 0
    %2042 = vmatprep.subr.bf16.mxu0 0
    %2043 = vmatpush1.bf16.msra.mxu0 0
    %2044 = vmatprep.subr.bf16.mxu0 0
    %2045 = vmatpush1.bf16.msra.mxu0 0
    %2046 = vmatprep.subr.bf16.mxu0 0
    %2047 = vmatpush1.bf16.msra.mxu0 0
    %2048 = vmatprep.subr.bf16.mxu0 0
    %2049 = vmatpush1.bf16.msra.mxu0 0
    %2050 = vmatprep.subr.bf16.mxu0 0
    %2051 = vmatpush1.bf16.msra.mxu0 0
    %2052 = vmatprep.subr.bf16.mxu0 0
    %2053 = vmatpush1.bf16.msra.mxu0 0
    %2054 = vmatprep.subr.bf16.mxu0 0
    %2055 = vmatpush1.bf16.msra.mxu0 0
    %2056 = vmatprep.mubr.bf16.mxu0 0
    %2057 = vmatmul.mubr.bf16.gmra.mrb[0].mxu0 %v1952
    %v2058 = vpop.f32.mrb[0].mxu0
    %v2059 = vadd.f32 %v1974, %v2058
    %v2060 = vpop.f32.mrb[0].mxu0
    %v2061 = vpop.f32.mrb[0].mxu0
    %v2062 = vadd.f32 %v1974, %v2061
    %v2063 = vpop.f32.mrb[0].mxu0
    %2064 = vdwg.mxu0
    %v2065 = vadd.f32 %v1804, %v2059
    %v2066 = vadd.f32 %v1805, %v2062
    %s2067 = scalar_lea.vmem %s4, 1
    %v2068 = vld [vmem:[%s2067] sm:$0x1]
    %s2069 = scalar_lea.vmem %s5, 1
    %v2070 = vld [vmem:[%s2069] sm:$0x1]
    %v2071 = vsel %vm616, %v2065, 0.0
    %2072 = vadd.xlane.f32.xlu0 %v2071
    %v2073 = vpop.xlane.xlu0 %2072
    %v2074 = vsel %vm616, %v2066, 0.0
    %2075 = vadd.xlane.f32.xlu0 %v2074
    %v2076 = vpop.xlane.xlu0 %2075
    %v2077 = vmul.f32 %v2073, %v623
    %v2078 = vmul.f32 %v2076, %v623
    %v2079 = vsub.f32 %v2065, %v2077
    %v2080 = vsub.f32 %v2066, %v2078
    %v2081 = vmul.f32 %v2079, %v2079
    %v2082 = vmul.f32 %v2080, %v2080
    %v2083 = vsel %vm616, %v2081, 0.0
    %2084 = vadd.xlane.f32.xlu0 %v2083
    %v2085 = vpop.xlane.xlu0 %2084
    %v2086 = vsel %vm616, %v2082, 0.0
    %2087 = vadd.xlane.f32.xlu0 %v2086
    %v2088 = vpop.xlane.xlu0 %2087
    %v2089 = vmul.f32 %v2085, %v623
    %v2090 = vmul.f32 %v2088, %v623
    %v2091 = vadd.f32 %v2089, 1e-12
    %v2092 = vadd.f32 %v2090, 1e-12
    %v2093 = vrsqrt.pop %v2091
    %v2094 = vrsqrt.pop %v2092
    %v2095 = vmul.f32 %v2079, %v2093
    %v2096 = vmul.f32 %v2080, %v2094
    %v2098 = vlaneseq
    %v2099 = vshrl.u32 %v2098, 7
    %v2100 = vsub.s32 0, %v2099
    %v2101 = vrot.slane %v2068, %v2100
    %v2103 = vmul.f32 %v2095, %v2101
    %v2104 = vmul.f32 %v2096, %v2101
    %v2106 = vlaneseq
    %v2107 = vshrl.u32 %v2106, 7
    %v2108 = vsub.s32 0, %v2107
    %v2109 = vrot.slane %v2070, %v2108
    %v2111 = vadd.f32 %v2103, %v2109
    %v2112 = vadd.f32 %v2104, %v2109
    %v2113 = vpack.c.bf16 %v2112, %v2111
    %s2114 = scalar_lea.vmem %s6, 64
    %v2115 = vld [vmem:[%s2114] sm:$0xff]
    %v2116 = vld [vmem:[%s2114 + $0x8] sm:$0xff]
    %v2117 = vld [vmem:[%s2114 + $0x10] sm:$0xff]
    %v2118 = vld [vmem:[%s2114 + $0x18] sm:$0xff]
    %v2119 = vld [vmem:[%s2114 + $0x20] sm:$0xff]
    %v2120 = vld [vmem:[%s2114 + $0x28] sm:$0xff]
    %v2121 = vld [vmem:[%s2114 + $0x30] sm:$0xff]
    %v2122 = vld [vmem:[%s2114 + $0x38] sm:$0xff]
    %s2123 = scalar_lea.vmem %s7, 2
    %v2124 = vld [vmem:[%s2123] sm:$0x3]
    %v2126 = vlaneseq
    %v2127 = vshrl.u32 %v2126, 7
    %v2128 = vsub.s32 0, %v2127
    %v2129 = vrot.slane %v2124, %v2128
    %v2130 = vlaneseq
    %v2131 = vshrl.u32 %v2130, 7
    %v2132 = vsub.s32 1, %v2131
    %v2133 = vrot.slane %v2124, %v2132
    %v2144 = vunpack.c.l.b16 %v2115
    %v2145 = vunpack.c.h.b16 %v2115
    %v2146 = vunpack.c.l.b16 %v2116
    %v2147 = vunpack.c.h.b16 %v2116
    %v2148 = vunpack.c.l.b16 %v2117
    %v2149 = vunpack.c.h.b16 %v2117
    %v2150 = vunpack.c.l.b16 %v2118
    %v2151 = vunpack.c.h.b16 %v2118
    %v2152 = vunpack.c.l.b16 %v2119
    %v2153 = vunpack.c.h.b16 %v2119
    %v2154 = vunpack.c.l.b16 %v2120
    %v2155 = vunpack.c.h.b16 %v2120
    %v2156 = vunpack.c.l.b16 %v2121
    %v2157 = vunpack.c.h.b16 %v2121
    %v2158 = vunpack.c.l.b16 %v2122
    %v2159 = vunpack.c.h.b16 %v2122
    %v2160 = vpack.c.b16 %v2146, %v2144
    %v2161 = vpack.c.b16 %v2147, %v2145
    %v2162 = vpack.c.b16 %v2150, %v2148
    %v2163 = vpack.c.b16 %v2151, %v2149
    %v2164 = vpack.c.b16 %v2154, %v2152
    %v2165 = vpack.c.b16 %v2155, %v2153
    %v2166 = vpack.c.b16 %v2158, %v2156
    %v2167 = vpack.c.b16 %v2159, %v2157
    %v2177 = vsel %vm616, %v2113, 0
    %2179 = vmatprep.subr.bf16.mxu0 %v2161
    %2180 = vmatpush1.bf16.msra.mxu0 %v2160
    %2181 = vmatprep.subr.bf16.mxu0 %v2163
    %2182 = vmatpush1.bf16.msra.mxu0 %v2162
    %2183 = vmatprep.subr.bf16.mxu0 %v2165
    %2184 = vmatpush1.bf16.msra.mxu0 %v2164
    %2185 = vmatprep.subr.bf16.mxu0 %v2167
    %2186 = vmatpush1.bf16.msra.mxu0 %v2166
    %2187 = vmatprep.subr.bf16.mxu0 0
    %2188 = vmatpush1.bf16.msra.mxu0 0
    %2189 = vmatprep.subr.bf16.mxu0 0
    %2190 = vmatpush1.bf16.msra.mxu0 0
    %2191 = vmatprep.subr.bf16.mxu0 0
    %2192 = vmatpush1.bf16.msra.mxu0 0
    %2193 = vmatprep.subr.bf16.mxu0 0
    %2194 = vmatpush1.bf16.msra.mxu0 0
    %2195 = vmatprep.subr.bf16.mxu0 0
    %2196 = vmatpush1.bf16.msra.mxu0 0
    %2197 = vmatprep.subr.bf16.mxu0 0
    %2198 = vmatpush1.bf16.msra.mxu0 0
    %2199 = vmatprep.subr.bf16.mxu0 0
    %2200 = vmatpush1.bf16.msra.mxu0 0
    %2201 = vmatprep.subr.bf16.mxu0 0
    %2202 = vmatpush1.bf16.msra.mxu0 0
    %2203 = vmatprep.subr.bf16.mxu0 0
    %2204 = vmatpush1.bf16.msra.mxu0 0
    %2205 = vmatprep.subr.bf16.mxu0 0
    %2206 = vmatpush1.bf16.msra.mxu0 0
    %2207 = vmatprep.subr.bf16.mxu0 0
    %2208 = vmatpush1.bf16.msra.mxu0 0
    %2209 = vmatprep.subr.bf16.mxu0 0
    %2210 = vmatpush1.bf16.msra.mxu0 0
    %2211 = vmatprep.mubr.bf16.mxu0 0
    %2212 = vmatmul.mubr.bf16.gmra.mrb[0].mxu0 %v2177
    %v2213 = vpop.f32.mrb[0].mxu0
    %v2214 = vadd.f32 %v2129, %v2213
    %v2215 = vpop.f32.mrb[0].mxu0
    %v2216 = vadd.f32 %v2133, %v2215
    %v2217 = vpop.f32.mrb[0].mxu0
    %v2218 = vadd.f32 %v2129, %v2217
    %v2219 = vpop.f32.mrb[0].mxu0
    %v2220 = vadd.f32 %v2133, %v2219
    %2221 = vdwg.mxu0
    %v2222 = vpack.c.bf16 %v2218, %v2214
    %v2223 = vpack.c.bf16 %v2220, %v2216
    %v2225 = vunpack.c.l.b16 %v2222
    %v2226 = vunpack.c.h.b16 %v2222
    %v2227 = vpack.c.b16 %v2225, %v2225
    %v2228 = vpack.c.b16 %v2226, %v2226
    %2229 = vrot.lane.b32.xlu0 %v2227, 112
    %v2230 = vpop.permute.xlu0 %2229
    %2231 = vrot.lane.b32.xlu0 %v2228, 112
    %v2232 = vpop.permute.xlu0 %2231
    %2233 = vrot.lane.b32.xlu0 %v2227, 96
    %v2234 = vpop.permute.xlu0 %2233
    %2235 = vrot.lane.b32.xlu0 %v2228, 96
    %v2236 = vpop.permute.xlu0 %2235
    %2237 = vrot.lane.b32.xlu0 %v2227, 80
    %v2238 = vpop.permute.xlu0 %2237
    %2239 = vrot.lane.b32.xlu0 %v2228, 80
    %v2240 = vpop.permute.xlu0 %2239
    %v2242 = vunpack.c.l.b16 %v2223
    %v2243 = vunpack.c.h.b16 %v2223
    %v2244 = vpack.c.b16 %v2242, %v2242
    %v2245 = vpack.c.b16 %v2243, %v2243
    %2246 = vrot.lane.b32.xlu0 %v2244, 112
    %v2247 = vpop.permute.xlu0 %2246
    %2248 = vrot.lane.b32.xlu0 %v2245, 112
    %v2249 = vpop.permute.xlu0 %2248
    %2250 = vrot.lane.b32.xlu0 %v2244, 96
    %v2251 = vpop.permute.xlu0 %2250
    %2252 = vrot.lane.b32.xlu0 %v2245, 96
    %v2253 = vpop.permute.xlu0 %2252
    %2254 = vrot.lane.b32.xlu0 %v2244, 80
    %v2255 = vpop.permute.xlu0 %2254
    %2256 = vrot.lane.b32.xlu0 %v2245, 80
    %v2257 = vpop.permute.xlu0 %2256
    %2258 = vrot.lane.b32.xlu0 %v2227, 64
    %v2259 = vpop.permute.xlu0 %2258
    %v2261 = vsel %vm805, %v2227, 0
    %v2264 = vsel %vm805, %v2259, 0
    %2266 = vmatprep.subr.bf16.mxu0 0
    %2267 = vmatpush1.bf16.xpose.msra.mxu0 %v2264
    %2268 = vmatprep.subr.bf16.mxu0 0
    %2269 = vmatpush1.bf16.xpose.msra.mxu0 0
    %2270 = vmatprep.subr.bf16.mxu0 0
    %2271 = vmatpush1.bf16.xpose.msra.mxu0 0
    %2272 = vmatprep.subr.bf16.mxu0 0
    %2273 = vmatpush1.bf16.xpose.msra.mxu0 0
    %2274 = vmatprep.subr.bf16.mxu0 0
    %2275 = vmatpush1.bf16.xpose.msra.mxu0 0
    %2276 = vmatprep.subr.bf16.mxu0 0
    %2277 = vmatpush1.bf16.xpose.msra.mxu0 0
    %2278 = vmatprep.subr.bf16.mxu0 0
    %2279 = vmatpush1.bf16.xpose.msra.mxu0 0
    %2280 = vmatprep.subr.bf16.mxu0 0
    %2281 = vmatpush1.bf16.xpose.msra.mxu0 0
    %2282 = vmatprep.subr.bf16.mxu0 0
    %2283 = vmatpush1.bf16.xpose.msra.mxu0 0
    %2284 = vmatprep.subr.bf16.mxu0 0
    %2285 = vmatpush1.bf16.xpose.msra.mxu0 0
    %2286 = vmatprep.subr.bf16.mxu0 0
    %2287 = vmatpush1.bf16.xpose.msra.mxu0 0
    %2288 = vmatprep.subr.bf16.mxu0 0
    %2289 = vmatpush1.bf16.xpose.msra.mxu0 0
    %2290 = vmatprep.subr.bf16.mxu0 0
    %2291 = vmatpush1.bf16.xpose.msra.mxu0 0
    %2292 = vmatprep.subr.bf16.mxu0 0
    %2293 = vmatpush1.bf16.xpose.msra.mxu0 0
    %2294 = vmatprep.subr.bf16.mxu0 0
    %2295 = vmatpush1.bf16.xpose.msra.mxu0 0
    %2296 = vmatprep.subr.bf16.mxu0 0
    %2297 = vmatpush1.bf16.xpose.msra.mxu0 0
    %2298 = vmatprep.mubr.bf16.mxu0 0
    %2299 = vmatmul.mubr.bf16.gmra.mrb[0].mxu0 %v2261
    %v2300 = vpop.f32.mrb[0].mxu0
    %v2301 = vadd.f32 0.0, %v2300
    %v2302 = vpop.f32.mrb[0].mxu0
    %v2303 = vpop.f32.mrb[0].mxu0
    %v2304 = vpop.f32.mrb[0].mxu0
    %2305 = vdwg.mxu0
    %2306 = vrot.lane.b32.xlu0 %v2228, 64
    %v2307 = vpop.permute.xlu0 %2306
    %v2309 = vsel %vm805, %v2228, 0
    %v2312 = vsel %vm805, %v2307, 0
    %2314 = vmatprep.subr.bf16.mxu0 0
    %2315 = vmatpush1.bf16.xpose.msra.mxu0 %v2312
    %2316 = vmatprep.subr.bf16.mxu0 0
    %2317 = vmatpush1.bf16.xpose.msra.mxu0 0
    %2318 = vmatprep.subr.bf16.mxu0 0
    %2319 = vmatpush1.bf16.xpose.msra.mxu0 0
    %2320 = vmatprep.subr.bf16.mxu0 0
    %2321 = vmatpush1.bf16.xpose.msra.mxu0 0
    %2322 = vmatprep.subr.bf16.mxu0 0
    %2323 = vmatpush1.bf16.xpose.msra.mxu0 0
    %2324 = vmatprep.subr.bf16.mxu0 0
    %2325 = vmatpush1.bf16.xpose.msra.mxu0 0
    %2326 = vmatprep.subr.bf16.mxu0 0
    %2327 = vmatpush1.bf16.xpose.msra.mxu0 0
    %2328 = vmatprep.subr.bf16.mxu0 0
    %2329 = vmatpush1.bf16.xpose.msra.mxu0 0
    %2330 = vmatprep.subr.bf16.mxu0 0
    %2331 = vmatpush1.bf16.xpose.msra.mxu0 0
    %2332 = vmatprep.subr.bf16.mxu0 0
    %2333 = vmatpush1.bf16.xpose.msra.mxu0 0
    %2334 = vmatprep.subr.bf16.mxu0 0
    %2335 = vmatpush1.bf16.xpose.msra.mxu0 0
    %2336 = vmatprep.subr.bf16.mxu0 0
    %2337 = vmatpush1.bf16.xpose.msra.mxu0 0
    %2338 = vmatprep.subr.bf16.mxu0 0
    %2339 = vmatpush1.bf16.xpose.msra.mxu0 0
    %2340 = vmatprep.subr.bf16.mxu0 0
    %2341 = vmatpush1.bf16.xpose.msra.mxu0 0
    %2342 = vmatprep.subr.bf16.mxu0 0
    %2343 = vmatpush1.bf16.xpose.msra.mxu0 0
    %2344 = vmatprep.subr.bf16.mxu0 0
    %2345 = vmatpush1.bf16.xpose.msra.mxu0 0
    %2346 = vmatprep.mubr.bf16.mxu0 0
    %2347 = vmatmul.mubr.bf16.gmra.mrb[0].mxu0 %v2309
    %v2348 = vpop.f32.mrb[0].mxu0
    %v2349 = vadd.f32 0.0, %v2348
    %v2350 = vpop.f32.mrb[0].mxu0
    %v2351 = vpop.f32.mrb[0].mxu0
    %v2352 = vpop.f32.mrb[0].mxu0
    %2353 = vdwg.mxu0
    %v2354 = vunpack.c.l.b16 %v2230
    %v2355 = vpack.c.b16 %v2354, %v2354
    %2356 = vrot.lane.b32.xlu0 %v2355, 64
    %v2357 = vpop.permute.xlu0 %2356
    %v2359 = vsel %vm805, %v2230, 0
    %v2362 = vsel %vm805, %v2357, 0
    %2364 = vmatprep.subr.bf16.mxu0 0
    %2365 = vmatpush1.bf16.xpose.msra.mxu0 %v2362
    %2366 = vmatprep.subr.bf16.mxu0 0
    %2367 = vmatpush1.bf16.xpose.msra.mxu0 0
    %2368 = vmatprep.subr.bf16.mxu0 0
    %2369 = vmatpush1.bf16.xpose.msra.mxu0 0
    %2370 = vmatprep.subr.bf16.mxu0 0
    %2371 = vmatpush1.bf16.xpose.msra.mxu0 0
    %2372 = vmatprep.subr.bf16.mxu0 0
    %2373 = vmatpush1.bf16.xpose.msra.mxu0 0
    %2374 = vmatprep.subr.bf16.mxu0 0
    %2375 = vmatpush1.bf16.xpose.msra.mxu0 0
    %2376 = vmatprep.subr.bf16.mxu0 0
    %2377 = vmatpush1.bf16.xpose.msra.mxu0 0
    %2378 = vmatprep.subr.bf16.mxu0 0
    %2379 = vmatpush1.bf16.xpose.msra.mxu0 0
    %2380 = vmatprep.subr.bf16.mxu0 0
    %2381 = vmatpush1.bf16.xpose.msra.mxu0 0
    %2382 = vmatprep.subr.bf16.mxu0 0
    %2383 = vmatpush1.bf16.xpose.msra.mxu0 0
    %2384 = vmatprep.subr.bf16.mxu0 0
    %2385 = vmatpush1.bf16.xpose.msra.mxu0 0
    %2386 = vmatprep.subr.bf16.mxu0 0
    %2387 = vmatpush1.bf16.xpose.msra.mxu0 0
    %2388 = vmatprep.subr.bf16.mxu0 0
    %2389 = vmatpush1.bf16.xpose.msra.mxu0 0
    %2390 = vmatprep.subr.bf16.mxu0 0
    %2391 = vmatpush1.bf16.xpose.msra.mxu0 0
    %2392 = vmatprep.subr.bf16.mxu0 0
    %2393 = vmatpush1.bf16.xpose.msra.mxu0 0
    %2394 = vmatprep.subr.bf16.mxu0 0
    %2395 = vmatpush1.bf16.xpose.msra.mxu0 0
    %2396 = vmatprep.mubr.bf16.mxu0 0
    %2397 = vmatmul.mubr.bf16.gmra.mrb[0].mxu0 %v2359
    %v2398 = vpop.f32.mrb[0].mxu0
    %v2399 = vadd.f32 0.0, %v2398
    %v2400 = vpop.f32.mrb[0].mxu0
    %v2401 = vpop.f32.mrb[0].mxu0
    %v2402 = vpop.f32.mrb[0].mxu0
    %2403 = vdwg.mxu0
    %v2404 = vunpack.c.l.b16 %v2232
    %v2405 = vpack.c.b16 %v2404, %v2404
    %2406 = vrot.lane.b32.xlu0 %v2405, 64
    %v2407 = vpop.permute.xlu0 %2406
    %v2409 = vsel %vm805, %v2232, 0
    %v2412 = vsel %vm805, %v2407, 0
    %2414 = vmatprep.subr.bf16.mxu0 0
    %2415 = vmatpush1.bf16.xpose.msra.mxu0 %v2412
    %2416 = vmatprep.subr.bf16.mxu0 0
    %2417 = vmatpush1.bf16.xpose.msra.mxu0 0
    %2418 = vmatprep.subr.bf16.mxu0 0
    %2419 = vmatpush1.bf16.xpose.msra.mxu0 0
    %2420 = vmatprep.subr.bf16.mxu0 0
    %2421 = vmatpush1.bf16.xpose.msra.mxu0 0
    %2422 = vmatprep.subr.bf16.mxu0 0
    %2423 = vmatpush1.bf16.xpose.msra.mxu0 0
    %2424 = vmatprep.subr.bf16.mxu0 0
    %2425 = vmatpush1.bf16.xpose.msra.mxu0 0
    %2426 = vmatprep.subr.bf16.mxu0 0
    %2427 = vmatpush1.bf16.xpose.msra.mxu0 0
    %2428 = vmatprep.subr.bf16.mxu0 0
    %2429 = vmatpush1.bf16.xpose.msra.mxu0 0
    %2430 = vmatprep.subr.bf16.mxu0 0
    %2431 = vmatpush1.bf16.xpose.msra.mxu0 0
    %2432 = vmatprep.subr.bf16.mxu0 0
    %2433 = vmatpush1.bf16.xpose.msra.mxu0 0
    %2434 = vmatprep.subr.bf16.mxu0 0
    %2435 = vmatpush1.bf16.xpose.msra.mxu0 0
    %2436 = vmatprep.subr.bf16.mxu0 0
    %2437 = vmatpush1.bf16.xpose.msra.mxu0 0
    %2438 = vmatprep.subr.bf16.mxu0 0
    %2439 = vmatpush1.bf16.xpose.msra.mxu0 0
    %2440 = vmatprep.subr.bf16.mxu0 0
    %2441 = vmatpush1.bf16.xpose.msra.mxu0 0
    %2442 = vmatprep.subr.bf16.mxu0 0
    %2443 = vmatpush1.bf16.xpose.msra.mxu0 0
    %2444 = vmatprep.subr.bf16.mxu0 0
    %2445 = vmatpush1.bf16.xpose.msra.mxu0 0
    %2446 = vmatprep.mubr.bf16.mxu0 0
    %2447 = vmatmul.mubr.bf16.gmra.mrb[0].mxu0 %v2409
    %v2448 = vpop.f32.mrb[0].mxu0
    %v2449 = vadd.f32 0.0, %v2448
    %v2450 = vpop.f32.mrb[0].mxu0
    %v2451 = vpop.f32.mrb[0].mxu0
    %v2452 = vpop.f32.mrb[0].mxu0
    %2453 = vdwg.mxu0
    %v2454 = vunpack.c.l.b16 %v2234
    %v2455 = vpack.c.b16 %v2454, %v2454
    %2456 = vrot.lane.b32.xlu0 %v2455, 64
    %v2457 = vpop.permute.xlu0 %2456
    %v2459 = vsel %vm805, %v2234, 0
    %v2462 = vsel %vm805, %v2457, 0
    %2464 = vmatprep.subr.bf16.mxu0 0
    %2465 = vmatpush1.bf16.xpose.msra.mxu0 %v2462
    %2466 = vmatprep.subr.bf16.mxu0 0
    %2467 = vmatpush1.bf16.xpose.msra.mxu0 0
    %2468 = vmatprep.subr.bf16.mxu0 0
    %2469 = vmatpush1.bf16.xpose.msra.mxu0 0
    %2470 = vmatprep.subr.bf16.mxu0 0
    %2471 = vmatpush1.bf16.xpose.msra.mxu0 0
    %2472 = vmatprep.subr.bf16.mxu0 0
    %2473 = vmatpush1.bf16.xpose.msra.mxu0 0
    %2474 = vmatprep.subr.bf16.mxu0 0
    %2475 = vmatpush1.bf16.xpose.msra.mxu0 0
    %2476 = vmatprep.subr.bf16.mxu0 0
    %2477 = vmatpush1.bf16.xpose.msra.mxu0 0
    %2478 = vmatprep.subr.bf16.mxu0 0
    %2479 = vmatpush1.bf16.xpose.msra.mxu0 0
    %2480 = vmatprep.subr.bf16.mxu0 0
    %2481 = vmatpush1.bf16.xpose.msra.mxu0 0
    %2482 = vmatprep.subr.bf16.mxu0 0
    %2483 = vmatpush1.bf16.xpose.msra.mxu0 0
    %2484 = vmatprep.subr.bf16.mxu0 0
    %2485 = vmatpush1.bf16.xpose.msra.mxu0 0
    %2486 = vmatprep.subr.bf16.mxu0 0
    %2487 = vmatpush1.bf16.xpose.msra.mxu0 0
    %2488 = vmatprep.subr.bf16.mxu0 0
    %2489 = vmatpush1.bf16.xpose.msra.mxu0 0
    %2490 = vmatprep.subr.bf16.mxu0 0
    %2491 = vmatpush1.bf16.xpose.msra.mxu0 0
    %2492 = vmatprep.subr.bf16.mxu0 0
    %2493 = vmatpush1.bf16.xpose.msra.mxu0 0
    %2494 = vmatprep.subr.bf16.mxu0 0
    %2495 = vmatpush1.bf16.xpose.msra.mxu0 0
    %2496 = vmatprep.mubr.bf16.mxu0 0
    %2497 = vmatmul.mubr.bf16.gmra.mrb[0].mxu0 %v2459
    %v2498 = vpop.f32.mrb[0].mxu0
    %v2499 = vadd.f32 0.0, %v2498
    %v2500 = vpop.f32.mrb[0].mxu0
    %v2501 = vpop.f32.mrb[0].mxu0
    %v2502 = vpop.f32.mrb[0].mxu0
    %2503 = vdwg.mxu0
    %v2504 = vunpack.c.l.b16 %v2236
    %v2505 = vpack.c.b16 %v2504, %v2504
    %2506 = vrot.lane.b32.xlu0 %v2505, 64
    %v2507 = vpop.permute.xlu0 %2506
    %v2509 = vsel %vm805, %v2236, 0
    %v2512 = vsel %vm805, %v2507, 0
    %2514 = vmatprep.subr.bf16.mxu0 0
    %2515 = vmatpush1.bf16.xpose.msra.mxu0 %v2512
    %2516 = vmatprep.subr.bf16.mxu0 0
    %2517 = vmatpush1.bf16.xpose.msra.mxu0 0
    %2518 = vmatprep.subr.bf16.mxu0 0
    %2519 = vmatpush1.bf16.xpose.msra.mxu0 0
    %2520 = vmatprep.subr.bf16.mxu0 0
    %2521 = vmatpush1.bf16.xpose.msra.mxu0 0
    %2522 = vmatprep.subr.bf16.mxu0 0
    %2523 = vmatpush1.bf16.xpose.msra.mxu0 0
    %2524 = vmatprep.subr.bf16.mxu0 0
    %2525 = vmatpush1.bf16.xpose.msra.mxu0 0
    %2526 = vmatprep.subr.bf16.mxu0 0
    %2527 = vmatpush1.bf16.xpose.msra.mxu0 0
    %2528 = vmatprep.subr.bf16.mxu0 0
    %2529 = vmatpush1.bf16.xpose.msra.mxu0 0
    %2530 = vmatprep.subr.bf16.mxu0 0
    %2531 = vmatpush1.bf16.xpose.msra.mxu0 0
    %2532 = vmatprep.subr.bf16.mxu0 0
    %2533 = vmatpush1.bf16.xpose.msra.mxu0 0
    %2534 = vmatprep.subr.bf16.mxu0 0
    %2535 = vmatpush1.bf16.xpose.msra.mxu0 0
    %2536 = vmatprep.subr.bf16.mxu0 0
    %2537 = vmatpush1.bf16.xpose.msra.mxu0 0
    %2538 = vmatprep.subr.bf16.mxu0 0
    %2539 = vmatpush1.bf16.xpose.msra.mxu0 0
    %2540 = vmatprep.subr.bf16.mxu0 0
    %2541 = vmatpush1.bf16.xpose.msra.mxu0 0
    %2542 = vmatprep.subr.bf16.mxu0 0
    %2543 = vmatpush1.bf16.xpose.msra.mxu0 0
    %2544 = vmatprep.subr.bf16.mxu0 0
    %2545 = vmatpush1.bf16.xpose.msra.mxu0 0
    %2546 = vmatprep.mubr.bf16.mxu0 0
    %2547 = vmatmul.mubr.bf16.gmra.mrb[0].mxu0 %v2509
    %v2548 = vpop.f32.mrb[0].mxu0
    %v2549 = vadd.f32 0.0, %v2548
    %v2550 = vpop.f32.mrb[0].mxu0
    %v2551 = vpop.f32.mrb[0].mxu0
    %v2552 = vpop.f32.mrb[0].mxu0
    %2553 = vdwg.mxu0
    %v2554 = vunpack.c.l.b16 %v2238
    %v2555 = vpack.c.b16 %v2554, %v2554
    %2556 = vrot.lane.b32.xlu0 %v2555, 64
    %v2557 = vpop.permute.xlu0 %2556
    %v2559 = vsel %vm805, %v2238, 0
    %v2562 = vsel %vm805, %v2557, 0
    %2564 = vmatprep.subr.bf16.mxu0 0
    %2565 = vmatpush1.bf16.xpose.msra.mxu0 %v2562
    %2566 = vmatprep.subr.bf16.mxu0 0
    %2567 = vmatpush1.bf16.xpose.msra.mxu0 0
    %2568 = vmatprep.subr.bf16.mxu0 0
    %2569 = vmatpush1.bf16.xpose.msra.mxu0 0
    %2570 = vmatprep.subr.bf16.mxu0 0
    %2571 = vmatpush1.bf16.xpose.msra.mxu0 0
    %2572 = vmatprep.subr.bf16.mxu0 0
    %2573 = vmatpush1.bf16.xpose.msra.mxu0 0
    %2574 = vmatprep.subr.bf16.mxu0 0
    %2575 = vmatpush1.bf16.xpose.msra.mxu0 0
    %2576 = vmatprep.subr.bf16.mxu0 0
    %2577 = vmatpush1.bf16.xpose.msra.mxu0 0
    %2578 = vmatprep.subr.bf16.mxu0 0
    %2579 = vmatpush1.bf16.xpose.msra.mxu0 0
    %2580 = vmatprep.subr.bf16.mxu0 0
    %2581 = vmatpush1.bf16.xpose.msra.mxu0 0
    %2582 = vmatprep.subr.bf16.mxu0 0
    %2583 = vmatpush1.bf16.xpose.msra.mxu0 0
    %2584 = vmatprep.subr.bf16.mxu0 0
    %2585 = vmatpush1.bf16.xpose.msra.mxu0 0
    %2586 = vmatprep.subr.bf16.mxu0 0
    %2587 = vmatpush1.bf16.xpose.msra.mxu0 0
    %2588 = vmatprep.subr.bf16.mxu0 0
    %2589 = vmatpush1.bf16.xpose.msra.mxu0 0
    %2590 = vmatprep.subr.bf16.mxu0 0
    %2591 = vmatpush1.bf16.xpose.msra.mxu0 0
    %2592 = vmatprep.subr.bf16.mxu0 0
    %2593 = vmatpush1.bf16.xpose.msra.mxu0 0
    %2594 = vmatprep.subr.bf16.mxu0 0
    %2595 = vmatpush1.bf16.xpose.msra.mxu0 0
    %2596 = vmatprep.mubr.bf16.mxu0 0
    %2597 = vmatmul.mubr.bf16.gmra.mrb[0].mxu0 %v2559
    %v2598 = vpop.f32.mrb[0].mxu0
    %v2599 = vadd.f32 0.0, %v2598
    %v2600 = vpop.f32.mrb[0].mxu0
    %v2601 = vpop.f32.mrb[0].mxu0
    %v2602 = vpop.f32.mrb[0].mxu0
    %2603 = vdwg.mxu0
    %v2604 = vunpack.c.l.b16 %v2240
    %v2605 = vpack.c.b16 %v2604, %v2604
    %2606 = vrot.lane.b32.xlu0 %v2605, 64
    %v2607 = vpop.permute.xlu0 %2606
    %v2609 = vsel %vm805, %v2240, 0
    %v2612 = vsel %vm805, %v2607, 0
    %2614 = vmatprep.subr.bf16.mxu0 0
    %2615 = vmatpush1.bf16.xpose.msra.mxu0 %v2612
    %2616 = vmatprep.subr.bf16.mxu0 0
    %2617 = vmatpush1.bf16.xpose.msra.mxu0 0
    %2618 = vmatprep.subr.bf16.mxu0 0
    %2619 = vmatpush1.bf16.xpose.msra.mxu0 0
    %2620 = vmatprep.subr.bf16.mxu0 0
    %2621 = vmatpush1.bf16.xpose.msra.mxu0 0
    %2622 = vmatprep.subr.bf16.mxu0 0
    %2623 = vmatpush1.bf16.xpose.msra.mxu0 0
    %2624 = vmatprep.subr.bf16.mxu0 0
    %2625 = vmatpush1.bf16.xpose.msra.mxu0 0
    %2626 = vmatprep.subr.bf16.mxu0 0
    %2627 = vmatpush1.bf16.xpose.msra.mxu0 0
    %2628 = vmatprep.subr.bf16.mxu0 0
    %2629 = vmatpush1.bf16.xpose.msra.mxu0 0
    %2630 = vmatprep.subr.bf16.mxu0 0
    %2631 = vmatpush1.bf16.xpose.msra.mxu0 0
    %2632 = vmatprep.subr.bf16.mxu0 0
    %2633 = vmatpush1.bf16.xpose.msra.mxu0 0
    %2634 = vmatprep.subr.bf16.mxu0 0
    %2635 = vmatpush1.bf16.xpose.msra.mxu0 0
    %2636 = vmatprep.subr.bf16.mxu0 0
    %2637 = vmatpush1.bf16.xpose.msra.mxu0 0
    %2638 = vmatprep.subr.bf16.mxu0 0
    %2639 = vmatpush1.bf16.xpose.msra.mxu0 0
    %2640 = vmatprep.subr.bf16.mxu0 0
    %2641 = vmatpush1.bf16.xpose.msra.mxu0 0
    %2642 = vmatprep.subr.bf16.mxu0 0
    %2643 = vmatpush1.bf16.xpose.msra.mxu0 0
    %2644 = vmatprep.subr.bf16.mxu0 0
    %2645 = vmatpush1.bf16.xpose.msra.mxu0 0
    %2646 = vmatprep.mubr.bf16.mxu0 0
    %2647 = vmatmul.mubr.bf16.gmra.mrb[0].mxu0 %v2609
    %v2648 = vpop.f32.mrb[0].mxu0
    %v2649 = vadd.f32 0.0, %v2648
    %v2650 = vpop.f32.mrb[0].mxu0
    %v2651 = vpop.f32.mrb[0].mxu0
    %v2652 = vpop.f32.mrb[0].mxu0
    %2653 = vdwg.mxu0
    %v2654 = vmul.f32 %v2301, 0.25
    %v2655 = vmul.f32 %v2349, 0.25
    %v2656 = vmul.f32 %v2399, 0.25
    %v2657 = vmul.f32 %v2449, 0.25
    %v2658 = vmul.f32 %v2499, 0.25
    %v2659 = vmul.f32 %v2549, 0.25
    %v2660 = vmul.f32 %v2599, 0.25
    %v2661 = vmul.f32 %v2649, 0.25
    %v2662 = vadd.f32 %v2654, %v1212
    %v2663 = vadd.f32 %v2655, %v1212
    %v2664 = vadd.f32 %v2656, %v1212
    %v2665 = vadd.f32 %v2657, %v1212
    %v2666 = vadd.f32 %v2658, %v1212
    %v2667 = vadd.f32 %v2659, %v1212
    %v2668 = vadd.f32 %v2660, %v1212
    %v2669 = vadd.f32 %v2661, %v1212
    %v2670 = vsel %vm1222, %v2662, -inf
    %2671 = vmax.xlane.f32.xlu0 %v2670
    %v2672 = vpop.xlane.xlu0 %2671
    %v2673 = vsel %vm1222, %v2663, -inf
    %2674 = vmax.xlane.f32.xlu0 %v2673
    %v2675 = vpop.xlane.xlu0 %2674
    %v2676 = vsel %vm1222, %v2664, -inf
    %2677 = vmax.xlane.f32.xlu0 %v2676
    %v2678 = vpop.xlane.xlu0 %2677
    %v2679 = vsel %vm1222, %v2665, -inf
    %2680 = vmax.xlane.f32.xlu0 %v2679
    %v2681 = vpop.xlane.xlu0 %2680
    %v2682 = vsel %vm1222, %v2666, -inf
    %2683 = vmax.xlane.f32.xlu0 %v2682
    %v2684 = vpop.xlane.xlu0 %2683
    %v2685 = vsel %vm1222, %v2667, -inf
    %2686 = vmax.xlane.f32.xlu0 %v2685
    %v2687 = vpop.xlane.xlu0 %2686
    %v2688 = vsel %vm1222, %v2668, -inf
    %2689 = vmax.xlane.f32.xlu0 %v2688
    %v2690 = vpop.xlane.xlu0 %2689
    %v2691 = vsel %vm1222, %v2669, -inf
    %2692 = vmax.xlane.f32.xlu0 %v2691
    %v2693 = vpop.xlane.xlu0 %2692
    %v2694 = vsub.f32 %v2662, %v2672
    %v2695 = vsub.f32 %v2663, %v2675
    %v2696 = vsub.f32 %v2664, %v2678
    %v2697 = vsub.f32 %v2665, %v2681
    %v2698 = vsub.f32 %v2666, %v2684
    %v2699 = vsub.f32 %v2667, %v2687
    %v2700 = vsub.f32 %v2668, %v2690
    %v2701 = vsub.f32 %v2669, %v2693
    %v2702 = vmul.f32 %v2694, 1.442695
    %v2703 = vpow.pop %v2702
    %v2704 = vmul.f32 %v2695, 1.442695
    %v2705 = vpow.pop %v2704
    %v2706 = vmul.f32 %v2696, 1.442695
    %v2707 = vpow.pop %v2706
    %v2708 = vmul.f32 %v2697, 1.442695
    %v2709 = vpow.pop %v2708
    %v2710 = vmul.f32 %v2698, 1.442695
    %v2711 = vpow.pop %v2710
    %v2712 = vmul.f32 %v2699, 1.442695
    %v2713 = vpow.pop %v2712
    %v2714 = vmul.f32 %v2700, 1.442695
    %v2715 = vpow.pop %v2714
    %v2716 = vmul.f32 %v2701, 1.442695
    %v2717 = vpow.pop %v2716
    %v2718 = vsel %vm1222, %v2703, 0.0
    %2719 = vadd.xlane.f32.xlu0 %v2718
    %v2720 = vpop.xlane.xlu0 %2719
    %v2721 = vsel %vm1222, %v2705, 0.0
    %2722 = vadd.xlane.f32.xlu0 %v2721
    %v2723 = vpop.xlane.xlu0 %2722
    %v2724 = vsel %vm1222, %v2707, 0.0
    %2725 = vadd.xlane.f32.xlu0 %v2724
    %v2726 = vpop.xlane.xlu0 %2725
    %v2727 = vsel %vm1222, %v2709, 0.0
    %2728 = vadd.xlane.f32.xlu0 %v2727
    %v2729 = vpop.xlane.xlu0 %2728
    %v2730 = vsel %vm1222, %v2711, 0.0
    %2731 = vadd.xlane.f32.xlu0 %v2730
    %v2732 = vpop.xlane.xlu0 %2731
    %v2733 = vsel %vm1222, %v2713, 0.0
    %2734 = vadd.xlane.f32.xlu0 %v2733
    %v2735 = vpop.xlane.xlu0 %2734
    %v2736 = vsel %vm1222, %v2715, 0.0
    %2737 = vadd.xlane.f32.xlu0 %v2736
    %v2738 = vpop.xlane.xlu0 %2737
    %v2739 = vsel %vm1222, %v2717, 0.0
    %2740 = vadd.xlane.f32.xlu0 %v2739
    %v2741 = vpop.xlane.xlu0 %2740
    %v2742 = vrcp.pop %v2720
    %v2743 = vrcp.pop %v2723
    %v2744 = vrcp.pop %v2726
    %v2745 = vrcp.pop %v2729
    %v2746 = vrcp.pop %v2732
    %v2747 = vrcp.pop %v2735
    %v2748 = vrcp.pop %v2738
    %v2749 = vrcp.pop %v2741
    %v2750 = vmul.f32 %v2703, %v2742
    %v2751 = vmul.f32 %v2705, %v2743
    %v2752 = vmul.f32 %v2707, %v2744
    %v2753 = vmul.f32 %v2709, %v2745
    %v2754 = vmul.f32 %v2711, %v2746
    %v2755 = vmul.f32 %v2713, %v2747
    %v2756 = vmul.f32 %v2715, %v2748
    %v2757 = vmul.f32 %v2717, %v2749
    %v2758 = vpack.c.bf16 %v2750, %v2750
    %v2759 = vpack.c.bf16 %v2751, %v2751
    %v2760 = vpack.c.bf16 %v2752, %v2752
    %v2761 = vpack.c.bf16 %v2753, %v2753
    %v2762 = vpack.c.bf16 %v2754, %v2754
    %v2763 = vpack.c.bf16 %v2755, %v2755
    %v2764 = vpack.c.bf16 %v2756, %v2756
    %v2765 = vpack.c.bf16 %v2757, %v2757
    %v2767 = vsel %vm1222, %v2758, 0
    %v2770 = vsel %vm1322, %v2244, 0
    %2772 = vmatprep.subr.bf16.mxu0 0
    %2773 = vmatpush1.bf16.msra.mxu0 %v2770
    %2774 = vmatprep.subr.bf16.mxu0 0
    %2775 = vmatpush1.bf16.msra.mxu0 0
    %2776 = vmatprep.subr.bf16.mxu0 0
    %2777 = vmatpush1.bf16.msra.mxu0 0
    %2778 = vmatprep.subr.bf16.mxu0 0
    %2779 = vmatpush1.bf16.msra.mxu0 0
    %2780 = vmatprep.subr.bf16.mxu0 0
    %2781 = vmatpush1.bf16.msra.mxu0 0
    %2782 = vmatprep.subr.bf16.mxu0 0
    %2783 = vmatpush1.bf16.msra.mxu0 0
    %2784 = vmatprep.subr.bf16.mxu0 0
    %2785 = vmatpush1.bf16.msra.mxu0 0
    %2786 = vmatprep.subr.bf16.mxu0 0
    %2787 = vmatpush1.bf16.msra.mxu0 0
    %2788 = vmatprep.subr.bf16.mxu0 0
    %2789 = vmatpush1.bf16.msra.mxu0 0
    %2790 = vmatprep.subr.bf16.mxu0 0
    %2791 = vmatpush1.bf16.msra.mxu0 0
    %2792 = vmatprep.subr.bf16.mxu0 0
    %2793 = vmatpush1.bf16.msra.mxu0 0
    %2794 = vmatprep.subr.bf16.mxu0 0
    %2795 = vmatpush1.bf16.msra.mxu0 0
    %2796 = vmatprep.subr.bf16.mxu0 0
    %2797 = vmatpush1.bf16.msra.mxu0 0
    %2798 = vmatprep.subr.bf16.mxu0 0
    %2799 = vmatpush1.bf16.msra.mxu0 0
    %2800 = vmatprep.subr.bf16.mxu0 0
    %2801 = vmatpush1.bf16.msra.mxu0 0
    %2802 = vmatprep.subr.bf16.mxu0 0
    %2803 = vmatpush1.bf16.msra.mxu0 0
    %2804 = vmatprep.mubr.bf16.mxu0 0
    %2805 = vmatmul.mubr.bf16.gmra.mrb[0].mxu0 %v2767
    %v2806 = vpop.f32.mrb[0].mxu0
    %v2807 = vadd.f32 0.0, %v2806
    %v2808 = vpop.f32.mrb[0].mxu0
    %v2809 = vpop.f32.mrb[0].mxu0
    %v2810 = vpop.f32.mrb[0].mxu0
    %2811 = vdwg.mxu0
    %v2813 = vsel %vm1222, %v2759, 0
    %v2816 = vsel %vm1322, %v2245, 0
    %2818 = vmatprep.subr.bf16.mxu0 0
    %2819 = vmatpush1.bf16.msra.mxu0 %v2816
    %2820 = vmatprep.subr.bf16.mxu0 0
    %2821 = vmatpush1.bf16.msra.mxu0 0
    %2822 = vmatprep.subr.bf16.mxu0 0
    %2823 = vmatpush1.bf16.msra.mxu0 0
    %2824 = vmatprep.subr.bf16.mxu0 0
    %2825 = vmatpush1.bf16.msra.mxu0 0
    %2826 = vmatprep.subr.bf16.mxu0 0
    %2827 = vmatpush1.bf16.msra.mxu0 0
    %2828 = vmatprep.subr.bf16.mxu0 0
    %2829 = vmatpush1.bf16.msra.mxu0 0
    %2830 = vmatprep.subr.bf16.mxu0 0
    %2831 = vmatpush1.bf16.msra.mxu0 0
    %2832 = vmatprep.subr.bf16.mxu0 0
    %2833 = vmatpush1.bf16.msra.mxu0 0
    %2834 = vmatprep.subr.bf16.mxu0 0
    %2835 = vmatpush1.bf16.msra.mxu0 0
    %2836 = vmatprep.subr.bf16.mxu0 0
    %2837 = vmatpush1.bf16.msra.mxu0 0
    %2838 = vmatprep.subr.bf16.mxu0 0
    %2839 = vmatpush1.bf16.msra.mxu0 0
    %2840 = vmatprep.subr.bf16.mxu0 0
    %2841 = vmatpush1.bf16.msra.mxu0 0
    %2842 = vmatprep.subr.bf16.mxu0 0
    %2843 = vmatpush1.bf16.msra.mxu0 0
    %2844 = vmatprep.subr.bf16.mxu0 0
    %2845 = vmatpush1.bf16.msra.mxu0 0
    %2846 = vmatprep.subr.bf16.mxu0 0
    %2847 = vmatpush1.bf16.msra.mxu0 0
    %2848 = vmatprep.subr.bf16.mxu0 0
    %2849 = vmatpush1.bf16.msra.mxu0 0
    %2850 = vmatprep.mubr.bf16.mxu0 0
    %2851 = vmatmul.mubr.bf16.gmra.mrb[0].mxu0 %v2813
    %v2852 = vpop.f32.mrb[0].mxu0
    %v2853 = vadd.f32 0.0, %v2852
    %v2854 = vpop.f32.mrb[0].mxu0
    %v2855 = vpop.f32.mrb[0].mxu0
    %v2856 = vpop.f32.mrb[0].mxu0
    %2857 = vdwg.mxu0
    %v2859 = vsel %vm1222, %v2760, 0
    %v2862 = vsel %vm1322, %v2247, 0
    %2864 = vmatprep.subr.bf16.mxu0 0
    %2865 = vmatpush1.bf16.msra.mxu0 %v2862
    %2866 = vmatprep.subr.bf16.mxu0 0
    %2867 = vmatpush1.bf16.msra.mxu0 0
    %2868 = vmatprep.subr.bf16.mxu0 0
    %2869 = vmatpush1.bf16.msra.mxu0 0
    %2870 = vmatprep.subr.bf16.mxu0 0
    %2871 = vmatpush1.bf16.msra.mxu0 0
    %2872 = vmatprep.subr.bf16.mxu0 0
    %2873 = vmatpush1.bf16.msra.mxu0 0
    %2874 = vmatprep.subr.bf16.mxu0 0
    %2875 = vmatpush1.bf16.msra.mxu0 0
    %2876 = vmatprep.subr.bf16.mxu0 0
    %2877 = vmatpush1.bf16.msra.mxu0 0
    %2878 = vmatprep.subr.bf16.mxu0 0
    %2879 = vmatpush1.bf16.msra.mxu0 0
    %2880 = vmatprep.subr.bf16.mxu0 0
    %2881 = vmatpush1.bf16.msra.mxu0 0
    %2882 = vmatprep.subr.bf16.mxu0 0
    %2883 = vmatpush1.bf16.msra.mxu0 0
    %2884 = vmatprep.subr.bf16.mxu0 0
    %2885 = vmatpush1.bf16.msra.mxu0 0
    %2886 = vmatprep.subr.bf16.mxu0 0
    %2887 = vmatpush1.bf16.msra.mxu0 0
    %2888 = vmatprep.subr.bf16.mxu0 0
    %2889 = vmatpush1.bf16.msra.mxu0 0
    %2890 = vmatprep.subr.bf16.mxu0 0
    %2891 = vmatpush1.bf16.msra.mxu0 0
    %2892 = vmatprep.subr.bf16.mxu0 0
    %2893 = vmatpush1.bf16.msra.mxu0 0
    %2894 = vmatprep.subr.bf16.mxu0 0
    %2895 = vmatpush1.bf16.msra.mxu0 0
    %2896 = vmatprep.mubr.bf16.mxu0 0
    %2897 = vmatmul.mubr.bf16.gmra.mrb[0].mxu0 %v2859
    %v2898 = vpop.f32.mrb[0].mxu0
    %v2899 = vadd.f32 0.0, %v2898
    %v2900 = vpop.f32.mrb[0].mxu0
    %v2901 = vpop.f32.mrb[0].mxu0
    %v2902 = vpop.f32.mrb[0].mxu0
    %2903 = vdwg.mxu0
    %v2905 = vsel %vm1222, %v2761, 0
    %v2908 = vsel %vm1322, %v2249, 0
    %2910 = vmatprep.subr.bf16.mxu0 0
    %2911 = vmatpush1.bf16.msra.mxu0 %v2908
    %2912 = vmatprep.subr.bf16.mxu0 0
    %2913 = vmatpush1.bf16.msra.mxu0 0
    %2914 = vmatprep.subr.bf16.mxu0 0
    %2915 = vmatpush1.bf16.msra.mxu0 0
    %2916 = vmatprep.subr.bf16.mxu0 0
    %2917 = vmatpush1.bf16.msra.mxu0 0
    %2918 = vmatprep.subr.bf16.mxu0 0
    %2919 = vmatpush1.bf16.msra.mxu0 0
    %2920 = vmatprep.subr.bf16.mxu0 0
    %2921 = vmatpush1.bf16.msra.mxu0 0
    %2922 = vmatprep.subr.bf16.mxu0 0
    %2923 = vmatpush1.bf16.msra.mxu0 0
    %2924 = vmatprep.subr.bf16.mxu0 0
    %2925 = vmatpush1.bf16.msra.mxu0 0
    %2926 = vmatprep.subr.bf16.mxu0 0
    %2927 = vmatpush1.bf16.msra.mxu0 0
    %2928 = vmatprep.subr.bf16.mxu0 0
    %2929 = vmatpush1.bf16.msra.mxu0 0
    %2930 = vmatprep.subr.bf16.mxu0 0
    %2931 = vmatpush1.bf16.msra.mxu0 0
    %2932 = vmatprep.subr.bf16.mxu0 0
    %2933 = vmatpush1.bf16.msra.mxu0 0
    %2934 = vmatprep.subr.bf16.mxu0 0
    %2935 = vmatpush1.bf16.msra.mxu0 0
    %2936 = vmatprep.subr.bf16.mxu0 0
    %2937 = vmatpush1.bf16.msra.mxu0 0
    %2938 = vmatprep.subr.bf16.mxu0 0
    %2939 = vmatpush1.bf16.msra.mxu0 0
    %2940 = vmatprep.subr.bf16.mxu0 0
    %2941 = vmatpush1.bf16.msra.mxu0 0
    %2942 = vmatprep.mubr.bf16.mxu0 0
    %2943 = vmatmul.mubr.bf16.gmra.mrb[0].mxu0 %v2905
    %v2944 = vpop.f32.mrb[0].mxu0
    %v2945 = vadd.f32 0.0, %v2944
    %v2946 = vpop.f32.mrb[0].mxu0
    %v2947 = vpop.f32.mrb[0].mxu0
    %v2948 = vpop.f32.mrb[0].mxu0
    %2949 = vdwg.mxu0
    %v2951 = vsel %vm1222, %v2762, 0
    %v2954 = vsel %vm1322, %v2251, 0
    %2956 = vmatprep.subr.bf16.mxu0 0
    %2957 = vmatpush1.bf16.msra.mxu0 %v2954
    %2958 = vmatprep.subr.bf16.mxu0 0
    %2959 = vmatpush1.bf16.msra.mxu0 0
    %2960 = vmatprep.subr.bf16.mxu0 0
    %2961 = vmatpush1.bf16.msra.mxu0 0
    %2962 = vmatprep.subr.bf16.mxu0 0
    %2963 = vmatpush1.bf16.msra.mxu0 0
    %2964 = vmatprep.subr.bf16.mxu0 0
    %2965 = vmatpush1.bf16.msra.mxu0 0
    %2966 = vmatprep.subr.bf16.mxu0 0
    %2967 = vmatpush1.bf16.msra.mxu0 0
    %2968 = vmatprep.subr.bf16.mxu0 0
    %2969 = vmatpush1.bf16.msra.mxu0 0
    %2970 = vmatprep.subr.bf16.mxu0 0
    %2971 = vmatpush1.bf16.msra.mxu0 0
    %2972 = vmatprep.subr.bf16.mxu0 0
    %2973 = vmatpush1.bf16.msra.mxu0 0
    %2974 = vmatprep.subr.bf16.mxu0 0
    %2975 = vmatpush1.bf16.msra.mxu0 0
    %2976 = vmatprep.subr.bf16.mxu0 0
    %2977 = vmatpush1.bf16.msra.mxu0 0
    %2978 = vmatprep.subr.bf16.mxu0 0
    %2979 = vmatpush1.bf16.msra.mxu0 0
    %2980 = vmatprep.subr.bf16.mxu0 0
    %2981 = vmatpush1.bf16.msra.mxu0 0
    %2982 = vmatprep.subr.bf16.mxu0 0
    %2983 = vmatpush1.bf16.msra.mxu0 0
    %2984 = vmatprep.subr.bf16.mxu0 0
    %2985 = vmatpush1.bf16.msra.mxu0 0
    %2986 = vmatprep.subr.bf16.mxu0 0
    %2987 = vmatpush1.bf16.msra.mxu0 0
    %2988 = vmatprep.mubr.bf16.mxu0 0
    %2989 = vmatmul.mubr.bf16.gmra.mrb[0].mxu0 %v2951
    %v2990 = vpop.f32.mrb[0].mxu0
    %v2991 = vadd.f32 0.0, %v2990
    %v2992 = vpop.f32.mrb[0].mxu0
    %v2993 = vpop.f32.mrb[0].mxu0
    %v2994 = vpop.f32.mrb[0].mxu0
    %2995 = vdwg.mxu0
    %v2997 = vsel %vm1222, %v2763, 0
    %v3000 = vsel %vm1322, %v2253, 0
    %3002 = vmatprep.subr.bf16.mxu0 0
    %3003 = vmatpush1.bf16.msra.mxu0 %v3000
    %3004 = vmatprep.subr.bf16.mxu0 0
    %3005 = vmatpush1.bf16.msra.mxu0 0
    %3006 = vmatprep.subr.bf16.mxu0 0
    %3007 = vmatpush1.bf16.msra.mxu0 0
    %3008 = vmatprep.subr.bf16.mxu0 0
    %3009 = vmatpush1.bf16.msra.mxu0 0
    %3010 = vmatprep.subr.bf16.mxu0 0
    %3011 = vmatpush1.bf16.msra.mxu0 0
    %3012 = vmatprep.subr.bf16.mxu0 0
    %3013 = vmatpush1.bf16.msra.mxu0 0
    %3014 = vmatprep.subr.bf16.mxu0 0
    %3015 = vmatpush1.bf16.msra.mxu0 0
    %3016 = vmatprep.subr.bf16.mxu0 0
    %3017 = vmatpush1.bf16.msra.mxu0 0
    %3018 = vmatprep.subr.bf16.mxu0 0
    %3019 = vmatpush1.bf16.msra.mxu0 0
    %3020 = vmatprep.subr.bf16.mxu0 0
    %3021 = vmatpush1.bf16.msra.mxu0 0
    %3022 = vmatprep.subr.bf16.mxu0 0
    %3023 = vmatpush1.bf16.msra.mxu0 0
    %3024 = vmatprep.subr.bf16.mxu0 0
    %3025 = vmatpush1.bf16.msra.mxu0 0
    %3026 = vmatprep.subr.bf16.mxu0 0
    %3027 = vmatpush1.bf16.msra.mxu0 0
    %3028 = vmatprep.subr.bf16.mxu0 0
    %3029 = vmatpush1.bf16.msra.mxu0 0
    %3030 = vmatprep.subr.bf16.mxu0 0
    %3031 = vmatpush1.bf16.msra.mxu0 0
    %3032 = vmatprep.subr.bf16.mxu0 0
    %3033 = vmatpush1.bf16.msra.mxu0 0
    %3034 = vmatprep.mubr.bf16.mxu0 0
    %3035 = vmatmul.mubr.bf16.gmra.mrb[0].mxu0 %v2997
    %v3036 = vpop.f32.mrb[0].mxu0
    %v3037 = vadd.f32 0.0, %v3036
    %v3038 = vpop.f32.mrb[0].mxu0
    %v3039 = vpop.f32.mrb[0].mxu0
    %v3040 = vpop.f32.mrb[0].mxu0
    %3041 = vdwg.mxu0
    %v3043 = vsel %vm1222, %v2764, 0
    %v3046 = vsel %vm1322, %v2255, 0
    %3048 = vmatprep.subr.bf16.mxu0 0
    %3049 = vmatpush1.bf16.msra.mxu0 %v3046
    %3050 = vmatprep.subr.bf16.mxu0 0
    %3051 = vmatpush1.bf16.msra.mxu0 0
    %3052 = vmatprep.subr.bf16.mxu0 0
    %3053 = vmatpush1.bf16.msra.mxu0 0
    %3054 = vmatprep.subr.bf16.mxu0 0
    %3055 = vmatpush1.bf16.msra.mxu0 0
    %3056 = vmatprep.subr.bf16.mxu0 0
    %3057 = vmatpush1.bf16.msra.mxu0 0
    %3058 = vmatprep.subr.bf16.mxu0 0
    %3059 = vmatpush1.bf16.msra.mxu0 0
    %3060 = vmatprep.subr.bf16.mxu0 0
    %3061 = vmatpush1.bf16.msra.mxu0 0
    %3062 = vmatprep.subr.bf16.mxu0 0
    %3063 = vmatpush1.bf16.msra.mxu0 0
    %3064 = vmatprep.subr.bf16.mxu0 0
    %3065 = vmatpush1.bf16.msra.mxu0 0
    %3066 = vmatprep.subr.bf16.mxu0 0
    %3067 = vmatpush1.bf16.msra.mxu0 0
    %3068 = vmatprep.subr.bf16.mxu0 0
    %3069 = vmatpush1.bf16.msra.mxu0 0
    %3070 = vmatprep.subr.bf16.mxu0 0
    %3071 = vmatpush1.bf16.msra.mxu0 0
    %3072 = vmatprep.subr.bf16.mxu0 0
    %3073 = vmatpush1.bf16.msra.mxu0 0
    %3074 = vmatprep.subr.bf16.mxu0 0
    %3075 = vmatpush1.bf16.msra.mxu0 0
    %3076 = vmatprep.subr.bf16.mxu0 0
    %3077 = vmatpush1.bf16.msra.mxu0 0
    %3078 = vmatprep.subr.bf16.mxu0 0
    %3079 = vmatpush1.bf16.msra.mxu0 0
    %3080 = vmatprep.mubr.bf16.mxu0 0
    %3081 = vmatmul.mubr.bf16.gmra.mrb[0].mxu0 %v3043
    %v3082 = vpop.f32.mrb[0].mxu0
    %v3083 = vadd.f32 0.0, %v3082
    %v3084 = vpop.f32.mrb[0].mxu0
    %v3085 = vpop.f32.mrb[0].mxu0
    %v3086 = vpop.f32.mrb[0].mxu0
    %3087 = vdwg.mxu0
    %v3089 = vsel %vm1222, %v2765, 0
    %v3092 = vsel %vm1322, %v2257, 0
    %3094 = vmatprep.subr.bf16.mxu0 0
    %3095 = vmatpush1.bf16.msra.mxu0 %v3092
    %3096 = vmatprep.subr.bf16.mxu0 0
    %3097 = vmatpush1.bf16.msra.mxu0 0
    %3098 = vmatprep.subr.bf16.mxu0 0
    %3099 = vmatpush1.bf16.msra.mxu0 0
    %3100 = vmatprep.subr.bf16.mxu0 0
    %3101 = vmatpush1.bf16.msra.mxu0 0
    %3102 = vmatprep.subr.bf16.mxu0 0
    %3103 = vmatpush1.bf16.msra.mxu0 0
    %3104 = vmatprep.subr.bf16.mxu0 0
    %3105 = vmatpush1.bf16.msra.mxu0 0
    %3106 = vmatprep.subr.bf16.mxu0 0
    %3107 = vmatpush1.bf16.msra.mxu0 0
    %3108 = vmatprep.subr.bf16.mxu0 0
    %3109 = vmatpush1.bf16.msra.mxu0 0
    %3110 = vmatprep.subr.bf16.mxu0 0
    %3111 = vmatpush1.bf16.msra.mxu0 0
    %3112 = vmatprep.subr.bf16.mxu0 0
    %3113 = vmatpush1.bf16.msra.mxu0 0
    %3114 = vmatprep.subr.bf16.mxu0 0
    %3115 = vmatpush1.bf16.msra.mxu0 0
    %3116 = vmatprep.subr.bf16.mxu0 0
    %3117 = vmatpush1.bf16.msra.mxu0 0
    %3118 = vmatprep.subr.bf16.mxu0 0
    %3119 = vmatpush1.bf16.msra.mxu0 0
    %3120 = vmatprep.subr.bf16.mxu0 0
    %3121 = vmatpush1.bf16.msra.mxu0 0
    %3122 = vmatprep.subr.bf16.mxu0 0
    %3123 = vmatpush1.bf16.msra.mxu0 0
    %3124 = vmatprep.subr.bf16.mxu0 0
    %3125 = vmatpush1.bf16.msra.mxu0 0
    %3126 = vmatprep.mubr.bf16.mxu0 0
    %3127 = vmatmul.mubr.bf16.gmra.mrb[0].mxu0 %v3089
    %v3128 = vpop.f32.mrb[0].mxu0
    %v3129 = vadd.f32 0.0, %v3128
    %v3130 = vpop.f32.mrb[0].mxu0
    %v3131 = vpop.f32.mrb[0].mxu0
    %v3132 = vpop.f32.mrb[0].mxu0
    %3133 = vdwg.mxu0
    %3136 = vrot.lane.b32.xlu0 %v2899, 16
    %v3137 = vpop.permute.xlu0 %3136
    %3138 = vrot.lane.b32.xlu0 %v2945, 16
    %v3139 = vpop.permute.xlu0 %3138
    %3144 = vrot.lane.b32.xlu0 %v2991, 32
    %v3145 = vpop.permute.xlu0 %3144
    %3146 = vrot.lane.b32.xlu0 %v3037, 32
    %v3147 = vpop.permute.xlu0 %3146
    %3152 = vrot.lane.b32.xlu0 %v3083, 48
    %v3153 = vpop.permute.xlu0 %3152
    %3154 = vrot.lane.b32.xlu0 %v3129, 48
    %v3155 = vpop.permute.xlu0 %3154
    %v3158 = vsel %vm805, %v2807, %v3137
    %v3159 = vsel %vm805, %v2853, %v3139
    %v3160 = vsel %vm1714, %v3158, %v3145
    %v3161 = vsel %vm1714, %v3159, %v3147
    %v3162 = vsel %vm1717, %v3160, %v3153
    %v3163 = vsel %vm1717, %v3161, %v3155
    %v3164 = vpack.c.bf16 %v3163, %v3162
    %s3165 = scalar_lea.vmem %s8, 32
    %v3166 = vld [vmem:[%s3165] sm:$0xf]
    %v3167 = vld [vmem:[%s3165 + $0x4] sm:$0xf]
    %v3168 = vld [vmem:[%s3165 + $0x8] sm:$0xf]
    %v3169 = vld [vmem:[%s3165 + $0xc] sm:$0xf]
    %v3170 = vld [vmem:[%s3165 + $0x10] sm:$0xf]
    %v3171 = vld [vmem:[%s3165 + $0x14] sm:$0xf]
    %v3172 = vld [vmem:[%s3165 + $0x18] sm:$0xf]
    %v3173 = vld [vmem:[%s3165 + $0x1c] sm:$0xf]
    %s3174 = scalar_lea.vmem %s9, 1
    %v3175 = vld [vmem:[%s3174] sm:$0x1]
    %v3177 = vlaneseq
    %v3178 = vshrl.u32 %v3177, 7
    %v3179 = vsub.s32 0, %v3178
    %v3180 = vrot.slane %v3175, %v3179
    %v3190 = vunpack.c.l.b16 %v3166
    %v3191 = vunpack.c.l.b16 %v3167
    %v3192 = vunpack.c.l.b16 %v3168
    %v3193 = vunpack.c.l.b16 %v3169
    %v3194 = vunpack.c.l.b16 %v3170
    %v3195 = vunpack.c.l.b16 %v3171
    %v3196 = vunpack.c.l.b16 %v3172
    %v3197 = vunpack.c.l.b16 %v3173
    %v3198 = vpack.c.b16 %v3191, %v3190
    %v3199 = vpack.c.b16 %v3193, %v3192
    %v3200 = vpack.c.b16 %v3195, %v3194
    %v3201 = vpack.c.b16 %v3197, %v3196
    %v3207 = vsel %vm616, %v3164, 0
    %3209 = vmatprep.subr.bf16.mxu0 0
    %3210 = vmatpush1.bf16.msra.mxu0 %v3198
    %3211 = vmatprep.subr.bf16.mxu0 0
    %3212 = vmatpush1.bf16.msra.mxu0 %v3199
    %3213 = vmatprep.subr.bf16.mxu0 0
    %3214 = vmatpush1.bf16.msra.mxu0 %v3200
    %3215 = vmatprep.subr.bf16.mxu0 0
    %3216 = vmatpush1.bf16.msra.mxu0 %v3201
    %3217 = vmatprep.subr.bf16.mxu0 0
    %3218 = vmatpush1.bf16.msra.mxu0 0
    %3219 = vmatprep.subr.bf16.mxu0 0
    %3220 = vmatpush1.bf16.msra.mxu0 0
    %3221 = vmatprep.subr.bf16.mxu0 0
    %3222 = vmatpush1.bf16.msra.mxu0 0
    %3223 = vmatprep.subr.bf16.mxu0 0
    %3224 = vmatpush1.bf16.msra.mxu0 0
    %3225 = vmatprep.subr.bf16.mxu0 0
    %3226 = vmatpush1.bf16.msra.mxu0 0
    %3227 = vmatprep.subr.bf16.mxu0 0
    %3228 = vmatpush1.bf16.msra.mxu0 0
    %3229 = vmatprep.subr.bf16.mxu0 0
    %3230 = vmatpush1.bf16.msra.mxu0 0
    %3231 = vmatprep.subr.bf16.mxu0 0
    %3232 = vmatpush1.bf16.msra.mxu0 0
    %3233 = vmatprep.subr.bf16.mxu0 0
    %3234 = vmatpush1.bf16.msra.mxu0 0
    %3235 = vmatprep.subr.bf16.mxu0 0
    %3236 = vmatpush1.bf16.msra.mxu0 0
    %3237 = vmatprep.subr.bf16.mxu0 0
    %3238 = vmatpush1.bf16.msra.mxu0 0
    %3239 = vmatprep.subr.bf16.mxu0 0
    %3240 = vmatpush1.bf16.msra.mxu0 0
    %3241 = vmatprep.mubr.bf16.mxu0 0
    %3242 = vmatmul.mubr.bf16.gmra.mrb[0].mxu0 %v3207
    %v3243 = vpop.f32.mrb[0].mxu0
    %v3244 = vadd.f32 %v3180, %v3243
    %v3245 = vpop.f32.mrb[0].mxu0
    %v3246 = vpop.f32.mrb[0].mxu0
    %v3247 = vadd.f32 %v3180, %v3246
    %v3248 = vpop.f32.mrb[0].mxu0
    %3249 = vdwg.mxu0
    %v3250 = vadd.f32 %v2065, %v3244
    %v3251 = vadd.f32 %v2066, %v3247
    %s3252 = scalar_lea.vmem %s10, 1
    %v3253 = vld [vmem:[%s3252] sm:$0x1]
    %s3254 = scalar_lea.vmem %s11, 1
    %v3255 = vld [vmem:[%s3254] sm:$0x1]
    %v3256 = vsel %vm616, %v3250, 0.0
    %3257 = vadd.xlane.f32.xlu0 %v3256
    %v3258 = vpop.xlane.xlu0 %3257
    %v3259 = vsel %vm616, %v3251, 0.0
    %3260 = vadd.xlane.f32.xlu0 %v3259
    %v3261 = vpop.xlane.xlu0 %3260
    %v3262 = vmul.f32 %v3258, %v623
    %v3263 = vmul.f32 %v3261, %v623
    %v3264 = vsub.f32 %v3250, %v3262
    %v3265 = vsub.f32 %v3251, %v3263
    %v3266 = vmul.f32 %v3264, %v3264
    %v3267 = vmul.f32 %v3265, %v3265
    %v3268 = vsel %vm616, %v3266, 0.0
    %3269 = vadd.xlane.f32.xlu0 %v3268
    %v3270 = vpop.xlane.xlu0 %3269
    %v3271 = vsel %vm616, %v3267, 0.0
    %3272 = vadd.xlane.f32.xlu0 %v3271
    %v3273 = vpop.xlane.xlu0 %3272
    %v3274 = vmul.f32 %v3270, %v623
    %v3275 = vmul.f32 %v3273, %v623
    %v3276 = vadd.f32 %v3274, 1e-12
    %v3277 = vadd.f32 %v3275, 1e-12
    %v3278 = vrsqrt.pop %v3276
    %v3279 = vrsqrt.pop %v3277
    %v3280 = vmul.f32 %v3264, %v3278
    %v3281 = vmul.f32 %v3265, %v3279
    %v3283 = vlaneseq
    %v3284 = vshrl.u32 %v3283, 7
    %v3285 = vsub.s32 0, %v3284
    %v3286 = vrot.slane %v3253, %v3285
    %v3288 = vmul.f32 %v3280, %v3286
    %v3289 = vmul.f32 %v3281, %v3286
    %v3291 = vlaneseq
    %v3292 = vshrl.u32 %v3291, 7
    %v3293 = vsub.s32 0, %v3292
    %v3294 = vrot.slane %v3255, %v3293
    %v3296 = vadd.f32 %v3288, %v3294
    %v3297 = vadd.f32 %v3289, %v3294
    %v3298 = vpack.c.bf16 %v3297, %v3296
    %s3299 = scalar_lea.vmem %s12, 32
    %v3300 = vld [vmem:[%s3299] sm:$0xf]
    %v3301 = vld [vmem:[%s3299 + $0x4] sm:$0xf]
    %v3302 = vld [vmem:[%s3299 + $0x8] sm:$0xf]
    %v3303 = vld [vmem:[%s3299 + $0xc] sm:$0xf]
    %v3304 = vld [vmem:[%s3299 + $0x10] sm:$0xf]
    %v3305 = vld [vmem:[%s3299 + $0x14] sm:$0xf]
    %v3306 = vld [vmem:[%s3299 + $0x18] sm:$0xf]
    %v3307 = vld [vmem:[%s3299 + $0x1c] sm:$0xf]
    %s3308 = scalar_lea.vmem %s13, 1
    %v3309 = vld [vmem:[%s3308] sm:$0x1]
    %v3311 = vlaneseq
    %v3312 = vshrl.u32 %v3311, 7
    %v3313 = vsub.s32 0, %v3312
    %v3314 = vrot.slane %v3309, %v3313
    %v3324 = vunpack.c.l.b16 %v3300
    %v3325 = vunpack.c.l.b16 %v3301
    %v3326 = vunpack.c.l.b16 %v3302
    %v3327 = vunpack.c.l.b16 %v3303
    %v3328 = vunpack.c.l.b16 %v3304
    %v3329 = vunpack.c.l.b16 %v3305
    %v3330 = vunpack.c.l.b16 %v3306
    %v3331 = vunpack.c.l.b16 %v3307
    %v3332 = vpack.c.b16 %v3325, %v3324
    %v3333 = vpack.c.b16 %v3327, %v3326
    %v3334 = vpack.c.b16 %v3329, %v3328
    %v3335 = vpack.c.b16 %v3331, %v3330
    %v3341 = vsel %vm616, %v3298, 0
    %3343 = vmatprep.subr.bf16.mxu0 0
    %3344 = vmatpush1.bf16.msra.mxu0 %v3332
    %3345 = vmatprep.subr.bf16.mxu0 0
    %3346 = vmatpush1.bf16.msra.mxu0 %v3333
    %3347 = vmatprep.subr.bf16.mxu0 0
    %3348 = vmatpush1.bf16.msra.mxu0 %v3334
    %3349 = vmatprep.subr.bf16.mxu0 0
    %3350 = vmatpush1.bf16.msra.mxu0 %v3335
    %3351 = vmatprep.subr.bf16.mxu0 0
    %3352 = vmatpush1.bf16.msra.mxu0 0
    %3353 = vmatprep.subr.bf16.mxu0 0
    %3354 = vmatpush1.bf16.msra.mxu0 0
    %3355 = vmatprep.subr.bf16.mxu0 0
    %3356 = vmatpush1.bf16.msra.mxu0 0
    %3357 = vmatprep.subr.bf16.mxu0 0
    %3358 = vmatpush1.bf16.msra.mxu0 0
    %3359 = vmatprep.subr.bf16.mxu0 0
    %3360 = vmatpush1.bf16.msra.mxu0 0
    %3361 = vmatprep.subr.bf16.mxu0 0
    %3362 = vmatpush1.bf16.msra.mxu0 0
    %3363 = vmatprep.subr.bf16.mxu0 0
    %3364 = vmatpush1.bf16.msra.mxu0 0
    %3365 = vmatprep.subr.bf16.mxu0 0
    %3366 = vmatpush1.bf16.msra.mxu0 0
    %3367 = vmatprep.subr.bf16.mxu0 0
    %3368 = vmatpush1.bf16.msra.mxu0 0
    %3369 = vmatprep.subr.bf16.mxu0 0
    %3370 = vmatpush1.bf16.msra.mxu0 0
    %3371 = vmatprep.subr.bf16.mxu0 0
    %3372 = vmatpush1.bf16.msra.mxu0 0
    %3373 = vmatprep.subr.bf16.mxu0 0
    %3374 = vmatpush1.bf16.msra.mxu0 0
    %3375 = vmatprep.mubr.bf16.mxu0 0
    %3376 = vmatmul.mubr.bf16.gmra.mrb[0].mxu0 %v3341
    %v3377 = vpop.f32.mrb[0].mxu0
    %v3378 = vadd.f32 %v3314, %v3377
    %v3379 = vpop.f32.mrb[0].mxu0
    %v3380 = vpop.f32.mrb[0].mxu0
    %v3381 = vadd.f32 %v3314, %v3380
    %v3382 = vpop.f32.mrb[0].mxu0
    %3383 = vdwg.mxu0
    %v3384 = vmul.f32 %v3378, %v3378
    %v3385 = vmul.f32 %v3381, %v3381
    %v3386 = vmul.f32 %v3378, %v3384
    %v3387 = vmul.f32 %v3381, %v3385
    %v3388 = vmul.f32 %v3386, 0.044715
    %v3389 = vmul.f32 %v3387, 0.044715
    %v3390 = vadd.f32 %v3378, %v3388
    %v3391 = vadd.f32 %v3381, %v3389
    %v3392 = vmul.f32 %v3390, 0.7978846
    %v3393 = vmul.f32 %v3391, 0.7978846
    %v3394 = vtanh.pop %v3392
    %v3395 = vtanh.pop %v3393
    %v3396 = vadd.f32 %v3394, 1.0
    %v3397 = vadd.f32 %v3395, 1.0
    %v3398 = vmul.f32 %v3396, 0.5
    %v3399 = vmul.f32 %v3397, 0.5
    %v3400 = vmul.f32 %v3378, %v3398
    %v3401 = vmul.f32 %v3381, %v3399
    %v3402 = vpack.c.bf16 %v3401, %v3400
    %s3403 = scalar_lea.vmem %s14, 64
    %v3404 = vld [vmem:[%s3403] sm:$0xf]
    %v3405 = vld [vmem:[%s3403 + $0x4] sm:$0xf]
    %v3406 = vld [vmem:[%s3403 + $0x8] sm:$0xf]
    %v3407 = vld [vmem:[%s3403 + $0xc] sm:$0xf]
    %v3408 = vld [vmem:[%s3403 + $0x10] sm:$0xf]
    %v3409 = vld [vmem:[%s3403 + $0x14] sm:$0xf]
    %v3410 = vld [vmem:[%s3403 + $0x18] sm:$0xf]
    %v3411 = vld [vmem:[%s3403 + $0x1c] sm:$0xf]
    %v3412 = vld [vmem:[%s3403 + $0x20] sm:$0xf]
    %v3413 = vld [vmem:[%s3403 + $0x24] sm:$0xf]
    %v3414 = vld [vmem:[%s3403 + $0x28] sm:$0xf]
    %v3415 = vld [vmem:[%s3403 + $0x2c] sm:$0xf]
    %v3416 = vld [vmem:[%s3403 + $0x30] sm:$0xf]
    %v3417 = vld [vmem:[%s3403 + $0x34] sm:$0xf]
    %v3418 = vld [vmem:[%s3403 + $0x38] sm:$0xf]
    %v3419 = vld [vmem:[%s3403 + $0x3c] sm:$0xf]
    %s3420 = scalar_lea.vmem %s15, 1
    %v3421 = vld [vmem:[%s3420] sm:$0x1]
    %v3423 = vlaneseq
    %v3424 = vshrl.u32 %v3423, 7
    %v3425 = vsub.s32 0, %v3424
    %v3426 = vrot.slane %v3421, %v3425
    %v3444 = vunpack.c.l.b16 %v3404
    %v3445 = vunpack.c.l.b16 %v3405
    %v3446 = vunpack.c.l.b16 %v3406
    %v3447 = vunpack.c.l.b16 %v3407
    %v3448 = vunpack.c.l.b16 %v3408
    %v3449 = vunpack.c.l.b16 %v3409
    %v3450 = vunpack.c.l.b16 %v3410
    %v3451 = vunpack.c.l.b16 %v3411
    %v3452 = vunpack.c.l.b16 %v3412
    %v3453 = vunpack.c.l.b16 %v3413
    %v3454 = vunpack.c.l.b16 %v3414
    %v3455 = vunpack.c.l.b16 %v3415
    %v3456 = vunpack.c.l.b16 %v3416
    %v3457 = vunpack.c.l.b16 %v3417
    %v3458 = vunpack.c.l.b16 %v3418
    %v3459 = vunpack.c.l.b16 %v3419
    %v3460 = vpack.c.b16 %v3445, %v3444
    %v3461 = vpack.c.b16 %v3447, %v3446
    %v3462 = vpack.c.b16 %v3449, %v3448
    %v3463 = vpack.c.b16 %v3451, %v3450
    %v3464 = vpack.c.b16 %v3453, %v3452
    %v3465 = vpack.c.b16 %v3455, %v3454
    %v3466 = vpack.c.b16 %v3457, %v3456
    %v3467 = vpack.c.b16 %v3459, %v3458
    %3476 = vmatprep.subr.bf16.mxu0 0
    %3477 = vmatpush1.bf16.msra.mxu0 %v3460
    %3478 = vmatprep.subr.bf16.mxu0 0
    %3479 = vmatpush1.bf16.msra.mxu0 %v3461
    %3480 = vmatprep.subr.bf16.mxu0 0
    %3481 = vmatpush1.bf16.msra.mxu0 %v3462
    %3482 = vmatprep.subr.bf16.mxu0 0
    %3483 = vmatpush1.bf16.msra.mxu0 %v3463
    %3484 = vmatprep.subr.bf16.mxu0 0
    %3485 = vmatpush1.bf16.msra.mxu0 %v3464
    %3486 = vmatprep.subr.bf16.mxu0 0
    %3487 = vmatpush1.bf16.msra.mxu0 %v3465
    %3488 = vmatprep.subr.bf16.mxu0 0
    %3489 = vmatpush1.bf16.msra.mxu0 %v3466
    %3490 = vmatprep.subr.bf16.mxu0 0
    %3491 = vmatpush1.bf16.msra.mxu0 %v3467
    %3492 = vmatprep.subr.bf16.mxu0 0
    %3493 = vmatpush1.bf16.msra.mxu0 0
    %3494 = vmatprep.subr.bf16.mxu0 0
    %3495 = vmatpush1.bf16.msra.mxu0 0
    %3496 = vmatprep.subr.bf16.mxu0 0
    %3497 = vmatpush1.bf16.msra.mxu0 0
    %3498 = vmatprep.subr.bf16.mxu0 0
    %3499 = vmatpush1.bf16.msra.mxu0 0
    %3500 = vmatprep.subr.bf16.mxu0 0
    %3501 = vmatpush1.bf16.msra.mxu0 0
    %3502 = vmatprep.subr.bf16.mxu0 0
    %3503 = vmatpush1.bf16.msra.mxu0 0
    %3504 = vmatprep.subr.bf16.mxu0 0
    %3505 = vmatpush1.bf16.msra.mxu0 0
    %3506 = vmatprep.subr.bf16.mxu0 0
    %3507 = vmatpush1.bf16.msra.mxu0 0
    %3508 = vmatprep.mubr.bf16.mxu0 0
    %3509 = vmatmul.mubr.bf16.gmra.mrb[0].mxu0 %v3402
    %v3510 = vpop.f32.mrb[0].mxu0
    %v3511 = vadd.f32 %v3426, %v3510
    %v3512 = vpop.f32.mrb[0].mxu0
    %v3513 = vpop.f32.mrb[0].mxu0
    %v3514 = vadd.f32 %v3426, %v3513
    %v3515 = vpop.f32.mrb[0].mxu0
    %3516 = vdwg.mxu0
    %v3517 = vadd.f32 %v3250, %v3511
    %v3518 = vadd.f32 %v3251, %v3514
    %v3519 = vld [vmem:[%s16] sm:$0x1]
    %v3520 = vld [vmem:[%s17] sm:$0x1]
    %v3523 = vrot.slane %v3518, 7
    %vm3524 = vcmask 1041409
    %v3525 = vsel %vm3524, %v3523, %v3517
    %vm3527 = vcmask 517120
    %v3528 = vsel %vm3527, %v3525, 0.0
    %3529 = vadd.xlane.f32.xlu0 %v3528
    %v3530 = vpop.xlane.xlu0 %3529
    %v3531 = vmul.f32 %v3530, %v623
    %v3533 = vrot.slane %v3531, 1
    %v3536 = vsub.f32 %v3517, %v3531
    %v3537 = vsub.f32 %v3518, %v3533
    %v3538 = vmul.f32 %v3536, %v3536
    %v3539 = vmul.f32 %v3537, %v3537
    %v3542 = vrot.slane %v3539, 7
    %v3543 = vsel %vm3524, %v3542, %v3538
    %v3545 = vsel %vm3527, %v3543, 0.0
    %3546 = vadd.xlane.f32.xlu0 %v3545
    %v3547 = vpop.xlane.xlu0 %3546
    %v3548 = vmul.f32 %v3547, %v623
    %v3549 = vadd.f32 %v3548, 1e-12
    %v3550 = vrsqrt.pop %v3549
    %v3552 = vrot.slane %v3550, 1
    %v3555 = vmul.f32 %v3536, %v3550
    %v3556 = vmul.f32 %v3537, %v3552
    %v3558 = vlaneseq
    %v3559 = vshrl.u32 %v3558, 7
    %v3560 = vsub.s32 0, %v3559
    %v3561 = vrot.slane %v3519, %v3560
    %v3563 = vmul.f32 %v3555, %v3561
    %v3564 = vmul.f32 %v3556, %v3561
    %v3566 = vlaneseq
    %v3567 = vshrl.u32 %v3566, 7
    %v3568 = vsub.s32 0, %v3567
    %v3569 = vrot.slane %v3520, %v3568
    %v3571 = vadd.f32 %v3563, %v3569
    %v3572 = vadd.f32 %v3564, %v3569
    %v3573 = vpack.c.bf16 %v3571, %v3571
    %v3574 = vpack.c.bf16 %v3572, %v3572
    %v3575 = vld [vmem:[%s18] sm:$0xf]
    %v3576 = vld [vmem:[%s18 + $0x4] sm:$0xf]
    %v3577 = vld [vmem:[%s18 + $0x8] sm:$0xf]
    %v3578 = vld [vmem:[%s18 + $0xc] sm:$0xf]
    %v3579 = vld [vmem:[%s18 + $0x10] sm:$0xf]
    %v3580 = vld [vmem:[%s18 + $0x14] sm:$0xf]
    %v3581 = vld [vmem:[%s18 + $0x18] sm:$0xf]
    %v3582 = vld [vmem:[%s18 + $0x1c] sm:$0xf]
    %v3583 = vld [vmem:[%s19] sm:$0x1]
    %v3585 = vlaneseq
    %v3586 = vshrl.u32 %v3585, 7
    %v3587 = vsub.s32 0, %v3586
    %v3588 = vrot.slane %v3583, %v3587
    %v3592 = vunpack.c.l.b16 %v3573
    %v3593 = vunpack.c.l.b16 %v3574
    %v3594 = vrot.slane %v3593, 7
    %v3595 = vsel %vm3524, %v3594, %v3592
    %v3596 = vpack.c.b16 %v3595, %v3595
    %v3605 = vunpack.c.l.b16 %v3575
    %v3606 = vunpack.c.l.b16 %v3576
    %v3607 = vunpack.c.l.b16 %v3577
    %v3608 = vunpack.c.l.b16 %v3578
    %v3609 = vunpack.c.l.b16 %v3579
    %v3610 = vunpack.c.l.b16 %v3580
    %v3611 = vunpack.c.l.b16 %v3581
    %v3612 = vunpack.c.l.b16 %v3582
    %v3613 = vpack.c.b16 %v3606, %v3605
    %v3614 = vpack.c.b16 %v3608, %v3607
    %v3615 = vpack.c.b16 %v3610, %v3609
    %v3616 = vpack.c.b16 %v3612, %v3611
    %v3622 = vsel %vm616, %v3596, 0
    %3624 = vmatprep.subr.bf16.mxu0 0
    %3625 = vmatpush1.bf16.msra.mxu0 %v3613
    %3626 = vmatprep.subr.bf16.mxu0 0
    %3627 = vmatpush1.bf16.msra.mxu0 %v3614
    %3628 = vmatprep.subr.bf16.mxu0 0
    %3629 = vmatpush1.bf16.msra.mxu0 %v3615
    %3630 = vmatprep.subr.bf16.mxu0 0
    %3631 = vmatpush1.bf16.msra.mxu0 %v3616
    %3632 = vmatprep.subr.bf16.mxu0 0
    %3633 = vmatpush1.bf16.msra.mxu0 0
    %3634 = vmatprep.subr.bf16.mxu0 0
    %3635 = vmatpush1.bf16.msra.mxu0 0
    %3636 = vmatprep.subr.bf16.mxu0 0
    %3637 = vmatpush1.bf16.msra.mxu0 0
    %3638 = vmatprep.subr.bf16.mxu0 0
    %3639 = vmatpush1.bf16.msra.mxu0 0
    %3640 = vmatprep.subr.bf16.mxu0 0
    %3641 = vmatpush1.bf16.msra.mxu0 0
    %3642 = vmatprep.subr.bf16.mxu0 0
    %3643 = vmatpush1.bf16.msra.mxu0 0
    %3644 = vmatprep.subr.bf16.mxu0 0
    %3645 = vmatpush1.bf16.msra.mxu0 0
    %3646 = vmatprep.subr.bf16.mxu0 0
    %3647 = vmatpush1.bf16.msra.mxu0 0
    %3648 = vmatprep.subr.bf16.mxu0 0
    %3649 = vmatpush1.bf16.msra.mxu0 0
    %3650 = vmatprep.subr.bf16.mxu0 0
    %3651 = vmatpush1.bf16.msra.mxu0 0
    %3652 = vmatprep.subr.bf16.mxu0 0
    %3653 = vmatpush1.bf16.msra.mxu0 0
    %3654 = vmatprep.subr.bf16.mxu0 0
    %3655 = vmatpush1.bf16.msra.mxu0 0
    %3656 = vmatprep.mubr.bf16.mxu0 0
    %3657 = vmatmul.mubr.bf16.gmra.mrb[0].mxu0 %v3622
    %v3658 = vpop.f32.mrb[0].mxu0
    %v3659 = vadd.f32 %v3588, %v3658
    %v3660 = vpop.f32.mrb[0].mxu0
    %v3661 = vpop.f32.mrb[0].mxu0
    %v3662 = vpop.f32.mrb[0].mxu0
    %3663 = vdwg.mxu0
    %v3664 = vtanh.pop %v3659
    %3665 = vst.msk [vmem:[#allocation2] sm:$0x3] %vm3527, %v3664
    // Predicated region
    $region82: #{visual_encoder_forward.1} parent=1 // pred_check
      _
    $region83: #{visual_encoder_forward.1} parent=1 // pred_check_branch
      %3667 = sbr.rel (0) target = $region85
    $region84: #{visual_encoder_forward.1} parent=1 // pred_region
      %s3669 = ssub.s32 32, 32
      %3670 = vsyncadd [#allocation3], %s3669
      %s3672 = sshll.u32 [#allocation2], 4
      %s3673 = int_to_ptr.vmem [resolvable:$true] %s3672
      %3675 = dma.vmem_to_hbm [thread:$0]  %s3673, 32, %s20, [#allocation3]
    $region85: #{visual_encoder_forward.1} parent=1 // pred_fallthru
      _
    // Predicated region
    $region86: #{visual_encoder_forward.1} parent=1 // pred_check
      _
    $region87: #{visual_encoder_forward.1} parent=1 // pred_check_branch
      %3677 = sbr.rel (0) target = $region89
    $region88: #{visual_encoder_forward.1} parent=1 // pred_region
      %3678 = dma.done [#allocation3], 32
    $region89: #{visual_encoder_forward.1} parent=1 // pred_fallthru
      _
    %3679 = vsyncpa [#allocation3], 1

</llo_original>
